<compile_context>
chip_gen: v5e
topology: v5e:2x2
jax: 0.10.0
libtpu: 0.0.40
codegen_flags: <defaults>
</compile_context>

<pallas_src>
import jax
import jax.numpy as jnp
from jax.experimental import pallas as pl
from jax.experimental.pallas import tpu as pltpu

VMEM = pl.BlockSpec(memory_space=pltpu.MemorySpace.VMEM)

# Pool2 output (io, jo) lives at flat act3/m4 row base 26*io + 2*jo (per image),
# in r = io*5 + jo order (this order is baked into wfp).
_POOL2_BASE = tuple(26 * io + 2 * jo for io in range(5) for jo in range(5))
# conv3 tap (dy, dx) reads act2 at row offset dy*13 + dx, t = dy*3 + dx order
# (this order is baked into the (288, 32) w3).
_CONV3_OFFS = tuple(dy * 13 + dx for dy in range(3) for dx in range(3))


def _check_geometry(n):
    """Static check (review correctness note): every act3 row touched by pool2
    decodes to a valid conv3 output pixel (yo<=10, xo<=10) of the same image and
    stays inside the computed conv3 slab."""
    m3 = 169 * n - 28
    for b in range(n):
        for base in _POOL2_BASE:
            for d in (0, 1, 13, 14):
                s = 169 * b + base + d
                assert s < m3
                rel = s - 169 * b
                yo, xo = rel // 13, rel % 13
                assert yo <= 10 and xo <= 10


# ----------------------------------------------------------------------------
# The single fused kernel
# ----------------------------------------------------------------------------
def _make_kernel(n_batch):
    M1 = 169 * n_batch                 # 13x13 post-pool1 rows, row = b*169 + y*13 + x
    M1P = ((M1 + 7) // 8) * 8          # per-pool-position slab rows, 8-aligned (zero pad)
    M3 = M1 - 28                       # conv3 rows computed (max tap offset = 2*13 + 2)
    M4 = M3 - 14                       # pool2 candidate rows (max window offset = 13 + 1)
    _check_geometry(n_batch)

    def kernel(patches_ref, w1_ref, w2_ref, w3_ref, wfp_ref, aff_ref,
               out_ref, act2_ref, act3_ref, m4_ref):
        f32, bf16 = jnp.float32, jnp.bfloat16

        # packed per-channel affine vectors (one (8,32) input, sliced by row)
        b1, s1, t1 = aff_ref[0:1, :], aff_ref[1:2, :], aff_ref[2:3, :]
        b2 = aff_ref[3:4, :]
        b3, s3, t3 = aff_ref[4:5, :], aff_ref[5:6, :], aff_ref[6:7, :]
        bfc = aff_ref[7:8, :]

        # ---- conv1 (3x3) -> +bias -> ReLU -> BN for all 4 pool1 window
        #      positions in ONE stacked-M GEMM; pool1 = 4-way slab max. ----
        z = jnp.dot(patches_ref[...], w1_ref[...], preferred_element_type=f32)
        y = jnp.maximum(z + b1, 0.0) * s1 + t1                       # (4*M1P, 32)
        p1 = jnp.maximum(jnp.maximum(y[0:M1P], y[M1P:2 * M1P]),
                         jnp.maximum(y[2 * M1P:3 * M1P], y[3 * M1P:4 * M1P]))

        # ---- conv2 (1x1) -> ReLU ----
        a2 = jnp.dot(p1.astype(bf16), w2_ref[...], preferred_element_type=f32)
        act2_ref[...] = jnp.maximum(a2 + b2, 0.0)                    # (M1P, 32) f32

        # ---- conv3 (3x3) -> ReLU -> BN: ONE K=288 GEMM on the lane-concatenated
        #      row-shifted act2 slabs (shifted-slab im2col, no tap loop).
        #      Rows whose (y, x) fall outside the valid conv3 output are garbage
        #      but are never touched by pool2 (statically checked above). ----
        cols = jnp.concatenate(
            [act2_ref[pl.ds(off, M3), :] for off in _CONV3_OFFS],
            axis=-1).astype(bf16)                                    # (M3, 288)
        y3 = jnp.dot(cols, w3_ref[...], preferred_element_type=f32)
        act3_ref[...] = jnp.maximum(y3 + b3, 0.0) * s3 + t3          # (M3, 32) f32

        # ---- pool2 (2x2): elementwise max of the 4 shifted act3 slabs ----
        m4_ref[...] = jnp.maximum(
            jnp.maximum(act3_ref[pl.ds(0, M4), :], act3_ref[pl.ds(1, M4), :]),
            jnp.maximum(act3_ref[pl.ds(13, M4), :], act3_ref[pl.ds(14, M4), :]))

        # ---- gather the 25 pooled rows per image (tiny single-row VMEM reads),
        #      lane-concat into an (N, 800) fc input with lane = r*32 + c (the
        #      matching flatten permutation is baked into wfp), then ONE
        #      (N, 800)@(800, 10) GEMM and log_softmax. ----
        fc_rows = [
            jnp.concatenate(
                [m4_ref[pl.ds(169 * b + base, 1), :] for base in _POOL2_BASE],
                axis=-1)
            for b in range(n_batch)]
        fcin = jnp.concatenate(fc_rows, axis=0).astype(bf16)         # (N, 800)
        logits = jnp.dot(fcin, wfp_ref[...], preferred_element_type=f32)
        logits = logits + bfc[:, :10]

        mx = jnp.max(logits, axis=-1, keepdims=True)
        zc = logits - mx
        lse = jnp.log(jnp.sum(jnp.exp(zc), axis=-1, keepdims=True))
        out_ref[...] = (zc - lse).astype(out_ref.dtype)

    return kernel, M1P, M3, M4


# ----------------------------------------------------------------------------
# Parameter / input preparation (done once, outside the hot path)
# ----------------------------------------------------------------------------
def bn_fold(gamma, beta, mean, var, eps=1e-5):
    scale = gamma / jnp.sqrt(var + eps)
    shift = beta - mean * scale
    return scale, shift


def prepare_params(p):
    """Fold BN into per-channel affine, reshape conv/fc weights to single-GEMM
    form (conv3 -> (288,32), fc with the NCHW flatten permutation -> (800,10)),
    pack the 8 tiny per-channel vectors into one (8,32) input, cast GEMM
    operands to bf16 (accumulation stays f32 in the kernel)."""
    bf16, f32 = jnp.bfloat16, jnp.float32
    s1, t1 = bn_fold(p["bn1_g"], p["bn1_b"], p["bn1_m"], p["bn1_v"])
    s3, t3 = bn_fold(p["bn3_g"], p["bn3_b"], p["bn3_m"], p["bn3_v"])

    def row(v):
        v = jnp.asarray(v, f32).reshape(-1)
        return jnp.pad(v, (0, 32 - v.shape[0]))

    aff = jnp.stack([row(p["b1"]), row(s1), row(t1), row(p["b2"]),
                     row(p["b3"]), row(s3), row(t3), row(p["bf"])], axis=0)
    return dict(
        # (dy,dx,cin,cout) -> row dy*3+dx
        w1=jnp.transpose(p["w1"], (2, 3, 1, 0)).reshape(9, 32).astype(bf16),
        # (Cin, Cout)
        w2=p["w2"].reshape(32, 32).T.astype(bf16),
        # (dy,dx,cin,cout) -> row (dy*3+dx)*32 + cin  (matches lane-concat order)
        w3=jnp.transpose(p["w3"], (2, 3, 1, 0)).reshape(288, 32).astype(bf16),
        # PyTorch flatten index = c*25 + r  ->  kernel lane index = r*32 + c
        wfp=jnp.transpose(p["wf"].reshape(10, 32, 25), (2, 1, 0)).reshape(800, 10).astype(bf16),
        aff=aff.astype(f32),
    )


def _pool_grouped_patches(x_nchw, m1p):
    """conv1 im2col with rows ordered by the pool1 OUTPUT pixel (b, i, j); the 4
    positions of each 2x2 pool window are stacked on the (8-aligned, zero padded)
    leading axis so conv1+pool1 becomes one stacked GEMM + a 4-way slab max."""
    n = x_nchw.shape[0]
    xs = x_nchw[:, 0].astype(jnp.float32)                      # (N, 28, 28)
    blocks = []
    for di in range(2):
        for dj in range(2):
            taps = [xs[:, di + dy:di + dy + 26:2, dj + dx:dj + dx + 26:2]
                    for dy in range(3) for dx in range(3)]     # each (N, 13, 13)
            blk = jnp.stack(taps, axis=-1).reshape(n * 169, 9)
            blocks.append(jnp.pad(blk, ((0, m1p - n * 169), (0, 0))))
    return jnp.concatenate(blocks, axis=0).astype(jnp.bfloat16)   # (4*m1p, 9)


# ----------------------------------------------------------------------------
# Forward
# ----------------------------------------------------------------------------
@jax.jit
def net_forward(x_nchw, kp):
    n = x_nchw.shape[0]
    kernel, m1p, m3, m4 = _make_kernel(n)
    patches = _pool_grouped_patches(x_nchw, m1p)   # wrapper-side glue (~48 KB, jitted)
    out = pl.pallas_call(
        kernel,
        out_shape=jax.ShapeDtypeStruct((n, 10), jnp.float32),
        in_specs=[VMEM] * 6,
        out_specs=VMEM,
        scratch_shapes=[
            pltpu.VMEM((m1p, 32), jnp.float32),    # act2 (post conv2+ReLU)
            pltpu.VMEM((m3, 32), jnp.float32),     # act3 (post conv3+ReLU+BN)
            pltpu.VMEM((m4, 32), jnp.float32),     # pool2 candidate maxima
        ],
    )(patches, kp["w1"], kp["w2"], kp["w3"], kp["wfp"], kp["aff"])
    return out


# ----------------------------------------------------------------------------
# Parameter init + pure-XLA reference (for the self-check in __main__)
# ----------------------------------------------------------------------------
def init_params(key):
    ks = jax.random.split(key, 12)
    p = {}

    def w_init(k, shape, fan_in):
        bound = 1.0 / jnp.sqrt(fan_in)
        return jax.random.uniform(k, shape, jnp.float32, -bound, bound)

    p["w1"] = w_init(ks[0], (32, 1, 3, 3), 1 * 9)
    p["b1"] = w_init(ks[1], (32,), 1 * 9)
    p["bn1_g"] = 1.0 + 0.1 * jax.random.normal(ks[2], (32,), jnp.float32)
    p["bn1_b"] = 0.1 * jax.random.normal(ks[3], (32,), jnp.float32)
    p["bn1_m"] = jnp.zeros((32,), jnp.float32)
    p["bn1_v"] = jnp.ones((32,), jnp.float32)
    p["w2"] = w_init(ks[4], (32, 32, 1, 1), 32 * 1)
    p["b2"] = w_init(ks[5], (32,), 32 * 1)
    p["w3"] = w_init(ks[6], (32, 32, 3, 3), 32 * 9)
    p["b3"] = w_init(ks[7], (32,), 32 * 9)
    p["bn3_g"] = 1.0 + 0.1 * jax.random.normal(ks[8], (32,), jnp.float32)
    p["bn3_b"] = 0.1 * jax.random.normal(ks[9], (32,), jnp.float32)
    p["bn3_m"] = jnp.zeros((32,), jnp.float32)
    p["bn3_v"] = jnp.ones((32,), jnp.float32)
    p["wf"] = w_init(ks[10], (10, 800), 800)
    p["bf"] = w_init(ks[11], (10,), 800)
    return p


def reference_forward(x, p, eps=1e-5):
    def conv(z, w, b):
        y = jax.lax.conv_general_dilated(
            z, w, window_strides=(1, 1), padding="VALID",
            dimension_numbers=("NCHW", "OIHW", "NCHW"))
        return y + b.reshape(1, -1, 1, 1)

    def bn(z, g, b, m, v):
        inv = (g / jnp.sqrt(v + eps)).reshape(1, -1, 1, 1)
        return (z - m.reshape(1, -1, 1, 1)) * inv + b.reshape(1, -1, 1, 1)

    def pool(z):
        return jax.lax.reduce_window(z, -jnp.inf, jax.lax.max,
                                     (1, 1, 2, 2), (1, 1, 2, 2), "VALID")

    y = bn(jnp.maximum(conv(x, p["w1"], p["b1"]), 0.0),
           p["bn1_g"], p["bn1_b"], p["bn1_m"], p["bn1_v"])
    y = pool(y)
    y = jnp.maximum(conv(y, p["w2"], p["b2"]), 0.0)
    y = bn(jnp.maximum(conv(y, p["w3"], p["b3"]), 0.0),
           p["bn3_g"], p["bn3_b"], p["bn3_m"], p["bn3_v"])
    y = pool(y)
    y = y.reshape(y.shape[0], -1)
    logits = y @ p["wf"].T + p["bf"]
    return jax.nn.log_softmax(logits, axis=-1)


if __name__ == "__main__":
    key = jax.random.PRNGKey(0)
    k_in, k_par = jax.random.split(key)
    # Input shape fixed by the architecture (fc expects 800 = 32*5*5): 1x28x28.
    x = jax.random.normal(k_in, (2, 1, 28, 28), jnp.float32)
    params = init_params(k_par)
    kparams = prepare_params(params)

    out = jax.block_until_ready(net_forward(x, kparams))
    assert out.shape == (2, 10), out.shape
    # rows of log_softmax should sum (in prob space) to ~1
    assert bool(jnp.all(jnp.abs(jnp.sum(jnp.exp(out), axis=1) - 1.0) < 1e-3))
    # compare against a plain-XLA f32 reference (kernel uses bf16 matmuls)
    ref = jax.block_until_ready(reference_forward(x, params))
    err = float(jnp.max(jnp.abs(out - ref)))
    assert err < 1e-1, f"max |kernel - reference| = {err}"
    print("KERNEL_OK")
</pallas_src>

<mosaic_0001>
module attributes {stable_mosaic.version = 11 : i64} {
  func.func @kernel(%arg0: memref<1376x9xbf16, #tpu.memory_space<vmem>>, %arg1: memref<9x32xbf16, #tpu.memory_space<vmem>>, %arg2: memref<32x32xbf16, #tpu.memory_space<vmem>>, %arg3: memref<288x32xbf16, #tpu.memory_space<vmem>>, %arg4: memref<800x10xbf16, #tpu.memory_space<vmem>>, %arg5: memref<8x32xf32, #tpu.memory_space<vmem>>, %arg6: memref<2x10xf32, #tpu.memory_space<vmem>>, %arg7: memref<344x32xf32, #tpu.memory_space<vmem>>, %arg8: memref<310x32xf32, #tpu.memory_space<vmem>>, %arg9: memref<296x32xf32, #tpu.memory_space<vmem>>) attributes {dimension_semantics = [], scalar_prefetch = 0 : i64, scratch_operands = 3 : i64, tpu.core_type = #tpu.core_type<tc>} {
    %c0 = arith.constant 0 : index
    %c0_0 = arith.constant 0 : index
    %0 = vector.load %arg5[%c0, %c0_0] : memref<8x32xf32, #tpu.memory_space<vmem>>, vector<1x32xf32>
    %c1 = arith.constant 1 : index
    %c0_1 = arith.constant 0 : index
    %1 = vector.load %arg5[%c1, %c0_1] : memref<8x32xf32, #tpu.memory_space<vmem>>, vector<1x32xf32>
    %c2 = arith.constant 2 : index
    %c0_2 = arith.constant 0 : index
    %2 = vector.load %arg5[%c2, %c0_2] : memref<8x32xf32, #tpu.memory_space<vmem>>, vector<1x32xf32>
    %c3 = arith.constant 3 : index
    %c0_3 = arith.constant 0 : index
    %3 = vector.load %arg5[%c3, %c0_3] : memref<8x32xf32, #tpu.memory_space<vmem>>, vector<1x32xf32>
    %c4 = arith.constant 4 : index
    %c0_4 = arith.constant 0 : index
    %4 = vector.load %arg5[%c4, %c0_4] : memref<8x32xf32, #tpu.memory_space<vmem>>, vector<1x32xf32>
    %c5 = arith.constant 5 : index
    %c0_5 = arith.constant 0 : index
    %5 = vector.load %arg5[%c5, %c0_5] : memref<8x32xf32, #tpu.memory_space<vmem>>, vector<1x32xf32>
    %c6 = arith.constant 6 : index
    %c0_6 = arith.constant 0 : index
    %6 = vector.load %arg5[%c6, %c0_6] : memref<8x32xf32, #tpu.memory_space<vmem>>, vector<1x32xf32>
    %c7 = arith.constant 7 : index
    %c0_7 = arith.constant 0 : index
    %7 = vector.load %arg5[%c7, %c0_7] : memref<8x32xf32, #tpu.memory_space<vmem>>, vector<1x32xf32>
    %c0_8 = arith.constant 0 : index
    %c0_9 = arith.constant 0 : index
    %8 = vector.load %arg0[%c0_8, %c0_9] : memref<1376x9xbf16, #tpu.memory_space<vmem>>, vector<1376x9xbf16>
    %c0_10 = arith.constant 0 : index
    %c0_11 = arith.constant 0 : index
    %9 = vector.load %arg1[%c0_10, %c0_11] : memref<9x32xbf16, #tpu.memory_space<vmem>>, vector<9x32xbf16>
    %cst = arith.constant dense<0.000000e+00> : vector<1376x32xf32>
    %10 = tpu.matmul %8, %9, %cst {dimension_numbers = #tpu.dot_dimension_numbers<[1], [0], [0], [1], [0, 0, 1, 1], [], []>} : vector<1376x9xbf16>, vector<9x32xbf16>, vector<1376x32xf32> -> vector<1376x32xf32>
    %11 = vector.broadcast %0 : vector<1x32xf32> to vector<1376x32xf32>
    %12 = arith.addf %10, %11 : vector<1376x32xf32>
    %cst_12 = arith.constant 0.000000e+00 : f32
    %13 = vector.broadcast %cst_12 : f32 to vector<1376x32xf32>
    %14 = arith.maximumf %12, %13 : vector<1376x32xf32>
    %15 = vector.broadcast %1 : vector<1x32xf32> to vector<1376x32xf32>
    %16 = arith.mulf %14, %15 : vector<1376x32xf32>
    %17 = vector.broadcast %2 : vector<1x32xf32> to vector<1376x32xf32>
    %18 = arith.addf %16, %17 : vector<1376x32xf32>
    %19 = vector.extract_strided_slice %18 {offsets = [0, 0], sizes = [344, 32], strides = [1, 1]} : vector<1376x32xf32> to vector<344x32xf32>
    %20 = vector.extract_strided_slice %18 {offsets = [344, 0], sizes = [344, 32], strides = [1, 1]} : vector<1376x32xf32> to vector<344x32xf32>
    %21 = arith.maximumf %19, %20 : vector<344x32xf32>
    %22 = vector.extract_strided_slice %18 {offsets = [688, 0], sizes = [344, 32], strides = [1, 1]} : vector<1376x32xf32> to vector<344x32xf32>
    %23 = vector.extract_strided_slice %18 {offsets = [1032, 0], sizes = [344, 32], strides = [1, 1]} : vector<1376x32xf32> to vector<344x32xf32>
    %24 = arith.maximumf %22, %23 : vector<344x32xf32>
    %25 = arith.maximumf %21, %24 : vector<344x32xf32>
    %26 = arith.truncf %25 : vector<344x32xf32> to vector<344x32xbf16>
    %c0_13 = arith.constant 0 : index
    %c0_14 = arith.constant 0 : index
    %27 = vector.load %arg2[%c0_13, %c0_14] : memref<32x32xbf16, #tpu.memory_space<vmem>>, vector<32x32xbf16>
    %cst_15 = arith.constant dense<0.000000e+00> : vector<344x32xf32>
    %28 = tpu.matmul %26, %27, %cst_15 {dimension_numbers = #tpu.dot_dimension_numbers<[1], [0], [0], [1], [0, 0, 1, 1], [], []>} : vector<344x32xbf16>, vector<32x32xbf16>, vector<344x32xf32> -> vector<344x32xf32>
    %29 = vector.broadcast %3 : vector<1x32xf32> to vector<344x32xf32>
    %30 = arith.addf %28, %29 : vector<344x32xf32>
    %cst_16 = arith.constant 0.000000e+00 : f32
    %31 = vector.broadcast %cst_16 : f32 to vector<344x32xf32>
    %32 = arith.maximumf %30, %31 : vector<344x32xf32>
    %c0_17 = arith.constant 0 : index
    %c0_18 = arith.constant 0 : index
    %33 = vector.load %arg7[%c0_17, %c0_18] : memref<344x32xf32, #tpu.memory_space<vmem>>, vector<344x32xf32>
    tpu.vector_store %arg7[%c0_17, %c0_18], %32 {strides = array<i32>} : memref<344x32xf32, #tpu.memory_space<vmem>>, vector<344x32xf32>,
    %c0_19 = arith.constant 0 : index
    %c0_20 = arith.constant 0 : index
    %34 = vector.load %arg7[%c0_19, %c0_20] : memref<344x32xf32, #tpu.memory_space<vmem>>, vector<310x32xf32>
    %c1_21 = arith.constant 1 : index
    %c0_22 = arith.constant 0 : index
    %35 = vector.load %arg7[%c1_21, %c0_22] : memref<344x32xf32, #tpu.memory_space<vmem>>, vector<310x32xf32>
    %c2_23 = arith.constant 2 : index
    %c0_24 = arith.constant 0 : index
    %36 = vector.load %arg7[%c2_23, %c0_24] : memref<344x32xf32, #tpu.memory_space<vmem>>, vector<310x32xf32>
    %c13 = arith.constant 13 : index
    %c0_25 = arith.constant 0 : index
    %37 = vector.load %arg7[%c13, %c0_25] : memref<344x32xf32, #tpu.memory_space<vmem>>, vector<310x32xf32>
    %c14 = arith.constant 14 : index
    %c0_26 = arith.constant 0 : index
    %38 = vector.load %arg7[%c14, %c0_26] : memref<344x32xf32, #tpu.memory_space<vmem>>, vector<310x32xf32>
    %c15 = arith.constant 15 : index
    %c0_27 = arith.constant 0 : index
    %39 = vector.load %arg7[%c15, %c0_27] : memref<344x32xf32, #tpu.memory_space<vmem>>, vector<310x32xf32>
    %c26 = arith.constant 26 : index
    %c0_28 = arith.constant 0 : index
    %40 = vector.load %arg7[%c26, %c0_28] : memref<344x32xf32, #tpu.memory_space<vmem>>, vector<310x32xf32>
    %c27 = arith.constant 27 : index
    %c0_29 = arith.constant 0 : index
    %41 = vector.load %arg7[%c27, %c0_29] : memref<344x32xf32, #tpu.memory_space<vmem>>, vector<310x32xf32>
    %c28 = arith.constant 28 : index
    %c0_30 = arith.constant 0 : index
    %42 = vector.load %arg7[%c28, %c0_30] : memref<344x32xf32, #tpu.memory_space<vmem>>, vector<310x32xf32>
    %43 = tpu.concatenate %34, %35, %36, %37, %38, %39, %40, %41, %42 in 1 : vector<310x32xf32>, vector<310x32xf32>, vector<310x32xf32>, vector<310x32xf32>, vector<310x32xf32>, vector<310x32xf32>, vector<310x32xf32>, vector<310x32xf32>, vector<310x32xf32> -> vector<310x288xf32>
    %44 = arith.truncf %43 : vector<310x288xf32> to vector<310x288xbf16>
    %c0_31 = arith.constant 0 : index
    %c0_32 = arith.constant 0 : index
    %45 = vector.load %arg3[%c0_31, %c0_32] : memref<288x32xbf16, #tpu.memory_space<vmem>>, vector<288x32xbf16>
    %cst_33 = arith.constant dense<0.000000e+00> : vector<310x32xf32>
    %46 = tpu.matmul %44, %45, %cst_33 {dimension_numbers = #tpu.dot_dimension_numbers<[1], [0], [0], [1], [0, 0, 1, 1], [], []>} : vector<310x288xbf16>, vector<288x32xbf16>, vector<310x32xf32> -> vector<310x32xf32>
    %47 = vector.broadcast %4 : vector<1x32xf32> to vector<310x32xf32>
    %48 = arith.addf %46, %47 : vector<310x32xf32>
    %cst_34 = arith.constant 0.000000e+00 : f32
    %49 = vector.broadcast %cst_34 : f32 to vector<310x32xf32>
    %50 = arith.maximumf %48, %49 : vector<310x32xf32>
    %51 = vector.broadcast %5 : vector<1x32xf32> to vector<310x32xf32>
    %52 = arith.mulf %50, %51 : vector<310x32xf32>
    %53 = vector.broadcast %6 : vector<1x32xf32> to vector<310x32xf32>
    %54 = arith.addf %52, %53 : vector<310x32xf32>
    %c0_35 = arith.constant 0 : index
    %c0_36 = arith.constant 0 : index
    %55 = vector.load %arg8[%c0_35, %c0_36] : memref<310x32xf32, #tpu.memory_space<vmem>>, vector<310x32xf32>
    tpu.vector_store %arg8[%c0_35, %c0_36], %54 {strides = array<i32>} : memref<310x32xf32, #tpu.memory_space<vmem>>, vector<310x32xf32>,
    %c0_37 = arith.constant 0 : index
    %c0_38 = arith.constant 0 : index
    %56 = vector.load %arg8[%c0_37, %c0_38] : memref<310x32xf32, #tpu.memory_space<vmem>>, vector<296x32xf32>
    %c1_39 = arith.constant 1 : index
    %c0_40 = arith.constant 0 : index
    %57 = vector.load %arg8[%c1_39, %c0_40] : memref<310x32xf32, #tpu.memory_space<vmem>>, vector<296x32xf32>
    %58 = arith.maximumf %56, %57 : vector<296x32xf32>
    %c13_41 = arith.constant 13 : index
    %c0_42 = arith.constant 0 : index
    %59 = vector.load %arg8[%c13_41, %c0_42] : memref<310x32xf32, #tpu.memory_space<vmem>>, vector<296x32xf32>
    %c14_43 = arith.constant 14 : index
    %c0_44 = arith.constant 0 : index
    %60 = vector.load %arg8[%c14_43, %c0_44] : memref<310x32xf32, #tpu.memory_space<vmem>>, vector<296x32xf32>
    %61 = arith.maximumf %59, %60 : vector<296x32xf32>
    %62 = arith.maximumf %58, %61 : vector<296x32xf32>
    %c0_45 = arith.constant 0 : index
    %c0_46 = arith.constant 0 : index
    %63 = vector.load %arg9[%c0_45, %c0_46] : memref<296x32xf32, #tpu.memory_space<vmem>>, vector<296x32xf32>
    tpu.vector_store %arg9[%c0_45, %c0_46], %62 {strides = array<i32>} : memref<296x32xf32, #tpu.memory_space<vmem>>, vector<296x32xf32>,
    %c0_47 = arith.constant 0 : index
    %c0_48 = arith.constant 0 : index
    %64 = vector.load %arg9[%c0_47, %c0_48] : memref<296x32xf32, #tpu.memory_space<vmem>>, vector<1x32xf32>
    %c2_49 = arith.constant 2 : index
    %c0_50 = arith.constant 0 : index
    %65 = vector.load %arg9[%c2_49, %c0_50] : memref<296x32xf32, #tpu.memory_space<vmem>>, vector<1x32xf32>
    %c4_51 = arith.constant 4 : index
    %c0_52 = arith.constant 0 : index
    %66 = vector.load %arg9[%c4_51, %c0_52] : memref<296x32xf32, #tpu.memory_space<vmem>>, vector<1x32xf32>
    %c6_53 = arith.constant 6 : index
    %c0_54 = arith.constant 0 : index
    %67 = vector.load %arg9[%c6_53, %c0_54] : memref<296x32xf32, #tpu.memory_space<vmem>>, vector<1x32xf32>
    %c8 = arith.constant 8 : index
    %c0_55 = arith.constant 0 : index
    %68 = vector.load %arg9[%c8, %c0_55] : memref<296x32xf32, #tpu.memory_space<vmem>>, vector<1x32xf32>
    %c26_56 = arith.constant 26 : index
    %c0_57 = arith.constant 0 : index
    %69 = vector.load %arg9[%c26_56, %c0_57] : memref<296x32xf32, #tpu.memory_space<vmem>>, vector<1x32xf32>
    %c28_58 = arith.constant 28 : index
    %c0_59 = arith.constant 0 : index
    %70 = vector.load %arg9[%c28_58, %c0_59] : memref<296x32xf32, #tpu.memory_space<vmem>>, vector<1x32xf32>
    %c30 = arith.constant 30 : index
    %c0_60 = arith.constant 0 : index
    %71 = vector.load %arg9[%c30, %c0_60] : memref<296x32xf32, #tpu.memory_space<vmem>>, vector<1x32xf32>
    %c32 = arith.constant 32 : index
    %c0_61 = arith.constant 0 : index
    %72 = vector.load %arg9[%c32, %c0_61] : memref<296x32xf32, #tpu.memory_space<vmem>>, vector<1x32xf32>
    %c34 = arith.constant 34 : index
    %c0_62 = arith.constant 0 : index
    %73 = vector.load %arg9[%c34, %c0_62] : memref<296x32xf32, #tpu.memory_space<vmem>>, vector<1x32xf32>
    %c52 = arith.constant 52 : index
    %c0_63 = arith.constant 0 : index
    %74 = vector.load %arg9[%c52, %c0_63] : memref<296x32xf32, #tpu.memory_space<vmem>>, vector<1x32xf32>
    %c54 = arith.constant 54 : index
    %c0_64 = arith.constant 0 : index
    %75 = vector.load %arg9[%c54, %c0_64] : memref<296x32xf32, #tpu.memory_space<vmem>>, vector<1x32xf32>
    %c56 = arith.constant 56 : index
    %c0_65 = arith.constant 0 : index
    %76 = vector.load %arg9[%c56, %c0_65] : memref<296x32xf32, #tpu.memory_space<vmem>>, vector<1x32xf32>
    %c58 = arith.constant 58 : index
    %c0_66 = arith.constant 0 : index
    %77 = vector.load %arg9[%c58, %c0_66] : memref<296x32xf32, #tpu.memory_space<vmem>>, vector<1x32xf32>
    %c60 = arith.constant 60 : index
    %c0_67 = arith.constant 0 : index
    %78 = vector.load %arg9[%c60, %c0_67] : memref<296x32xf32, #tpu.memory_space<vmem>>, vector<1x32xf32>
    %c78 = arith.constant 78 : index
    %c0_68 = arith.constant 0 : index
    %79 = vector.load %arg9[%c78, %c0_68] : memref<296x32xf32, #tpu.memory_space<vmem>>, vector<1x32xf32>
    %c80 = arith.constant 80 : index
    %c0_69 = arith.constant 0 : index
    %80 = vector.load %arg9[%c80, %c0_69] : memref<296x32xf32, #tpu.memory_space<vmem>>, vector<1x32xf32>
    %c82 = arith.constant 82 : index
    %c0_70 = arith.constant 0 : index
    %81 = vector.load %arg9[%c82, %c0_70] : memref<296x32xf32, #tpu.memory_space<vmem>>, vector<1x32xf32>
    %c84 = arith.constant 84 : index
    %c0_71 = arith.constant 0 : index
    %82 = vector.load %arg9[%c84, %c0_71] : memref<296x32xf32, #tpu.memory_space<vmem>>, vector<1x32xf32>
    %c86 = arith.constant 86 : index
    %c0_72 = arith.constant 0 : index
    %83 = vector.load %arg9[%c86, %c0_72] : memref<296x32xf32, #tpu.memory_space<vmem>>, vector<1x32xf32>
    %c104 = arith.constant 104 : index
    %c0_73 = arith.constant 0 : index
    %84 = vector.load %arg9[%c104, %c0_73] : memref<296x32xf32, #tpu.memory_space<vmem>>, vector<1x32xf32>
    %c106 = arith.constant 106 : index
    %c0_74 = arith.constant 0 : index
    %85 = vector.load %arg9[%c106, %c0_74] : memref<296x32xf32, #tpu.memory_space<vmem>>, vector<1x32xf32>
    %c108 = arith.constant 108 : index
    %c0_75 = arith.constant 0 : index
    %86 = vector.load %arg9[%c108, %c0_75] : memref<296x32xf32, #tpu.memory_space<vmem>>, vector<1x32xf32>
    %c110 = arith.constant 110 : index
    %c0_76 = arith.constant 0 : index
    %87 = vector.load %arg9[%c110, %c0_76] : memref<296x32xf32, #tpu.memory_space<vmem>>, vector<1x32xf32>
    %c112 = arith.constant 112 : index
    %c0_77 = arith.constant 0 : index
    %88 = vector.load %arg9[%c112, %c0_77] : memref<296x32xf32, #tpu.memory_space<vmem>>, vector<1x32xf32>
    %89 = tpu.concatenate %64, %65, %66, %67, %68, %69, %70, %71, %72, %73, %74, %75, %76, %77, %78, %79 in 1 : vector<1x32xf32>, vector<1x32xf32>, vector<1x32xf32>, vector<1x32xf32>, vector<1x32xf32>, vector<1x32xf32>, vector<1x32xf32>, vector<1x32xf32>, vector<1x32xf32>, vector<1x32xf32>, vector<1x32xf32>, vector<1x32xf32>, vector<1x32xf32>, vector<1x32xf32>, vector<1x32xf32>, vector<1x32xf32> -> vector<1x512xf32>
    %90 = tpu.concatenate %80, %81, %82, %83, %84, %85, %86, %87, %88 in 1 : vector<1x32xf32>, vector<1x32xf32>, vector<1x32xf32>, vector<1x32xf32>, vector<1x32xf32>, vector<1x32xf32>, vector<1x32xf32>, vector<1x32xf32>, vector<1x32xf32> -> vector<1x288xf32>
    %91 = tpu.concatenate %89, %90 in 1 : vector<1x512xf32>, vector<1x288xf32> -> vector<1x800xf32>
    %c169 = arith.constant 169 : index
    %c0_78 = arith.constant 0 : index
    %92 = vector.load %arg9[%c169, %c0_78] : memref<296x32xf32, #tpu.memory_space<vmem>>, vector<1x32xf32>
    %c171 = arith.constant 171 : index
    %c0_79 = arith.constant 0 : index
    %93 = vector.load %arg9[%c171, %c0_79] : memref<296x32xf32, #tpu.memory_space<vmem>>, vector<1x32xf32>
    %c173 = arith.constant 173 : index
    %c0_80 = arith.constant 0 : index
    %94 = vector.load %arg9[%c173, %c0_80] : memref<296x32xf32, #tpu.memory_space<vmem>>, vector<1x32xf32>
    %c175 = arith.constant 175 : index
    %c0_81 = arith.constant 0 : index
    %95 = vector.load %arg9[%c175, %c0_81] : memref<296x32xf32, #tpu.memory_space<vmem>>, vector<1x32xf32>
    %c177 = arith.constant 177 : index
    %c0_82 = arith.constant 0 : index
    %96 = vector.load %arg9[%c177, %c0_82] : memref<296x32xf32, #tpu.memory_space<vmem>>, vector<1x32xf32>
    %c195 = arith.constant 195 : index
    %c0_83 = arith.constant 0 : index
    %97 = vector.load %arg9[%c195, %c0_83] : memref<296x32xf32, #tpu.memory_space<vmem>>, vector<1x32xf32>
    %c197 = arith.constant 197 : index
    %c0_84 = arith.constant 0 : index
    %98 = vector.load %arg9[%c197, %c0_84] : memref<296x32xf32, #tpu.memory_space<vmem>>, vector<1x32xf32>
    %c199 = arith.constant 199 : index
    %c0_85 = arith.constant 0 : index
    %99 = vector.load %arg9[%c199, %c0_85] : memref<296x32xf32, #tpu.memory_space<vmem>>, vector<1x32xf32>
    %c201 = arith.constant 201 : index
    %c0_86 = arith.constant 0 : index
    %100 = vector.load %arg9[%c201, %c0_86] : memref<296x32xf32, #tpu.memory_space<vmem>>, vector<1x32xf32>
    %c203 = arith.constant 203 : index
    %c0_87 = arith.constant 0 : index
    %101 = vector.load %arg9[%c203, %c0_87] : memref<296x32xf32, #tpu.memory_space<vmem>>, vector<1x32xf32>
    %c221 = arith.constant 221 : index
    %c0_88 = arith.constant 0 : index
    %102 = vector.load %arg9[%c221, %c0_88] : memref<296x32xf32, #tpu.memory_space<vmem>>, vector<1x32xf32>
    %c223 = arith.constant 223 : index
    %c0_89 = arith.constant 0 : index
    %103 = vector.load %arg9[%c223, %c0_89] : memref<296x32xf32, #tpu.memory_space<vmem>>, vector<1x32xf32>
    %c225 = arith.constant 225 : index
    %c0_90 = arith.constant 0 : index
    %104 = vector.load %arg9[%c225, %c0_90] : memref<296x32xf32, #tpu.memory_space<vmem>>, vector<1x32xf32>
    %c227 = arith.constant 227 : index
    %c0_91 = arith.constant 0 : index
    %105 = vector.load %arg9[%c227, %c0_91] : memref<296x32xf32, #tpu.memory_space<vmem>>, vector<1x32xf32>
    %c229 = arith.constant 229 : index
    %c0_92 = arith.constant 0 : index
    %106 = vector.load %arg9[%c229, %c0_92] : memref<296x32xf32, #tpu.memory_space<vmem>>, vector<1x32xf32>
    %c247 = arith.constant 247 : index
    %c0_93 = arith.constant 0 : index
    %107 = vector.load %arg9[%c247, %c0_93] : memref<296x32xf32, #tpu.memory_space<vmem>>, vector<1x32xf32>
    %c249 = arith.constant 249 : index
    %c0_94 = arith.constant 0 : index
    %108 = vector.load %arg9[%c249, %c0_94] : memref<296x32xf32, #tpu.memory_space<vmem>>, vector<1x32xf32>
    %c251 = arith.constant 251 : index
    %c0_95 = arith.constant 0 : index
    %109 = vector.load %arg9[%c251, %c0_95] : memref<296x32xf32, #tpu.memory_space<vmem>>, vector<1x32xf32>
    %c253 = arith.constant 253 : index
    %c0_96 = arith.constant 0 : index
    %110 = vector.load %arg9[%c253, %c0_96] : memref<296x32xf32, #tpu.memory_space<vmem>>, vector<1x32xf32>
    %c255 = arith.constant 255 : index
    %c0_97 = arith.constant 0 : index
    %111 = vector.load %arg9[%c255, %c0_97] : memref<296x32xf32, #tpu.memory_space<vmem>>, vector<1x32xf32>
    %c273 = arith.constant 273 : index
    %c0_98 = arith.constant 0 : index
    %112 = vector.load %arg9[%c273, %c0_98] : memref<296x32xf32, #tpu.memory_space<vmem>>, vector<1x32xf32>
    %c275 = arith.constant 275 : index
    %c0_99 = arith.constant 0 : index
    %113 = vector.load %arg9[%c275, %c0_99] : memref<296x32xf32, #tpu.memory_space<vmem>>, vector<1x32xf32>
    %c277 = arith.constant 277 : index
    %c0_100 = arith.constant 0 : index
    %114 = vector.load %arg9[%c277, %c0_100] : memref<296x32xf32, #tpu.memory_space<vmem>>, vector<1x32xf32>
    %c279 = arith.constant 279 : index
    %c0_101 = arith.constant 0 : index
    %115 = vector.load %arg9[%c279, %c0_101] : memref<296x32xf32, #tpu.memory_space<vmem>>, vector<1x32xf32>
    %c281 = arith.constant 281 : index
    %c0_102 = arith.constant 0 : index
    %116 = vector.load %arg9[%c281, %c0_102] : memref<296x32xf32, #tpu.memory_space<vmem>>, vector<1x32xf32>
    %117 = tpu.concatenate %92, %93, %94, %95, %96, %97, %98, %99, %100, %101, %102, %103, %104, %105, %106, %107 in 1 : vector<1x32xf32>, vector<1x32xf32>, vector<1x32xf32>, vector<1x32xf32>, vector<1x32xf32>, vector<1x32xf32>, vector<1x32xf32>, vector<1x32xf32>, vector<1x32xf32>, vector<1x32xf32>, vector<1x32xf32>, vector<1x32xf32>, vector<1x32xf32>, vector<1x32xf32>, vector<1x32xf32>, vector<1x32xf32> -> vector<1x512xf32>
    %118 = tpu.concatenate %108, %109, %110, %111, %112, %113, %114, %115, %116 in 1 : vector<1x32xf32>, vector<1x32xf32>, vector<1x32xf32>, vector<1x32xf32>, vector<1x32xf32>, vector<1x32xf32>, vector<1x32xf32>, vector<1x32xf32>, vector<1x32xf32> -> vector<1x288xf32>
    %119 = tpu.concatenate %117, %118 in 1 : vector<1x512xf32>, vector<1x288xf32> -> vector<1x800xf32>
    %120 = tpu.concatenate %91, %119 in 0 : vector<1x800xf32>, vector<1x800xf32> -> vector<2x800xf32>
    %121 = arith.truncf %120 : vector<2x800xf32> to vector<2x800xbf16>
    %c0_103 = arith.constant 0 : index
    %c0_104 = arith.constant 0 : index
    %122 = vector.load %arg4[%c0_103, %c0_104] : memref<800x10xbf16, #tpu.memory_space<vmem>>, vector<800x10xbf16>
    %cst_105 = arith.constant dense<0.000000e+00> : vector<2x10xf32>
    %123 = tpu.matmul %121, %122, %cst_105 {dimension_numbers = #tpu.dot_dimension_numbers<[1], [0], [0], [1], [0, 0, 1, 1], [], []>} : vector<2x800xbf16>, vector<800x10xbf16>, vector<2x10xf32> -> vector<2x10xf32>
    %124 = vector.extract_strided_slice %7 {offsets = [0, 0], sizes = [1, 10], strides = [1, 1]} : vector<1x32xf32> to vector<1x10xf32>
    %125 = vector.broadcast %124 : vector<1x10xf32> to vector<2x10xf32>
    %126 = arith.addf %123, %125 : vector<2x10xf32>
    %cst_106 = arith.constant dense<0xFF800000> : vector<2xf32>
    %127 = vector.multi_reduction <maximumf>, %126, %cst_106 [1] : vector<2x10xf32> to vector<2xf32>
    %128 = vector.shape_cast %127 : vector<2xf32> to vector<2x1xf32>
    %129 = vector.broadcast %128 : vector<2x1xf32> to vector<2x10xf32>
    %130 = arith.subf %126, %129 : vector<2x10xf32>
    %131 = math.exp %130 : vector<2x10xf32>
    %cst_107 = arith.constant dense<0.000000e+00> : vector<2xf32>
    %132 = vector.multi_reduction <add>, %131, %cst_107 [1] : vector<2x10xf32> to vector<2xf32>
    %133 = vector.shape_cast %132 : vector<2xf32> to vector<2x1xf32>
    %134 = math.log %133 : vector<2x1xf32>
    %135 = vector.broadcast %134 : vector<2x1xf32> to vector<2x10xf32>
    %136 = arith.subf %130, %135 : vector<2x10xf32>
    %c0_108 = arith.constant 0 : index
    %c0_109 = arith.constant 0 : index
    %137 = vector.load %arg6[%c0_108, %c0_109] : memref<2x10xf32, #tpu.memory_space<vmem>>, vector<2x10xf32>
    tpu.vector_store %arg6[%c0_108, %c0_109], %136 {strides = array<i32>} : memref<2x10xf32, #tpu.memory_space<vmem>>, vector<2x10xf32>,
    return
  }
}

</mosaic_0001>

<llo_original>
// kernel: net_forward.1
$region0: #{net_forward.1}
  #allocation0 [shape = 'u32[]', space=smem, size = 0x4, offset = 0x4, fixed_abs, tag = 'smem constant byte address 0x4 - core index']
  #allocation1 [shape = 'u32[72,128]{1,0:T(1,128)}', space=vmem, size = 0x9000, scoped, tag = 'internal scratch']
  #allocation2 [shape = 'f32[344,32]{1,0:T(8,128)}', space=vmem, size = 0x2b000, scoped, tag = 'scratch operand']
  #allocation3 [shape = 'f32[310,32]{1,0:T(8,128)}', space=vmem, size = 0x27000, scoped, tag = 'scratch operand']
  #allocation4 [shape = 'f32[296,32]{1,0:T(8,128)}', space=vmem, size = 0x25000, scoped, tag = 'scratch operand']
  %s0 = inlined_call_operand.vmem [shape: bf16[1376,9], index: 0, kind: input, shape index: {}]
  %s1 = inlined_call_operand.vmem [shape: bf16[9,32], index: 1, kind: input, shape index: {}]
  %s2 = inlined_call_operand.vmem [shape: bf16[32,32], index: 2, kind: input, shape index: {}]
  %s3 = inlined_call_operand.vmem [shape: bf16[288,32], index: 3, kind: input, shape index: {}]
  %s4 = inlined_call_operand.vmem [shape: bf16[800,10], index: 4, kind: input, shape index: {}]
  %s5 = inlined_call_operand.vmem [shape: f32[8,32], index: 5, kind: input, shape index: {}]
  %s6 = inlined_call_operand.hbm [shape: f32[2,10], index: 6, kind: output, shape index: {}]
  %s7 = sld [smem:[#allocation0]]
  $region34: #{net_forward.1} parent=0
    _
  %s9 = ssub.s32 1, %s7
  %s10 = scalar_select 0, %s9, %s7
  $region1: #{net_forward.1} parent=0
    #allocation5 [shape = 'u8[1024]{0}', space=vmem, size = 0x400, scoped, tag = 'output window, operand 0, single buffered']
    #allocation6 [shape = 's32[1]{0}', space=sflag, size = 0x4, scoped, tag = 'scoped memory for net_forward.1']
    %11 = vsyncpa [#allocation6], 0
    // Predicated region
    $region2: #{net_forward.1} parent=1 // pred_check
      _
    $region3: #{net_forward.1} parent=1 // pred_check_branch
      %13 = sbr.rel (0) target = $region5
    $region4: #{net_forward.1} parent=1 // pred_region
      _
    $region5: #{net_forward.1} parent=1 // pred_fallthru
      _
    // Predicated region
    $region6: #{net_forward.1} parent=1 // pred_check
      _
    $region7: #{net_forward.1} parent=1 // pred_check_branch
      %15 = sbr.rel (0) target = $region9
    $region8: #{net_forward.1} parent=1 // pred_region
      _
    $region9: #{net_forward.1} parent=1 // pred_fallthru
      _
    // Predicated region
    $region10: #{net_forward.1} parent=1 // pred_check
      _
    $region11: #{net_forward.1} parent=1 // pred_check_branch
      %17 = sbr.rel (0) target = $region13
    $region12: #{net_forward.1} parent=1 // pred_region
      _
    $region13: #{net_forward.1} parent=1 // pred_fallthru
      _
    // Predicated region
    $region14: #{net_forward.1} parent=1 // pred_check
      _
    $region15: #{net_forward.1} parent=1 // pred_check_branch
      %19 = sbr.rel (0) target = $region17
    $region16: #{net_forward.1} parent=1 // pred_region
      _
    $region17: #{net_forward.1} parent=1 // pred_fallthru
      _
    // Predicated region
    $region18: #{net_forward.1} parent=1 // pred_check
      _
    $region19: #{net_forward.1} parent=1 // pred_check_branch
      %21 = sbr.rel (0) target = $region21
    $region20: #{net_forward.1} parent=1 // pred_region
      _
    $region21: #{net_forward.1} parent=1 // pred_fallthru
      _
    // Predicated region
    $region22: #{net_forward.1} parent=1 // pred_check
      _
    $region23: #{net_forward.1} parent=1 // pred_check_branch
      %23 = sbr.rel (0) target = $region25
    $region24: #{net_forward.1} parent=1 // pred_region
      _
    $region25: #{net_forward.1} parent=1 // pred_fallthru
      _
    %v25 = vld [vmem:[%s5] sm:$0x1]
    %v26 = vld [vmem:[%s5 + $0x1] sm:$0x1]
    %v27 = vld [vmem:[%s5 + $0x2] sm:$0x1]
    %v28 = vld [vmem:[%s5 + $0x3] sm:$0x1]
    %v29 = vld [vmem:[%s5 + $0x4] sm:$0x1]
    %v30 = vld [vmem:[%s5 + $0x5] sm:$0x1]
    %v31 = vld [vmem:[%s5 + $0x6] sm:$0x1]
    %v32 = vld [vmem:[%s5 + $0x7] sm:$0x1]
    %v33 = vld [vmem:[%s0] sm:$0xf]
    %v34 = vld [vmem:[%s0 + $0x4] sm:$0xf]
    %v35 = vld [vmem:[%s0 + $0x8] sm:$0xf]
    %v36 = vld [vmem:[%s0 + $0xc] sm:$0xf]
    %v37 = vld [vmem:[%s0 + $0x10] sm:$0xf]
    %v38 = vld [vmem:[%s0 + $0x14] sm:$0xf]
    %v39 = vld [vmem:[%s0 + $0x18] sm:$0xf]
    %v40 = vld [vmem:[%s0 + $0x1c] sm:$0xf]
    %v41 = vld [vmem:[%s0 + $0x20] sm:$0xf]
    %v42 = vld [vmem:[%s0 + $0x24] sm:$0xf]
    %v43 = vld [vmem:[%s0 + $0x28] sm:$0xf]
    %v44 = vld [vmem:[%s0 + $0x2c] sm:$0xf]
    %v45 = vld [vmem:[%s0 + $0x30] sm:$0xf]
    %v46 = vld [vmem:[%s0 + $0x34] sm:$0xf]
    %v47 = vld [vmem:[%s0 + $0x38] sm:$0xf]
    %v48 = vld [vmem:[%s0 + $0x3c] sm:$0xf]
    %v49 = vld [vmem:[%s0 + $0x40] sm:$0xf]
    %v50 = vld [vmem:[%s0 + $0x44] sm:$0xf]
    %v51 = vld [vmem:[%s0 + $0x48] sm:$0xf]
    %v52 = vld [vmem:[%s0 + $0x4c] sm:$0xf]
    %v53 = vld [vmem:[%s0 + $0x50] sm:$0xf]
    %v54 = vld [vmem:[%s0 + $0x54] sm:$0xf]
    %v55 = vld [vmem:[%s0 + $0x58] sm:$0xf]
    %v56 = vld [vmem:[%s0 + $0x5c] sm:$0xf]
    %v57 = vld [vmem:[%s0 + $0x60] sm:$0xf]
    %v58 = vld [vmem:[%s0 + $0x64] sm:$0xf]
    %v59 = vld [vmem:[%s0 + $0x68] sm:$0xf]
    %v60 = vld [vmem:[%s0 + $0x6c] sm:$0xf]
    %v61 = vld [vmem:[%s0 + $0x70] sm:$0xf]
    %v62 = vld [vmem:[%s0 + $0x74] sm:$0xf]
    %v63 = vld [vmem:[%s0 + $0x78] sm:$0xf]
    %v64 = vld [vmem:[%s0 + $0x7c] sm:$0xf]
    %v65 = vld [vmem:[%s0 + $0x80] sm:$0xf]
    %v66 = vld [vmem:[%s0 + $0x84] sm:$0xf]
    %v67 = vld [vmem:[%s0 + $0x88] sm:$0xf]
    %v68 = vld [vmem:[%s0 + $0x8c] sm:$0xf]
    %v69 = vld [vmem:[%s0 + $0x90] sm:$0xf]
    %v70 = vld [vmem:[%s0 + $0x94] sm:$0xf]
    %v71 = vld [vmem:[%s0 + $0x98] sm:$0xf]
    %v72 = vld [vmem:[%s0 + $0x9c] sm:$0xf]
    %v73 = vld [vmem:[%s0 + $0xa0] sm:$0xf]
    %v74 = vld [vmem:[%s0 + $0xa4] sm:$0xf]
    %v75 = vld [vmem:[%s0 + $0xa8] sm:$0xf]
    %v76 = vld [vmem:[%s0 + $0xac] sm:$0xf]
    %v77 = vld [vmem:[%s0 + $0xb0] sm:$0xf]
    %v78 = vld [vmem:[%s0 + $0xb4] sm:$0xf]
    %v79 = vld [vmem:[%s0 + $0xb8] sm:$0xf]
    %v80 = vld [vmem:[%s0 + $0xbc] sm:$0xf]
    %v81 = vld [vmem:[%s0 + $0xc0] sm:$0xf]
    %v82 = vld [vmem:[%s0 + $0xc4] sm:$0xf]
    %v83 = vld [vmem:[%s0 + $0xc8] sm:$0xf]
    %v84 = vld [vmem:[%s0 + $0xcc] sm:$0xf]
    %v85 = vld [vmem:[%s0 + $0xd0] sm:$0xf]
    %v86 = vld [vmem:[%s0 + $0xd4] sm:$0xf]
    %v87 = vld [vmem:[%s0 + $0xd8] sm:$0xf]
    %v88 = vld [vmem:[%s0 + $0xdc] sm:$0xf]
    %v89 = vld [vmem:[%s0 + $0xe0] sm:$0xf]
    %v90 = vld [vmem:[%s0 + $0xe4] sm:$0xf]
    %v91 = vld [vmem:[%s0 + $0xe8] sm:$0xf]
    %v92 = vld [vmem:[%s0 + $0xec] sm:$0xf]
    %v93 = vld [vmem:[%s0 + $0xf0] sm:$0xf]
    %v94 = vld [vmem:[%s0 + $0xf4] sm:$0xf]
    %v95 = vld [vmem:[%s0 + $0xf8] sm:$0xf]
    %v96 = vld [vmem:[%s0 + $0xfc] sm:$0xf]
    %v97 = vld [vmem:[%s0 + $0x100] sm:$0xf]
    %v98 = vld [vmem:[%s0 + $0x104] sm:$0xf]
    %v99 = vld [vmem:[%s0 + $0x108] sm:$0xf]
    %v100 = vld [vmem:[%s0 + $0x10c] sm:$0xf]
    %v101 = vld [vmem:[%s0 + $0x110] sm:$0xf]
    %v102 = vld [vmem:[%s0 + $0x114] sm:$0xf]
    %v103 = vld [vmem:[%s0 + $0x118] sm:$0xf]
    %v104 = vld [vmem:[%s0 + $0x11c] sm:$0xf]
    %v105 = vld [vmem:[%s0 + $0x120] sm:$0xf]
    %v106 = vld [vmem:[%s0 + $0x124] sm:$0xf]
    %v107 = vld [vmem:[%s0 + $0x128] sm:$0xf]
    %v108 = vld [vmem:[%s0 + $0x12c] sm:$0xf]
    %v109 = vld [vmem:[%s0 + $0x130] sm:$0xf]
    %v110 = vld [vmem:[%s0 + $0x134] sm:$0xf]
    %v111 = vld [vmem:[%s0 + $0x138] sm:$0xf]
    %v112 = vld [vmem:[%s0 + $0x13c] sm:$0xf]
    %v113 = vld [vmem:[%s0 + $0x140] sm:$0xf]
    %v114 = vld [vmem:[%s0 + $0x144] sm:$0xf]
    %v115 = vld [vmem:[%s0 + $0x148] sm:$0xf]
    %v116 = vld [vmem:[%s0 + $0x14c] sm:$0xf]
    %v117 = vld [vmem:[%s0 + $0x150] sm:$0xf]
    %v118 = vld [vmem:[%s0 + $0x154] sm:$0xf]
    %v119 = vld [vmem:[%s0 + $0x158] sm:$0xf]
    %v120 = vld [vmem:[%s0 + $0x15c] sm:$0xf]
    %v121 = vld [vmem:[%s0 + $0x160] sm:$0xf]
    %v122 = vld [vmem:[%s0 + $0x164] sm:$0xf]
    %v123 = vld [vmem:[%s0 + $0x168] sm:$0xf]
    %v124 = vld [vmem:[%s0 + $0x16c] sm:$0xf]
    %v125 = vld [vmem:[%s0 + $0x170] sm:$0xf]
    %v126 = vld [vmem:[%s0 + $0x174] sm:$0xf]
    %v127 = vld [vmem:[%s0 + $0x178] sm:$0xf]
    %v128 = vld [vmem:[%s0 + $0x17c] sm:$0xf]
    %v129 = vld [vmem:[%s0 + $0x180] sm:$0xf]
    %v130 = vld [vmem:[%s0 + $0x184] sm:$0xf]
    %v131 = vld [vmem:[%s0 + $0x188] sm:$0xf]
    %v132 = vld [vmem:[%s0 + $0x18c] sm:$0xf]
    %v133 = vld [vmem:[%s0 + $0x190] sm:$0xf]
    %v134 = vld [vmem:[%s0 + $0x194] sm:$0xf]
    %v135 = vld [vmem:[%s0 + $0x198] sm:$0xf]
    %v136 = vld [vmem:[%s0 + $0x19c] sm:$0xf]
    %v137 = vld [vmem:[%s0 + $0x1a0] sm:$0xf]
    %v138 = vld [vmem:[%s0 + $0x1a4] sm:$0xf]
    %v139 = vld [vmem:[%s0 + $0x1a8] sm:$0xf]
    %v140 = vld [vmem:[%s0 + $0x1ac] sm:$0xf]
    %v141 = vld [vmem:[%s0 + $0x1b0] sm:$0xf]
    %v142 = vld [vmem:[%s0 + $0x1b4] sm:$0xf]
    %v143 = vld [vmem:[%s0 + $0x1b8] sm:$0xf]
    %v144 = vld [vmem:[%s0 + $0x1bc] sm:$0xf]
    %v145 = vld [vmem:[%s0 + $0x1c0] sm:$0xf]
    %v146 = vld [vmem:[%s0 + $0x1c4] sm:$0xf]
    %v147 = vld [vmem:[%s0 + $0x1c8] sm:$0xf]
    %v148 = vld [vmem:[%s0 + $0x1cc] sm:$0xf]
    %v149 = vld [vmem:[%s0 + $0x1d0] sm:$0xf]
    %v150 = vld [vmem:[%s0 + $0x1d4] sm:$0xf]
    %v151 = vld [vmem:[%s0 + $0x1d8] sm:$0xf]
    %v152 = vld [vmem:[%s0 + $0x1dc] sm:$0xf]
    %v153 = vld [vmem:[%s0 + $0x1e0] sm:$0xf]
    %v154 = vld [vmem:[%s0 + $0x1e4] sm:$0xf]
    %v155 = vld [vmem:[%s0 + $0x1e8] sm:$0xf]
    %v156 = vld [vmem:[%s0 + $0x1ec] sm:$0xf]
    %v157 = vld [vmem:[%s0 + $0x1f0] sm:$0xf]
    %v158 = vld [vmem:[%s0 + $0x1f4] sm:$0xf]
    %v159 = vld [vmem:[%s0 + $0x1f8] sm:$0xf]
    %v160 = vld [vmem:[%s0 + $0x1fc] sm:$0xf]
    %v161 = vld [vmem:[%s0 + $0x200] sm:$0xf]
    %v162 = vld [vmem:[%s0 + $0x204] sm:$0xf]
    %v163 = vld [vmem:[%s0 + $0x208] sm:$0xf]
    %v164 = vld [vmem:[%s0 + $0x20c] sm:$0xf]
    %v165 = vld [vmem:[%s0 + $0x210] sm:$0xf]
    %v166 = vld [vmem:[%s0 + $0x214] sm:$0xf]
    %v167 = vld [vmem:[%s0 + $0x218] sm:$0xf]
    %v168 = vld [vmem:[%s0 + $0x21c] sm:$0xf]
    %v169 = vld [vmem:[%s0 + $0x220] sm:$0xf]
    %v170 = vld [vmem:[%s0 + $0x224] sm:$0xf]
    %v171 = vld [vmem:[%s0 + $0x228] sm:$0xf]
    %v172 = vld [vmem:[%s0 + $0x22c] sm:$0xf]
    %v173 = vld [vmem:[%s0 + $0x230] sm:$0xf]
    %v174 = vld [vmem:[%s0 + $0x234] sm:$0xf]
    %v175 = vld [vmem:[%s0 + $0x238] sm:$0xf]
    %v176 = vld [vmem:[%s0 + $0x23c] sm:$0xf]
    %v177 = vld [vmem:[%s0 + $0x240] sm:$0xf]
    %v178 = vld [vmem:[%s0 + $0x244] sm:$0xf]
    %v179 = vld [vmem:[%s0 + $0x248] sm:$0xf]
    %v180 = vld [vmem:[%s0 + $0x24c] sm:$0xf]
    %v181 = vld [vmem:[%s0 + $0x250] sm:$0xf]
    %v182 = vld [vmem:[%s0 + $0x254] sm:$0xf]
    %v183 = vld [vmem:[%s0 + $0x258] sm:$0xf]
    %v184 = vld [vmem:[%s0 + $0x25c] sm:$0xf]
    %v185 = vld [vmem:[%s0 + $0x260] sm:$0xf]
    %v186 = vld [vmem:[%s0 + $0x264] sm:$0xf]
    %v187 = vld [vmem:[%s0 + $0x268] sm:$0xf]
    %v188 = vld [vmem:[%s0 + $0x26c] sm:$0xf]
    %v189 = vld [vmem:[%s0 + $0x270] sm:$0xf]
    %v190 = vld [vmem:[%s0 + $0x274] sm:$0xf]
    %v191 = vld [vmem:[%s0 + $0x278] sm:$0xf]
    %v192 = vld [vmem:[%s0 + $0x27c] sm:$0xf]
    %v193 = vld [vmem:[%s0 + $0x280] sm:$0xf]
    %v194 = vld [vmem:[%s0 + $0x284] sm:$0xf]
    %v195 = vld [vmem:[%s0 + $0x288] sm:$0xf]
    %v196 = vld [vmem:[%s0 + $0x28c] sm:$0xf]
    %v197 = vld [vmem:[%s0 + $0x290] sm:$0xf]
    %v198 = vld [vmem:[%s0 + $0x294] sm:$0xf]
    %v199 = vld [vmem:[%s0 + $0x298] sm:$0xf]
    %v200 = vld [vmem:[%s0 + $0x29c] sm:$0xf]
    %v201 = vld [vmem:[%s0 + $0x2a0] sm:$0xf]
    %v202 = vld [vmem:[%s0 + $0x2a4] sm:$0xf]
    %v203 = vld [vmem:[%s0 + $0x2a8] sm:$0xf]
    %v204 = vld [vmem:[%s0 + $0x2ac] sm:$0xf]
    %v205 = vld [vmem:[%s1] sm:$0xf]
    %v206 = vld [vmem:[%s1 + $0x4] sm:$0x1]
    %v207 = vperm.slane %v25, 0
    %v380 = vunpack.c.l.b16 %v33
    %v381 = vunpack.c.l.b16 %v34
    %v382 = vunpack.c.l.b16 %v35
    %v383 = vunpack.c.l.b16 %v36
    %v384 = vunpack.c.l.b16 %v37
    %v385 = vunpack.c.l.b16 %v38
    %v386 = vunpack.c.l.b16 %v39
    %v387 = vunpack.c.l.b16 %v40
    %v388 = vunpack.c.l.b16 %v41
    %v389 = vunpack.c.l.b16 %v42
    %v390 = vunpack.c.l.b16 %v43
    %v391 = vunpack.c.l.b16 %v44
    %v392 = vunpack.c.l.b16 %v45
    %v393 = vunpack.c.l.b16 %v46
    %v394 = vunpack.c.l.b16 %v47
    %v395 = vunpack.c.l.b16 %v48
    %v396 = vunpack.c.l.b16 %v49
    %v397 = vunpack.c.l.b16 %v50
    %v398 = vunpack.c.l.b16 %v51
    %v399 = vunpack.c.l.b16 %v52
    %v400 = vunpack.c.l.b16 %v53
    %v401 = vunpack.c.l.b16 %v54
    %v402 = vunpack.c.l.b16 %v55
    %v403 = vunpack.c.l.b16 %v56
    %v404 = vunpack.c.l.b16 %v57
    %v405 = vunpack.c.l.b16 %v58
    %v406 = vunpack.c.l.b16 %v59
    %v407 = vunpack.c.l.b16 %v60
    %v408 = vunpack.c.l.b16 %v61
    %v409 = vunpack.c.l.b16 %v62
    %v410 = vunpack.c.l.b16 %v63
    %v411 = vunpack.c.l.b16 %v64
    %v412 = vunpack.c.l.b16 %v65
    %v413 = vunpack.c.l.b16 %v66
    %v414 = vunpack.c.l.b16 %v67
    %v415 = vunpack.c.l.b16 %v68
    %v416 = vunpack.c.l.b16 %v69
    %v417 = vunpack.c.l.b16 %v70
    %v418 = vunpack.c.l.b16 %v71
    %v419 = vunpack.c.l.b16 %v72
    %v420 = vunpack.c.l.b16 %v73
    %v421 = vunpack.c.l.b16 %v74
    %v422 = vunpack.c.l.b16 %v75
    %v423 = vunpack.c.l.b16 %v76
    %v424 = vunpack.c.l.b16 %v77
    %v425 = vunpack.c.l.b16 %v78
    %v426 = vunpack.c.l.b16 %v79
    %v427 = vunpack.c.l.b16 %v80
    %v428 = vunpack.c.l.b16 %v81
    %v429 = vunpack.c.l.b16 %v82
    %v430 = vunpack.c.l.b16 %v83
    %v431 = vunpack.c.l.b16 %v84
    %v432 = vunpack.c.l.b16 %v85
    %v433 = vunpack.c.l.b16 %v86
    %v434 = vunpack.c.l.b16 %v87
    %v435 = vunpack.c.l.b16 %v88
    %v436 = vunpack.c.l.b16 %v89
    %v437 = vunpack.c.l.b16 %v90
    %v438 = vunpack.c.l.b16 %v91
    %v439 = vunpack.c.l.b16 %v92
    %v440 = vunpack.c.l.b16 %v93
    %v441 = vunpack.c.l.b16 %v94
    %v442 = vunpack.c.l.b16 %v95
    %v443 = vunpack.c.l.b16 %v96
    %v444 = vunpack.c.l.b16 %v97
    %v445 = vunpack.c.l.b16 %v98
    %v446 = vunpack.c.l.b16 %v99
    %v447 = vunpack.c.l.b16 %v100
    %v448 = vunpack.c.l.b16 %v101
    %v449 = vunpack.c.l.b16 %v102
    %v450 = vunpack.c.l.b16 %v103
    %v451 = vunpack.c.l.b16 %v104
    %v452 = vunpack.c.l.b16 %v105
    %v453 = vunpack.c.l.b16 %v106
    %v454 = vunpack.c.l.b16 %v107
    %v455 = vunpack.c.l.b16 %v108
    %v456 = vunpack.c.l.b16 %v109
    %v457 = vunpack.c.l.b16 %v110
    %v458 = vunpack.c.l.b16 %v111
    %v459 = vunpack.c.l.b16 %v112
    %v460 = vunpack.c.l.b16 %v113
    %v461 = vunpack.c.l.b16 %v114
    %v462 = vunpack.c.l.b16 %v115
    %v463 = vunpack.c.l.b16 %v116
    %v464 = vunpack.c.l.b16 %v117
    %v465 = vunpack.c.l.b16 %v118
    %v466 = vunpack.c.l.b16 %v119
    %v467 = vunpack.c.l.b16 %v120
    %v468 = vunpack.c.l.b16 %v121
    %v469 = vunpack.c.l.b16 %v122
    %v470 = vunpack.c.l.b16 %v123
    %v471 = vunpack.c.l.b16 %v124
    %v472 = vunpack.c.l.b16 %v125
    %v473 = vunpack.c.l.b16 %v126
    %v474 = vunpack.c.l.b16 %v127
    %v475 = vunpack.c.l.b16 %v128
    %v476 = vunpack.c.l.b16 %v129
    %v477 = vunpack.c.l.b16 %v130
    %v478 = vunpack.c.l.b16 %v131
    %v479 = vunpack.c.l.b16 %v132
    %v480 = vunpack.c.l.b16 %v133
    %v481 = vunpack.c.l.b16 %v134
    %v482 = vunpack.c.l.b16 %v135
    %v483 = vunpack.c.l.b16 %v136
    %v484 = vunpack.c.l.b16 %v137
    %v485 = vunpack.c.l.b16 %v138
    %v486 = vunpack.c.l.b16 %v139
    %v487 = vunpack.c.l.b16 %v140
    %v488 = vunpack.c.l.b16 %v141
    %v489 = vunpack.c.l.b16 %v142
    %v490 = vunpack.c.l.b16 %v143
    %v491 = vunpack.c.l.b16 %v144
    %v492 = vunpack.c.l.b16 %v145
    %v493 = vunpack.c.l.b16 %v146
    %v494 = vunpack.c.l.b16 %v147
    %v495 = vunpack.c.l.b16 %v148
    %v496 = vunpack.c.l.b16 %v149
    %v497 = vunpack.c.l.b16 %v150
    %v498 = vunpack.c.l.b16 %v151
    %v499 = vunpack.c.l.b16 %v152
    %v500 = vunpack.c.l.b16 %v153
    %v501 = vunpack.c.l.b16 %v154
    %v502 = vunpack.c.l.b16 %v155
    %v503 = vunpack.c.l.b16 %v156
    %v504 = vunpack.c.l.b16 %v157
    %v505 = vunpack.c.l.b16 %v158
    %v506 = vunpack.c.l.b16 %v159
    %v507 = vunpack.c.l.b16 %v160
    %v508 = vunpack.c.l.b16 %v161
    %v509 = vunpack.c.l.b16 %v162
    %v510 = vunpack.c.l.b16 %v163
    %v511 = vunpack.c.l.b16 %v164
    %v512 = vunpack.c.l.b16 %v165
    %v513 = vunpack.c.l.b16 %v166
    %v514 = vunpack.c.l.b16 %v167
    %v515 = vunpack.c.l.b16 %v168
    %v516 = vunpack.c.l.b16 %v169
    %v517 = vunpack.c.l.b16 %v170
    %v518 = vunpack.c.l.b16 %v171
    %v519 = vunpack.c.l.b16 %v172
    %v520 = vunpack.c.l.b16 %v173
    %v521 = vunpack.c.l.b16 %v174
    %v522 = vunpack.c.l.b16 %v175
    %v523 = vunpack.c.l.b16 %v176
    %v524 = vunpack.c.l.b16 %v177
    %v525 = vunpack.c.l.b16 %v178
    %v526 = vunpack.c.l.b16 %v179
    %v527 = vunpack.c.l.b16 %v180
    %v528 = vunpack.c.l.b16 %v181
    %v529 = vunpack.c.l.b16 %v182
    %v530 = vunpack.c.l.b16 %v183
    %v531 = vunpack.c.l.b16 %v184
    %v532 = vunpack.c.l.b16 %v185
    %v533 = vunpack.c.l.b16 %v186
    %v534 = vunpack.c.l.b16 %v187
    %v535 = vunpack.c.l.b16 %v188
    %v536 = vunpack.c.l.b16 %v189
    %v537 = vunpack.c.l.b16 %v190
    %v538 = vunpack.c.l.b16 %v191
    %v539 = vunpack.c.l.b16 %v192
    %v540 = vunpack.c.l.b16 %v193
    %v541 = vunpack.c.l.b16 %v194
    %v542 = vunpack.c.l.b16 %v195
    %v543 = vunpack.c.l.b16 %v196
    %v544 = vunpack.c.l.b16 %v197
    %v545 = vunpack.c.l.b16 %v198
    %v546 = vunpack.c.l.b16 %v199
    %v547 = vunpack.c.l.b16 %v200
    %v548 = vunpack.c.l.b16 %v201
    %v549 = vunpack.c.l.b16 %v202
    %v550 = vunpack.c.l.b16 %v203
    %v551 = vunpack.c.l.b16 %v204
    %v552 = vpack.c.b16 %v381, %v380
    %v553 = vpack.c.b16 %v383, %v382
    %v554 = vpack.c.b16 %v385, %v384
    %v555 = vpack.c.b16 %v387, %v386
    %v556 = vpack.c.b16 %v389, %v388
    %v557 = vpack.c.b16 %v391, %v390
    %v558 = vpack.c.b16 %v393, %v392
    %v559 = vpack.c.b16 %v395, %v394
    %v560 = vpack.c.b16 %v397, %v396
    %v561 = vpack.c.b16 %v399, %v398
    %v562 = vpack.c.b16 %v401, %v400
    %v563 = vpack.c.b16 %v403, %v402
    %v564 = vpack.c.b16 %v405, %v404
    %v565 = vpack.c.b16 %v407, %v406
    %v566 = vpack.c.b16 %v409, %v408
    %v567 = vpack.c.b16 %v411, %v410
    %v568 = vpack.c.b16 %v413, %v412
    %v569 = vpack.c.b16 %v415, %v414
    %v570 = vpack.c.b16 %v417, %v416
    %v571 = vpack.c.b16 %v419, %v418
    %v572 = vpack.c.b16 %v421, %v420
    %v573 = vpack.c.b16 %v423, %v422
    %v574 = vpack.c.b16 %v425, %v424
    %v575 = vpack.c.b16 %v427, %v426
    %v576 = vpack.c.b16 %v429, %v428
    %v577 = vpack.c.b16 %v431, %v430
    %v578 = vpack.c.b16 %v433, %v432
    %v579 = vpack.c.b16 %v435, %v434
    %v580 = vpack.c.b16 %v437, %v436
    %v581 = vpack.c.b16 %v439, %v438
    %v582 = vpack.c.b16 %v441, %v440
    %v583 = vpack.c.b16 %v443, %v442
    %v584 = vpack.c.b16 %v445, %v444
    %v585 = vpack.c.b16 %v447, %v446
    %v586 = vpack.c.b16 %v449, %v448
    %v587 = vpack.c.b16 %v451, %v450
    %v588 = vpack.c.b16 %v453, %v452
    %v589 = vpack.c.b16 %v455, %v454
    %v590 = vpack.c.b16 %v457, %v456
    %v591 = vpack.c.b16 %v459, %v458
    %v592 = vpack.c.b16 %v461, %v460
    %v593 = vpack.c.b16 %v463, %v462
    %v594 = vpack.c.b16 %v465, %v464
    %v595 = vpack.c.b16 %v467, %v466
    %v596 = vpack.c.b16 %v469, %v468
    %v597 = vpack.c.b16 %v471, %v470
    %v598 = vpack.c.b16 %v473, %v472
    %v599 = vpack.c.b16 %v475, %v474
    %v600 = vpack.c.b16 %v477, %v476
    %v601 = vpack.c.b16 %v479, %v478
    %v602 = vpack.c.b16 %v481, %v480
    %v603 = vpack.c.b16 %v483, %v482
    %v604 = vpack.c.b16 %v485, %v484
    %v605 = vpack.c.b16 %v487, %v486
    %v606 = vpack.c.b16 %v489, %v488
    %v607 = vpack.c.b16 %v491, %v490
    %v608 = vpack.c.b16 %v493, %v492
    %v609 = vpack.c.b16 %v495, %v494
    %v610 = vpack.c.b16 %v497, %v496
    %v611 = vpack.c.b16 %v499, %v498
    %v612 = vpack.c.b16 %v501, %v500
    %v613 = vpack.c.b16 %v503, %v502
    %v614 = vpack.c.b16 %v505, %v504
    %v615 = vpack.c.b16 %v507, %v506
    %v616 = vpack.c.b16 %v509, %v508
    %v617 = vpack.c.b16 %v511, %v510
    %v618 = vpack.c.b16 %v513, %v512
    %v619 = vpack.c.b16 %v515, %v514
    %v620 = vpack.c.b16 %v517, %v516
    %v621 = vpack.c.b16 %v519, %v518
    %v622 = vpack.c.b16 %v521, %v520
    %v623 = vpack.c.b16 %v523, %v522
    %v624 = vpack.c.b16 %v525, %v524
    %v625 = vpack.c.b16 %v527, %v526
    %v626 = vpack.c.b16 %v529, %v528
    %v627 = vpack.c.b16 %v531, %v530
    %v628 = vpack.c.b16 %v533, %v532
    %v629 = vpack.c.b16 %v535, %v534
    %v630 = vpack.c.b16 %v537, %v536
    %v631 = vpack.c.b16 %v539, %v538
    %v632 = vpack.c.b16 %v541, %v540
    %v633 = vpack.c.b16 %v543, %v542
    %v634 = vpack.c.b16 %v545, %v544
    %v635 = vpack.c.b16 %v547, %v546
    %v636 = vpack.c.b16 %v549, %v548
    %v637 = vpack.c.b16 %v551, %v550
    %v640 = vunpack.c.l.b16 %v205
    %v641 = vunpack.c.l.b16 %v206
    %v642 = vpack.c.b16 %v641, %v640
    %vm643 = vcmask 72704
    %v645 = vsel %vm643, %v552, 0
    %v648 = vsel %vm643, %v553, 0
    %v651 = vsel %vm643, %v554, 0
    %v654 = vsel %vm643, %v555, 0
    %v657 = vsel %vm643, %v556, 0
    %v660 = vsel %vm643, %v557, 0
    %v663 = vsel %vm643, %v558, 0
    %v666 = vsel %vm643, %v559, 0
    %v669 = vsel %vm643, %v560, 0
    %v672 = vsel %vm643, %v561, 0
    %v675 = vsel %vm643, %v562, 0
    %v678 = vsel %vm643, %v563, 0
    %v681 = vsel %vm643, %v564, 0
    %v684 = vsel %vm643, %v565, 0
    %v687 = vsel %vm643, %v566, 0
    %v690 = vsel %vm643, %v567, 0
    %v693 = vsel %vm643, %v568, 0
    %v696 = vsel %vm643, %v569, 0
    %v699 = vsel %vm643, %v570, 0
    %v702 = vsel %vm643, %v571, 0
    %v705 = vsel %vm643, %v572, 0
    %v708 = vsel %vm643, %v573, 0
    %v711 = vsel %vm643, %v574, 0
    %v714 = vsel %vm643, %v575, 0
    %v717 = vsel %vm643, %v576, 0
    %v720 = vsel %vm643, %v577, 0
    %v723 = vsel %vm643, %v578, 0
    %v726 = vsel %vm643, %v579, 0
    %v729 = vsel %vm643, %v580, 0
    %v732 = vsel %vm643, %v581, 0
    %v735 = vsel %vm643, %v582, 0
    %v738 = vsel %vm643, %v583, 0
    %v741 = vsel %vm643, %v584, 0
    %v744 = vsel %vm643, %v585, 0
    %v747 = vsel %vm643, %v586, 0
    %v750 = vsel %vm643, %v587, 0
    %v753 = vsel %vm643, %v588, 0
    %v756 = vsel %vm643, %v589, 0
    %v759 = vsel %vm643, %v590, 0
    %v762 = vsel %vm643, %v591, 0
    %v765 = vsel %vm643, %v592, 0
    %v768 = vsel %vm643, %v593, 0
    %v771 = vsel %vm643, %v594, 0
    %v774 = vsel %vm643, %v595, 0
    %v777 = vsel %vm643, %v596, 0
    %v780 = vsel %vm643, %v597, 0
    %v783 = vsel %vm643, %v598, 0
    %v786 = vsel %vm643, %v599, 0
    %v789 = vsel %vm643, %v600, 0
    %v792 = vsel %vm643, %v601, 0
    %v795 = vsel %vm643, %v602, 0
    %v798 = vsel %vm643, %v603, 0
    %v801 = vsel %vm643, %v604, 0
    %v804 = vsel %vm643, %v605, 0
    %v807 = vsel %vm643, %v606, 0
    %v810 = vsel %vm643, %v607, 0
    %v813 = vsel %vm643, %v608, 0
    %v816 = vsel %vm643, %v609, 0
    %v819 = vsel %vm643, %v610, 0
    %v822 = vsel %vm643, %v611, 0
    %v825 = vsel %vm643, %v612, 0
    %v828 = vsel %vm643, %v613, 0
    %v831 = vsel %vm643, %v614, 0
    %v834 = vsel %vm643, %v615, 0
    %v837 = vsel %vm643, %v616, 0
    %v840 = vsel %vm643, %v617, 0
    %v843 = vsel %vm643, %v618, 0
    %v846 = vsel %vm643, %v619, 0
    %v849 = vsel %vm643, %v620, 0
    %v852 = vsel %vm643, %v621, 0
    %v855 = vsel %vm643, %v622, 0
    %v858 = vsel %vm643, %v623, 0
    %v861 = vsel %vm643, %v624, 0
    %v864 = vsel %vm643, %v625, 0
    %v867 = vsel %vm643, %v626, 0
    %v870 = vsel %vm643, %v627, 0
    %v873 = vsel %vm643, %v628, 0
    %v876 = vsel %vm643, %v629, 0
    %v879 = vsel %vm643, %v630, 0
    %v882 = vsel %vm643, %v631, 0
    %v885 = vsel %vm643, %v632, 0
    %v888 = vsel %vm643, %v633, 0
    %v891 = vsel %vm643, %v634, 0
    %v894 = vsel %vm643, %v635, 0
    %v897 = vsel %vm643, %v636, 0
    %v900 = vsel %vm643, %v637, 0
    %vm902 = vcmask 1043456
    %vm903 = vcmask 1044480
    %v904 = vsel %vm902, 4294967295, 65535
    %v905 = vsel %vm903, %v904, 0
    %v907 = vand.u32 %v642, %v905
    %909 = vmatpush.bf16.msra.mxu0 0
    %910 = vmatpush.bf16.msra.mxu0 0
    %911 = vmatpush.bf16.msra.mxu0 0
    %912 = vmatpush.bf16.msra.mxu0 0
    %913 = vmatpush.bf16.msra.mxu0 0
    %914 = vmatpush.bf16.msra.mxu0 0
    %915 = vmatpush.bf16.msra.mxu0 0
    %916 = vmatpush.bf16.msra.mxu0 %v907
    %917 = vmatmul.bf16.gmra.mxu0 %v645
    %v918 = vpop.f32.mrf.mxu0
    %v919 = vadd.f32 %v207, %v918
    %v920 = vpop.f32.mrf.mxu0
    %v921 = vadd.f32 %v207, %v920
    %922 = vmatmul.bf16.gmra.mxu0 %v648
    %v923 = vpop.f32.mrf.mxu0
    %v924 = vadd.f32 %v207, %v923
    %v925 = vpop.f32.mrf.mxu0
    %v926 = vadd.f32 %v207, %v925
    %927 = vmatmul.bf16.gmra.mxu0 %v651
    %v928 = vpop.f32.mrf.mxu0
    %v929 = vadd.f32 %v207, %v928
    %v930 = vpop.f32.mrf.mxu0
    %v931 = vadd.f32 %v207, %v930
    %932 = vmatmul.bf16.gmra.mxu0 %v654
    %v933 = vpop.f32.mrf.mxu0
    %v934 = vadd.f32 %v207, %v933
    %v935 = vpop.f32.mrf.mxu0
    %v936 = vadd.f32 %v207, %v935
    %937 = vmatmul.bf16.gmra.mxu0 %v657
    %v938 = vpop.f32.mrf.mxu0
    %v939 = vadd.f32 %v207, %v938
    %v940 = vpop.f32.mrf.mxu0
    %v941 = vadd.f32 %v207, %v940
    %942 = vmatmul.bf16.gmra.mxu0 %v660
    %v943 = vpop.f32.mrf.mxu0
    %v944 = vadd.f32 %v207, %v943
    %v945 = vpop.f32.mrf.mxu0
    %v946 = vadd.f32 %v207, %v945
    %947 = vmatmul.bf16.gmra.mxu0 %v663
    %v948 = vpop.f32.mrf.mxu0
    %v949 = vadd.f32 %v207, %v948
    %v950 = vpop.f32.mrf.mxu0
    %v951 = vadd.f32 %v207, %v950
    %952 = vmatmul.bf16.gmra.mxu0 %v666
    %v953 = vpop.f32.mrf.mxu0
    %v954 = vadd.f32 %v207, %v953
    %v955 = vpop.f32.mrf.mxu0
    %v956 = vadd.f32 %v207, %v955
    %957 = vmatmul.bf16.gmra.mxu0 %v669
    %v958 = vpop.f32.mrf.mxu0
    %v959 = vadd.f32 %v207, %v958
    %v960 = vpop.f32.mrf.mxu0
    %v961 = vadd.f32 %v207, %v960
    %962 = vmatmul.bf16.gmra.mxu0 %v672
    %v963 = vpop.f32.mrf.mxu0
    %v964 = vadd.f32 %v207, %v963
    %v965 = vpop.f32.mrf.mxu0
    %v966 = vadd.f32 %v207, %v965
    %967 = vmatmul.bf16.gmra.mxu0 %v675
    %v968 = vpop.f32.mrf.mxu0
    %v969 = vadd.f32 %v207, %v968
    %v970 = vpop.f32.mrf.mxu0
    %v971 = vadd.f32 %v207, %v970
    %972 = vmatmul.bf16.gmra.mxu0 %v678
    %v973 = vpop.f32.mrf.mxu0
    %v974 = vadd.f32 %v207, %v973
    %v975 = vpop.f32.mrf.mxu0
    %v976 = vadd.f32 %v207, %v975
    %977 = vmatmul.bf16.gmra.mxu0 %v681
    %v978 = vpop.f32.mrf.mxu0
    %v979 = vadd.f32 %v207, %v978
    %v980 = vpop.f32.mrf.mxu0
    %v981 = vadd.f32 %v207, %v980
    %982 = vmatmul.bf16.gmra.mxu0 %v684
    %v983 = vpop.f32.mrf.mxu0
    %v984 = vadd.f32 %v207, %v983
    %v985 = vpop.f32.mrf.mxu0
    %v986 = vadd.f32 %v207, %v985
    %987 = vmatmul.bf16.gmra.mxu0 %v687
    %v988 = vpop.f32.mrf.mxu0
    %v989 = vadd.f32 %v207, %v988
    %v990 = vpop.f32.mrf.mxu0
    %v991 = vadd.f32 %v207, %v990
    %992 = vmatmul.bf16.gmra.mxu0 %v690
    %v993 = vpop.f32.mrf.mxu0
    %v994 = vadd.f32 %v207, %v993
    %v995 = vpop.f32.mrf.mxu0
    %v996 = vadd.f32 %v207, %v995
    %997 = vmatmul.bf16.gmra.mxu0 %v693
    %v998 = vpop.f32.mrf.mxu0
    %v999 = vadd.f32 %v207, %v998
    %v1000 = vpop.f32.mrf.mxu0
    %v1001 = vadd.f32 %v207, %v1000
    %1002 = vmatmul.bf16.gmra.mxu0 %v696
    %v1003 = vpop.f32.mrf.mxu0
    %v1004 = vadd.f32 %v207, %v1003
    %v1005 = vpop.f32.mrf.mxu0
    %v1006 = vadd.f32 %v207, %v1005
    %1007 = vmatmul.bf16.gmra.mxu0 %v699
    %v1008 = vpop.f32.mrf.mxu0
    %v1009 = vadd.f32 %v207, %v1008
    %v1010 = vpop.f32.mrf.mxu0
    %v1011 = vadd.f32 %v207, %v1010
    %1012 = vmatmul.bf16.gmra.mxu0 %v702
    %v1013 = vpop.f32.mrf.mxu0
    %v1014 = vadd.f32 %v207, %v1013
    %v1015 = vpop.f32.mrf.mxu0
    %v1016 = vadd.f32 %v207, %v1015
    %1017 = vmatmul.bf16.gmra.mxu0 %v705
    %v1018 = vpop.f32.mrf.mxu0
    %v1019 = vadd.f32 %v207, %v1018
    %v1020 = vpop.f32.mrf.mxu0
    %v1021 = vadd.f32 %v207, %v1020
    %1022 = vmatmul.bf16.gmra.mxu0 %v708
    %v1023 = vpop.f32.mrf.mxu0
    %v1024 = vadd.f32 %v207, %v1023
    %v1025 = vpop.f32.mrf.mxu0
    %v1026 = vadd.f32 %v207, %v1025
    %1027 = vmatmul.bf16.gmra.mxu0 %v711
    %v1028 = vpop.f32.mrf.mxu0
    %v1029 = vadd.f32 %v207, %v1028
    %v1030 = vpop.f32.mrf.mxu0
    %v1031 = vadd.f32 %v207, %v1030
    %1032 = vmatmul.bf16.gmra.mxu0 %v714
    %v1033 = vpop.f32.mrf.mxu0
    %v1034 = vadd.f32 %v207, %v1033
    %v1035 = vpop.f32.mrf.mxu0
    %v1036 = vadd.f32 %v207, %v1035
    %1037 = vmatmul.bf16.gmra.mxu0 %v717
    %v1038 = vpop.f32.mrf.mxu0
    %v1039 = vadd.f32 %v207, %v1038
    %v1040 = vpop.f32.mrf.mxu0
    %v1041 = vadd.f32 %v207, %v1040
    %1042 = vmatmul.bf16.gmra.mxu0 %v720
    %v1043 = vpop.f32.mrf.mxu0
    %v1044 = vadd.f32 %v207, %v1043
    %v1045 = vpop.f32.mrf.mxu0
    %v1046 = vadd.f32 %v207, %v1045
    %1047 = vmatmul.bf16.gmra.mxu0 %v723
    %v1048 = vpop.f32.mrf.mxu0
    %v1049 = vadd.f32 %v207, %v1048
    %v1050 = vpop.f32.mrf.mxu0
    %v1051 = vadd.f32 %v207, %v1050
    %1052 = vmatmul.bf16.gmra.mxu0 %v726
    %v1053 = vpop.f32.mrf.mxu0
    %v1054 = vadd.f32 %v207, %v1053
    %v1055 = vpop.f32.mrf.mxu0
    %v1056 = vadd.f32 %v207, %v1055
    %1057 = vmatmul.bf16.gmra.mxu0 %v729
    %v1058 = vpop.f32.mrf.mxu0
    %v1059 = vadd.f32 %v207, %v1058
    %v1060 = vpop.f32.mrf.mxu0
    %v1061 = vadd.f32 %v207, %v1060
    %1062 = vmatmul.bf16.gmra.mxu0 %v732
    %v1063 = vpop.f32.mrf.mxu0
    %v1064 = vadd.f32 %v207, %v1063
    %v1065 = vpop.f32.mrf.mxu0
    %v1066 = vadd.f32 %v207, %v1065
    %1067 = vmatmul.bf16.gmra.mxu0 %v735
    %v1068 = vpop.f32.mrf.mxu0
    %v1069 = vadd.f32 %v207, %v1068
    %v1070 = vpop.f32.mrf.mxu0
    %v1071 = vadd.f32 %v207, %v1070
    %1072 = vmatmul.bf16.gmra.mxu0 %v738
    %v1073 = vpop.f32.mrf.mxu0
    %v1074 = vadd.f32 %v207, %v1073
    %v1075 = vpop.f32.mrf.mxu0
    %v1076 = vadd.f32 %v207, %v1075
    %1077 = vmatmul.bf16.gmra.mxu0 %v741
    %v1078 = vpop.f32.mrf.mxu0
    %v1079 = vadd.f32 %v207, %v1078
    %v1080 = vpop.f32.mrf.mxu0
    %v1081 = vadd.f32 %v207, %v1080
    %1082 = vmatmul.bf16.gmra.mxu0 %v744
    %v1083 = vpop.f32.mrf.mxu0
    %v1084 = vadd.f32 %v207, %v1083
    %v1085 = vpop.f32.mrf.mxu0
    %v1086 = vadd.f32 %v207, %v1085
    %1087 = vmatmul.bf16.gmra.mxu0 %v747
    %v1088 = vpop.f32.mrf.mxu0
    %v1089 = vadd.f32 %v207, %v1088
    %v1090 = vpop.f32.mrf.mxu0
    %v1091 = vadd.f32 %v207, %v1090
    %1092 = vmatmul.bf16.gmra.mxu0 %v750
    %v1093 = vpop.f32.mrf.mxu0
    %v1094 = vadd.f32 %v207, %v1093
    %v1095 = vpop.f32.mrf.mxu0
    %v1096 = vadd.f32 %v207, %v1095
    %1097 = vmatmul.bf16.gmra.mxu0 %v753
    %v1098 = vpop.f32.mrf.mxu0
    %v1099 = vadd.f32 %v207, %v1098
    %v1100 = vpop.f32.mrf.mxu0
    %v1101 = vadd.f32 %v207, %v1100
    %1102 = vmatmul.bf16.gmra.mxu0 %v756
    %v1103 = vpop.f32.mrf.mxu0
    %v1104 = vadd.f32 %v207, %v1103
    %v1105 = vpop.f32.mrf.mxu0
    %v1106 = vadd.f32 %v207, %v1105
    %1107 = vmatmul.bf16.gmra.mxu0 %v759
    %v1108 = vpop.f32.mrf.mxu0
    %v1109 = vadd.f32 %v207, %v1108
    %v1110 = vpop.f32.mrf.mxu0
    %v1111 = vadd.f32 %v207, %v1110
    %1112 = vmatmul.bf16.gmra.mxu0 %v762
    %v1113 = vpop.f32.mrf.mxu0
    %v1114 = vadd.f32 %v207, %v1113
    %v1115 = vpop.f32.mrf.mxu0
    %v1116 = vadd.f32 %v207, %v1115
    %1117 = vmatmul.bf16.gmra.mxu0 %v765
    %v1118 = vpop.f32.mrf.mxu0
    %v1119 = vadd.f32 %v207, %v1118
    %v1120 = vpop.f32.mrf.mxu0
    %v1121 = vadd.f32 %v207, %v1120
    %1122 = vmatmul.bf16.gmra.mxu0 %v768
    %v1123 = vpop.f32.mrf.mxu0
    %v1124 = vadd.f32 %v207, %v1123
    %v1125 = vpop.f32.mrf.mxu0
    %v1126 = vadd.f32 %v207, %v1125
    %1127 = vmatmul.bf16.gmra.mxu0 %v771
    %v1128 = vpop.f32.mrf.mxu0
    %v1129 = vadd.f32 %v207, %v1128
    %v1130 = vpop.f32.mrf.mxu0
    %v1131 = vadd.f32 %v207, %v1130
    %1132 = vmatmul.bf16.gmra.mxu0 %v774
    %v1133 = vpop.f32.mrf.mxu0
    %v1134 = vadd.f32 %v207, %v1133
    %v1135 = vpop.f32.mrf.mxu0
    %v1136 = vadd.f32 %v207, %v1135
    %1137 = vmatmul.bf16.gmra.mxu0 %v777
    %v1138 = vpop.f32.mrf.mxu0
    %v1139 = vadd.f32 %v207, %v1138
    %v1140 = vpop.f32.mrf.mxu0
    %v1141 = vadd.f32 %v207, %v1140
    %1142 = vmatmul.bf16.gmra.mxu0 %v780
    %v1143 = vpop.f32.mrf.mxu0
    %v1144 = vadd.f32 %v207, %v1143
    %v1145 = vpop.f32.mrf.mxu0
    %v1146 = vadd.f32 %v207, %v1145
    %1147 = vmatmul.bf16.gmra.mxu0 %v783
    %v1148 = vpop.f32.mrf.mxu0
    %v1149 = vadd.f32 %v207, %v1148
    %v1150 = vpop.f32.mrf.mxu0
    %v1151 = vadd.f32 %v207, %v1150
    %1152 = vmatmul.bf16.gmra.mxu0 %v786
    %v1153 = vpop.f32.mrf.mxu0
    %v1154 = vadd.f32 %v207, %v1153
    %v1155 = vpop.f32.mrf.mxu0
    %v1156 = vadd.f32 %v207, %v1155
    %1157 = vmatmul.bf16.gmra.mxu0 %v789
    %v1158 = vpop.f32.mrf.mxu0
    %v1159 = vadd.f32 %v207, %v1158
    %v1160 = vpop.f32.mrf.mxu0
    %v1161 = vadd.f32 %v207, %v1160
    %1162 = vmatmul.bf16.gmra.mxu0 %v792
    %v1163 = vpop.f32.mrf.mxu0
    %v1164 = vadd.f32 %v207, %v1163
    %v1165 = vpop.f32.mrf.mxu0
    %v1166 = vadd.f32 %v207, %v1165
    %1167 = vmatmul.bf16.gmra.mxu0 %v795
    %v1168 = vpop.f32.mrf.mxu0
    %v1169 = vadd.f32 %v207, %v1168
    %v1170 = vpop.f32.mrf.mxu0
    %v1171 = vadd.f32 %v207, %v1170
    %1172 = vmatmul.bf16.gmra.mxu0 %v798
    %v1173 = vpop.f32.mrf.mxu0
    %v1174 = vadd.f32 %v207, %v1173
    %v1175 = vpop.f32.mrf.mxu0
    %v1176 = vadd.f32 %v207, %v1175
    %1177 = vmatmul.bf16.gmra.mxu0 %v801
    %v1178 = vpop.f32.mrf.mxu0
    %v1179 = vadd.f32 %v207, %v1178
    %v1180 = vpop.f32.mrf.mxu0
    %v1181 = vadd.f32 %v207, %v1180
    %1182 = vmatmul.bf16.gmra.mxu0 %v804
    %v1183 = vpop.f32.mrf.mxu0
    %v1184 = vadd.f32 %v207, %v1183
    %v1185 = vpop.f32.mrf.mxu0
    %v1186 = vadd.f32 %v207, %v1185
    %1187 = vmatmul.bf16.gmra.mxu0 %v807
    %v1188 = vpop.f32.mrf.mxu0
    %v1189 = vadd.f32 %v207, %v1188
    %v1190 = vpop.f32.mrf.mxu0
    %v1191 = vadd.f32 %v207, %v1190
    %1192 = vmatmul.bf16.gmra.mxu0 %v810
    %v1193 = vpop.f32.mrf.mxu0
    %v1194 = vadd.f32 %v207, %v1193
    %v1195 = vpop.f32.mrf.mxu0
    %v1196 = vadd.f32 %v207, %v1195
    %1197 = vmatmul.bf16.gmra.mxu0 %v813
    %v1198 = vpop.f32.mrf.mxu0
    %v1199 = vadd.f32 %v207, %v1198
    %v1200 = vpop.f32.mrf.mxu0
    %v1201 = vadd.f32 %v207, %v1200
    %1202 = vmatmul.bf16.gmra.mxu0 %v816
    %v1203 = vpop.f32.mrf.mxu0
    %v1204 = vadd.f32 %v207, %v1203
    %v1205 = vpop.f32.mrf.mxu0
    %v1206 = vadd.f32 %v207, %v1205
    %1207 = vmatmul.bf16.gmra.mxu0 %v819
    %v1208 = vpop.f32.mrf.mxu0
    %v1209 = vadd.f32 %v207, %v1208
    %v1210 = vpop.f32.mrf.mxu0
    %v1211 = vadd.f32 %v207, %v1210
    %1212 = vmatmul.bf16.gmra.mxu0 %v822
    %v1213 = vpop.f32.mrf.mxu0
    %v1214 = vadd.f32 %v207, %v1213
    %v1215 = vpop.f32.mrf.mxu0
    %v1216 = vadd.f32 %v207, %v1215
    %1217 = vmatmul.bf16.gmra.mxu0 %v825
    %v1218 = vpop.f32.mrf.mxu0
    %v1219 = vadd.f32 %v207, %v1218
    %v1220 = vpop.f32.mrf.mxu0
    %v1221 = vadd.f32 %v207, %v1220
    %1222 = vmatmul.bf16.gmra.mxu0 %v828
    %v1223 = vpop.f32.mrf.mxu0
    %v1224 = vadd.f32 %v207, %v1223
    %v1225 = vpop.f32.mrf.mxu0
    %v1226 = vadd.f32 %v207, %v1225
    %1227 = vmatmul.bf16.gmra.mxu0 %v831
    %v1228 = vpop.f32.mrf.mxu0
    %v1229 = vadd.f32 %v207, %v1228
    %v1230 = vpop.f32.mrf.mxu0
    %v1231 = vadd.f32 %v207, %v1230
    %1232 = vmatmul.bf16.gmra.mxu0 %v834
    %v1233 = vpop.f32.mrf.mxu0
    %v1234 = vadd.f32 %v207, %v1233
    %v1235 = vpop.f32.mrf.mxu0
    %v1236 = vadd.f32 %v207, %v1235
    %1237 = vmatmul.bf16.gmra.mxu0 %v837
    %v1238 = vpop.f32.mrf.mxu0
    %v1239 = vadd.f32 %v207, %v1238
    %v1240 = vpop.f32.mrf.mxu0
    %v1241 = vadd.f32 %v207, %v1240
    %1242 = vmatmul.bf16.gmra.mxu0 %v840
    %v1243 = vpop.f32.mrf.mxu0
    %v1244 = vadd.f32 %v207, %v1243
    %v1245 = vpop.f32.mrf.mxu0
    %v1246 = vadd.f32 %v207, %v1245
    %1247 = vmatmul.bf16.gmra.mxu0 %v843
    %v1248 = vpop.f32.mrf.mxu0
    %v1249 = vadd.f32 %v207, %v1248
    %v1250 = vpop.f32.mrf.mxu0
    %v1251 = vadd.f32 %v207, %v1250
    %1252 = vmatmul.bf16.gmra.mxu0 %v846
    %v1253 = vpop.f32.mrf.mxu0
    %v1254 = vadd.f32 %v207, %v1253
    %v1255 = vpop.f32.mrf.mxu0
    %v1256 = vadd.f32 %v207, %v1255
    %1257 = vmatmul.bf16.gmra.mxu0 %v849
    %v1258 = vpop.f32.mrf.mxu0
    %v1259 = vadd.f32 %v207, %v1258
    %v1260 = vpop.f32.mrf.mxu0
    %v1261 = vadd.f32 %v207, %v1260
    %1262 = vmatmul.bf16.gmra.mxu0 %v852
    %v1263 = vpop.f32.mrf.mxu0
    %v1264 = vadd.f32 %v207, %v1263
    %v1265 = vpop.f32.mrf.mxu0
    %v1266 = vadd.f32 %v207, %v1265
    %1267 = vmatmul.bf16.gmra.mxu0 %v855
    %v1268 = vpop.f32.mrf.mxu0
    %v1269 = vadd.f32 %v207, %v1268
    %v1270 = vpop.f32.mrf.mxu0
    %v1271 = vadd.f32 %v207, %v1270
    %1272 = vmatmul.bf16.gmra.mxu0 %v858
    %v1273 = vpop.f32.mrf.mxu0
    %v1274 = vadd.f32 %v207, %v1273
    %v1275 = vpop.f32.mrf.mxu0
    %v1276 = vadd.f32 %v207, %v1275
    %1277 = vmatmul.bf16.gmra.mxu0 %v861
    %v1278 = vpop.f32.mrf.mxu0
    %v1279 = vadd.f32 %v207, %v1278
    %v1280 = vpop.f32.mrf.mxu0
    %v1281 = vadd.f32 %v207, %v1280
    %1282 = vmatmul.bf16.gmra.mxu0 %v864
    %v1283 = vpop.f32.mrf.mxu0
    %v1284 = vadd.f32 %v207, %v1283
    %v1285 = vpop.f32.mrf.mxu0
    %v1286 = vadd.f32 %v207, %v1285
    %1287 = vmatmul.bf16.gmra.mxu0 %v867
    %v1288 = vpop.f32.mrf.mxu0
    %v1289 = vadd.f32 %v207, %v1288
    %v1290 = vpop.f32.mrf.mxu0
    %v1291 = vadd.f32 %v207, %v1290
    %1292 = vmatmul.bf16.gmra.mxu0 %v870
    %v1293 = vpop.f32.mrf.mxu0
    %v1294 = vadd.f32 %v207, %v1293
    %v1295 = vpop.f32.mrf.mxu0
    %v1296 = vadd.f32 %v207, %v1295
    %1297 = vmatmul.bf16.gmra.mxu0 %v873
    %v1298 = vpop.f32.mrf.mxu0
    %v1299 = vadd.f32 %v207, %v1298
    %v1300 = vpop.f32.mrf.mxu0
    %v1301 = vadd.f32 %v207, %v1300
    %1302 = vmatmul.bf16.gmra.mxu0 %v876
    %v1303 = vpop.f32.mrf.mxu0
    %v1304 = vadd.f32 %v207, %v1303
    %v1305 = vpop.f32.mrf.mxu0
    %v1306 = vadd.f32 %v207, %v1305
    %1307 = vmatmul.bf16.gmra.mxu0 %v879
    %v1308 = vpop.f32.mrf.mxu0
    %v1309 = vadd.f32 %v207, %v1308
    %v1310 = vpop.f32.mrf.mxu0
    %v1311 = vadd.f32 %v207, %v1310
    %1312 = vmatmul.bf16.gmra.mxu0 %v882
    %v1313 = vpop.f32.mrf.mxu0
    %v1314 = vadd.f32 %v207, %v1313
    %v1315 = vpop.f32.mrf.mxu0
    %v1316 = vadd.f32 %v207, %v1315
    %1317 = vmatmul.bf16.gmra.mxu0 %v885
    %v1318 = vpop.f32.mrf.mxu0
    %v1319 = vadd.f32 %v207, %v1318
    %v1320 = vpop.f32.mrf.mxu0
    %v1321 = vadd.f32 %v207, %v1320
    %1322 = vmatmul.bf16.gmra.mxu0 %v888
    %v1323 = vpop.f32.mrf.mxu0
    %v1324 = vadd.f32 %v207, %v1323
    %v1325 = vpop.f32.mrf.mxu0
    %v1326 = vadd.f32 %v207, %v1325
    %1327 = vmatmul.bf16.gmra.mxu0 %v891
    %v1328 = vpop.f32.mrf.mxu0
    %v1329 = vadd.f32 %v207, %v1328
    %v1330 = vpop.f32.mrf.mxu0
    %v1331 = vadd.f32 %v207, %v1330
    %1332 = vmatmul.bf16.gmra.mxu0 %v894
    %v1333 = vpop.f32.mrf.mxu0
    %v1334 = vadd.f32 %v207, %v1333
    %v1335 = vpop.f32.mrf.mxu0
    %v1336 = vadd.f32 %v207, %v1335
    %1337 = vmatmul.bf16.gmra.mxu0 %v897
    %v1338 = vpop.f32.mrf.mxu0
    %v1339 = vadd.f32 %v207, %v1338
    %v1340 = vpop.f32.mrf.mxu0
    %v1341 = vadd.f32 %v207, %v1340
    %1342 = vmatmul.bf16.gmra.mxu0 %v900
    %v1343 = vpop.f32.mrf.mxu0
    %v1344 = vadd.f32 %v207, %v1343
    %v1345 = vpop.f32.mrf.mxu0
    %v1346 = vadd.f32 %v207, %v1345
    %1347 = vdwg.mxu0
    %v1348 = vmax.f32 %v919, 0.0
    %v1349 = vmax.f32 %v921, 0.0
    %v1350 = vmax.f32 %v924, 0.0
    %v1351 = vmax.f32 %v926, 0.0
    %v1352 = vmax.f32 %v929, 0.0
    %v1353 = vmax.f32 %v931, 0.0
    %v1354 = vmax.f32 %v934, 0.0
    %v1355 = vmax.f32 %v936, 0.0
    %v1356 = vmax.f32 %v939, 0.0
    %v1357 = vmax.f32 %v941, 0.0
    %v1358 = vmax.f32 %v944, 0.0
    %v1359 = vmax.f32 %v946, 0.0
    %v1360 = vmax.f32 %v949, 0.0
    %v1361 = vmax.f32 %v951, 0.0
    %v1362 = vmax.f32 %v954, 0.0
    %v1363 = vmax.f32 %v956, 0.0
    %v1364 = vmax.f32 %v959, 0.0
    %v1365 = vmax.f32 %v961, 0.0
    %v1366 = vmax.f32 %v964, 0.0
    %v1367 = vmax.f32 %v966, 0.0
    %v1368 = vmax.f32 %v969, 0.0
    %v1369 = vmax.f32 %v971, 0.0
    %v1370 = vmax.f32 %v974, 0.0
    %v1371 = vmax.f32 %v976, 0.0
    %v1372 = vmax.f32 %v979, 0.0
    %v1373 = vmax.f32 %v981, 0.0
    %v1374 = vmax.f32 %v984, 0.0
    %v1375 = vmax.f32 %v986, 0.0
    %v1376 = vmax.f32 %v989, 0.0
    %v1377 = vmax.f32 %v991, 0.0
    %v1378 = vmax.f32 %v994, 0.0
    %v1379 = vmax.f32 %v996, 0.0
    %v1380 = vmax.f32 %v999, 0.0
    %v1381 = vmax.f32 %v1001, 0.0
    %v1382 = vmax.f32 %v1004, 0.0
    %v1383 = vmax.f32 %v1006, 0.0
    %v1384 = vmax.f32 %v1009, 0.0
    %v1385 = vmax.f32 %v1011, 0.0
    %v1386 = vmax.f32 %v1014, 0.0
    %v1387 = vmax.f32 %v1016, 0.0
    %v1388 = vmax.f32 %v1019, 0.0
    %v1389 = vmax.f32 %v1021, 0.0
    %v1390 = vmax.f32 %v1024, 0.0
    %v1391 = vmax.f32 %v1026, 0.0
    %v1392 = vmax.f32 %v1029, 0.0
    %v1393 = vmax.f32 %v1031, 0.0
    %v1394 = vmax.f32 %v1034, 0.0
    %v1395 = vmax.f32 %v1036, 0.0
    %v1396 = vmax.f32 %v1039, 0.0
    %v1397 = vmax.f32 %v1041, 0.0
    %v1398 = vmax.f32 %v1044, 0.0
    %v1399 = vmax.f32 %v1046, 0.0
    %v1400 = vmax.f32 %v1049, 0.0
    %v1401 = vmax.f32 %v1051, 0.0
    %v1402 = vmax.f32 %v1054, 0.0
    %v1403 = vmax.f32 %v1056, 0.0
    %v1404 = vmax.f32 %v1059, 0.0
    %v1405 = vmax.f32 %v1061, 0.0
    %v1406 = vmax.f32 %v1064, 0.0
    %v1407 = vmax.f32 %v1066, 0.0
    %v1408 = vmax.f32 %v1069, 0.0
    %v1409 = vmax.f32 %v1071, 0.0
    %v1410 = vmax.f32 %v1074, 0.0
    %v1411 = vmax.f32 %v1076, 0.0
    %v1412 = vmax.f32 %v1079, 0.0
    %v1413 = vmax.f32 %v1081, 0.0
    %v1414 = vmax.f32 %v1084, 0.0
    %v1415 = vmax.f32 %v1086, 0.0
    %v1416 = vmax.f32 %v1089, 0.0
    %v1417 = vmax.f32 %v1091, 0.0
    %v1418 = vmax.f32 %v1094, 0.0
    %v1419 = vmax.f32 %v1096, 0.0
    %v1420 = vmax.f32 %v1099, 0.0
    %v1421 = vmax.f32 %v1101, 0.0
    %v1422 = vmax.f32 %v1104, 0.0
    %v1423 = vmax.f32 %v1106, 0.0
    %v1424 = vmax.f32 %v1109, 0.0
    %v1425 = vmax.f32 %v1111, 0.0
    %v1426 = vmax.f32 %v1114, 0.0
    %v1427 = vmax.f32 %v1116, 0.0
    %v1428 = vmax.f32 %v1119, 0.0
    %v1429 = vmax.f32 %v1121, 0.0
    %v1430 = vmax.f32 %v1124, 0.0
    %v1431 = vmax.f32 %v1126, 0.0
    %v1432 = vmax.f32 %v1129, 0.0
    %v1433 = vmax.f32 %v1131, 0.0
    %v1434 = vmax.f32 %v1134, 0.0
    %v1435 = vmax.f32 %v1136, 0.0
    %v1436 = vmax.f32 %v1139, 0.0
    %v1437 = vmax.f32 %v1141, 0.0
    %v1438 = vmax.f32 %v1144, 0.0
    %v1439 = vmax.f32 %v1146, 0.0
    %v1440 = vmax.f32 %v1149, 0.0
    %v1441 = vmax.f32 %v1151, 0.0
    %v1442 = vmax.f32 %v1154, 0.0
    %v1443 = vmax.f32 %v1156, 0.0
    %v1444 = vmax.f32 %v1159, 0.0
    %v1445 = vmax.f32 %v1161, 0.0
    %v1446 = vmax.f32 %v1164, 0.0
    %v1447 = vmax.f32 %v1166, 0.0
    %v1448 = vmax.f32 %v1169, 0.0
    %v1449 = vmax.f32 %v1171, 0.0
    %v1450 = vmax.f32 %v1174, 0.0
    %v1451 = vmax.f32 %v1176, 0.0
    %v1452 = vmax.f32 %v1179, 0.0
    %v1453 = vmax.f32 %v1181, 0.0
    %v1454 = vmax.f32 %v1184, 0.0
    %v1455 = vmax.f32 %v1186, 0.0
    %v1456 = vmax.f32 %v1189, 0.0
    %v1457 = vmax.f32 %v1191, 0.0
    %v1458 = vmax.f32 %v1194, 0.0
    %v1459 = vmax.f32 %v1196, 0.0
    %v1460 = vmax.f32 %v1199, 0.0
    %v1461 = vmax.f32 %v1201, 0.0
    %v1462 = vmax.f32 %v1204, 0.0
    %v1463 = vmax.f32 %v1206, 0.0
    %v1464 = vmax.f32 %v1209, 0.0
    %v1465 = vmax.f32 %v1211, 0.0
    %v1466 = vmax.f32 %v1214, 0.0
    %v1467 = vmax.f32 %v1216, 0.0
    %v1468 = vmax.f32 %v1219, 0.0
    %v1469 = vmax.f32 %v1221, 0.0
    %v1470 = vmax.f32 %v1224, 0.0
    %v1471 = vmax.f32 %v1226, 0.0
    %v1472 = vmax.f32 %v1229, 0.0
    %v1473 = vmax.f32 %v1231, 0.0
    %v1474 = vmax.f32 %v1234, 0.0
    %v1475 = vmax.f32 %v1236, 0.0
    %v1476 = vmax.f32 %v1239, 0.0
    %v1477 = vmax.f32 %v1241, 0.0
    %v1478 = vmax.f32 %v1244, 0.0
    %v1479 = vmax.f32 %v1246, 0.0
    %v1480 = vmax.f32 %v1249, 0.0
    %v1481 = vmax.f32 %v1251, 0.0
    %v1482 = vmax.f32 %v1254, 0.0
    %v1483 = vmax.f32 %v1256, 0.0
    %v1484 = vmax.f32 %v1259, 0.0
    %v1485 = vmax.f32 %v1261, 0.0
    %v1486 = vmax.f32 %v1264, 0.0
    %v1487 = vmax.f32 %v1266, 0.0
    %v1488 = vmax.f32 %v1269, 0.0
    %v1489 = vmax.f32 %v1271, 0.0
    %v1490 = vmax.f32 %v1274, 0.0
    %v1491 = vmax.f32 %v1276, 0.0
    %v1492 = vmax.f32 %v1279, 0.0
    %v1493 = vmax.f32 %v1281, 0.0
    %v1494 = vmax.f32 %v1284, 0.0
    %v1495 = vmax.f32 %v1286, 0.0
    %v1496 = vmax.f32 %v1289, 0.0
    %v1497 = vmax.f32 %v1291, 0.0
    %v1498 = vmax.f32 %v1294, 0.0
    %v1499 = vmax.f32 %v1296, 0.0
    %v1500 = vmax.f32 %v1299, 0.0
    %v1501 = vmax.f32 %v1301, 0.0
    %v1502 = vmax.f32 %v1304, 0.0
    %v1503 = vmax.f32 %v1306, 0.0
    %v1504 = vmax.f32 %v1309, 0.0
    %v1505 = vmax.f32 %v1311, 0.0
    %v1506 = vmax.f32 %v1314, 0.0
    %v1507 = vmax.f32 %v1316, 0.0
    %v1508 = vmax.f32 %v1319, 0.0
    %v1509 = vmax.f32 %v1321, 0.0
    %v1510 = vmax.f32 %v1324, 0.0
    %v1511 = vmax.f32 %v1326, 0.0
    %v1512 = vmax.f32 %v1329, 0.0
    %v1513 = vmax.f32 %v1331, 0.0
    %v1514 = vmax.f32 %v1334, 0.0
    %v1515 = vmax.f32 %v1336, 0.0
    %v1516 = vmax.f32 %v1339, 0.0
    %v1517 = vmax.f32 %v1341, 0.0
    %v1518 = vmax.f32 %v1344, 0.0
    %v1519 = vmax.f32 %v1346, 0.0
    %v1520 = vperm.slane %v26, 0
    %v1521 = vmul.f32 %v1348, %v1520
    %v1522 = vmul.f32 %v1349, %v1520
    %v1523 = vmul.f32 %v1350, %v1520
    %v1524 = vmul.f32 %v1351, %v1520
    %v1525 = vmul.f32 %v1352, %v1520
    %v1526 = vmul.f32 %v1353, %v1520
    %v1527 = vmul.f32 %v1354, %v1520
    %v1528 = vmul.f32 %v1355, %v1520
    %v1529 = vmul.f32 %v1356, %v1520
    %v1530 = vmul.f32 %v1357, %v1520
    %v1531 = vmul.f32 %v1358, %v1520
    %v1532 = vmul.f32 %v1359, %v1520
    %v1533 = vmul.f32 %v1360, %v1520
    %v1534 = vmul.f32 %v1361, %v1520
    %v1535 = vmul.f32 %v1362, %v1520
    %v1536 = vmul.f32 %v1363, %v1520
    %v1537 = vmul.f32 %v1364, %v1520
    %v1538 = vmul.f32 %v1365, %v1520
    %v1539 = vmul.f32 %v1366, %v1520
    %v1540 = vmul.f32 %v1367, %v1520
    %v1541 = vmul.f32 %v1368, %v1520
    %v1542 = vmul.f32 %v1369, %v1520
    %v1543 = vmul.f32 %v1370, %v1520
    %v1544 = vmul.f32 %v1371, %v1520
    %v1545 = vmul.f32 %v1372, %v1520
    %v1546 = vmul.f32 %v1373, %v1520
    %v1547 = vmul.f32 %v1374, %v1520
    %v1548 = vmul.f32 %v1375, %v1520
    %v1549 = vmul.f32 %v1376, %v1520
    %v1550 = vmul.f32 %v1377, %v1520
    %v1551 = vmul.f32 %v1378, %v1520
    %v1552 = vmul.f32 %v1379, %v1520
    %v1553 = vmul.f32 %v1380, %v1520
    %v1554 = vmul.f32 %v1381, %v1520
    %v1555 = vmul.f32 %v1382, %v1520
    %v1556 = vmul.f32 %v1383, %v1520
    %v1557 = vmul.f32 %v1384, %v1520
    %v1558 = vmul.f32 %v1385, %v1520
    %v1559 = vmul.f32 %v1386, %v1520
    %v1560 = vmul.f32 %v1387, %v1520
    %v1561 = vmul.f32 %v1388, %v1520
    %v1562 = vmul.f32 %v1389, %v1520
    %v1563 = vmul.f32 %v1390, %v1520
    %v1564 = vmul.f32 %v1391, %v1520
    %v1565 = vmul.f32 %v1392, %v1520
    %v1566 = vmul.f32 %v1393, %v1520
    %v1567 = vmul.f32 %v1394, %v1520
    %v1568 = vmul.f32 %v1395, %v1520
    %v1569 = vmul.f32 %v1396, %v1520
    %v1570 = vmul.f32 %v1397, %v1520
    %v1571 = vmul.f32 %v1398, %v1520
    %v1572 = vmul.f32 %v1399, %v1520
    %v1573 = vmul.f32 %v1400, %v1520
    %v1574 = vmul.f32 %v1401, %v1520
    %v1575 = vmul.f32 %v1402, %v1520
    %v1576 = vmul.f32 %v1403, %v1520
    %v1577 = vmul.f32 %v1404, %v1520
    %v1578 = vmul.f32 %v1405, %v1520
    %v1579 = vmul.f32 %v1406, %v1520
    %v1580 = vmul.f32 %v1407, %v1520
    %v1581 = vmul.f32 %v1408, %v1520
    %v1582 = vmul.f32 %v1409, %v1520
    %v1583 = vmul.f32 %v1410, %v1520
    %v1584 = vmul.f32 %v1411, %v1520
    %v1585 = vmul.f32 %v1412, %v1520
    %v1586 = vmul.f32 %v1413, %v1520
    %v1587 = vmul.f32 %v1414, %v1520
    %v1588 = vmul.f32 %v1415, %v1520
    %v1589 = vmul.f32 %v1416, %v1520
    %v1590 = vmul.f32 %v1417, %v1520
    %v1591 = vmul.f32 %v1418, %v1520
    %v1592 = vmul.f32 %v1419, %v1520
    %v1593 = vmul.f32 %v1420, %v1520
    %v1594 = vmul.f32 %v1421, %v1520
    %v1595 = vmul.f32 %v1422, %v1520
    %v1596 = vmul.f32 %v1423, %v1520
    %v1597 = vmul.f32 %v1424, %v1520
    %v1598 = vmul.f32 %v1425, %v1520
    %v1599 = vmul.f32 %v1426, %v1520
    %v1600 = vmul.f32 %v1427, %v1520
    %v1601 = vmul.f32 %v1428, %v1520
    %v1602 = vmul.f32 %v1429, %v1520
    %v1603 = vmul.f32 %v1430, %v1520
    %v1604 = vmul.f32 %v1431, %v1520
    %v1605 = vmul.f32 %v1432, %v1520
    %v1606 = vmul.f32 %v1433, %v1520
    %v1607 = vmul.f32 %v1434, %v1520
    %v1608 = vmul.f32 %v1435, %v1520
    %v1609 = vmul.f32 %v1436, %v1520
    %v1610 = vmul.f32 %v1437, %v1520
    %v1611 = vmul.f32 %v1438, %v1520
    %v1612 = vmul.f32 %v1439, %v1520
    %v1613 = vmul.f32 %v1440, %v1520
    %v1614 = vmul.f32 %v1441, %v1520
    %v1615 = vmul.f32 %v1442, %v1520
    %v1616 = vmul.f32 %v1443, %v1520
    %v1617 = vmul.f32 %v1444, %v1520
    %v1618 = vmul.f32 %v1445, %v1520
    %v1619 = vmul.f32 %v1446, %v1520
    %v1620 = vmul.f32 %v1447, %v1520
    %v1621 = vmul.f32 %v1448, %v1520
    %v1622 = vmul.f32 %v1449, %v1520
    %v1623 = vmul.f32 %v1450, %v1520
    %v1624 = vmul.f32 %v1451, %v1520
    %v1625 = vmul.f32 %v1452, %v1520
    %v1626 = vmul.f32 %v1453, %v1520
    %v1627 = vmul.f32 %v1454, %v1520
    %v1628 = vmul.f32 %v1455, %v1520
    %v1629 = vmul.f32 %v1456, %v1520
    %v1630 = vmul.f32 %v1457, %v1520
    %v1631 = vmul.f32 %v1458, %v1520
    %v1632 = vmul.f32 %v1459, %v1520
    %v1633 = vmul.f32 %v1460, %v1520
    %v1634 = vmul.f32 %v1461, %v1520
    %v1635 = vmul.f32 %v1462, %v1520
    %v1636 = vmul.f32 %v1463, %v1520
    %v1637 = vmul.f32 %v1464, %v1520
    %v1638 = vmul.f32 %v1465, %v1520
    %v1639 = vmul.f32 %v1466, %v1520
    %v1640 = vmul.f32 %v1467, %v1520
    %v1641 = vmul.f32 %v1468, %v1520
    %v1642 = vmul.f32 %v1469, %v1520
    %v1643 = vmul.f32 %v1470, %v1520
    %v1644 = vmul.f32 %v1471, %v1520
    %v1645 = vmul.f32 %v1472, %v1520
    %v1646 = vmul.f32 %v1473, %v1520
    %v1647 = vmul.f32 %v1474, %v1520
    %v1648 = vmul.f32 %v1475, %v1520
    %v1649 = vmul.f32 %v1476, %v1520
    %v1650 = vmul.f32 %v1477, %v1520
    %v1651 = vmul.f32 %v1478, %v1520
    %v1652 = vmul.f32 %v1479, %v1520
    %v1653 = vmul.f32 %v1480, %v1520
    %v1654 = vmul.f32 %v1481, %v1520
    %v1655 = vmul.f32 %v1482, %v1520
    %v1656 = vmul.f32 %v1483, %v1520
    %v1657 = vmul.f32 %v1484, %v1520
    %v1658 = vmul.f32 %v1485, %v1520
    %v1659 = vmul.f32 %v1486, %v1520
    %v1660 = vmul.f32 %v1487, %v1520
    %v1661 = vmul.f32 %v1488, %v1520
    %v1662 = vmul.f32 %v1489, %v1520
    %v1663 = vmul.f32 %v1490, %v1520
    %v1664 = vmul.f32 %v1491, %v1520
    %v1665 = vmul.f32 %v1492, %v1520
    %v1666 = vmul.f32 %v1493, %v1520
    %v1667 = vmul.f32 %v1494, %v1520
    %v1668 = vmul.f32 %v1495, %v1520
    %v1669 = vmul.f32 %v1496, %v1520
    %v1670 = vmul.f32 %v1497, %v1520
    %v1671 = vmul.f32 %v1498, %v1520
    %v1672 = vmul.f32 %v1499, %v1520
    %v1673 = vmul.f32 %v1500, %v1520
    %v1674 = vmul.f32 %v1501, %v1520
    %v1675 = vmul.f32 %v1502, %v1520
    %v1676 = vmul.f32 %v1503, %v1520
    %v1677 = vmul.f32 %v1504, %v1520
    %v1678 = vmul.f32 %v1505, %v1520
    %v1679 = vmul.f32 %v1506, %v1520
    %v1680 = vmul.f32 %v1507, %v1520
    %v1681 = vmul.f32 %v1508, %v1520
    %v1682 = vmul.f32 %v1509, %v1520
    %v1683 = vmul.f32 %v1510, %v1520
    %v1684 = vmul.f32 %v1511, %v1520
    %v1685 = vmul.f32 %v1512, %v1520
    %v1686 = vmul.f32 %v1513, %v1520
    %v1687 = vmul.f32 %v1514, %v1520
    %v1688 = vmul.f32 %v1515, %v1520
    %v1689 = vmul.f32 %v1516, %v1520
    %v1690 = vmul.f32 %v1517, %v1520
    %v1691 = vmul.f32 %v1518, %v1520
    %v1692 = vmul.f32 %v1519, %v1520
    %v1693 = vperm.slane %v27, 0
    %v1694 = vadd.f32 %v1521, %v1693
    %v1695 = vadd.f32 %v1522, %v1693
    %v1696 = vadd.f32 %v1523, %v1693
    %v1697 = vadd.f32 %v1524, %v1693
    %v1698 = vadd.f32 %v1525, %v1693
    %v1699 = vadd.f32 %v1526, %v1693
    %v1700 = vadd.f32 %v1527, %v1693
    %v1701 = vadd.f32 %v1528, %v1693
    %v1702 = vadd.f32 %v1529, %v1693
    %v1703 = vadd.f32 %v1530, %v1693
    %v1704 = vadd.f32 %v1531, %v1693
    %v1705 = vadd.f32 %v1532, %v1693
    %v1706 = vadd.f32 %v1533, %v1693
    %v1707 = vadd.f32 %v1534, %v1693
    %v1708 = vadd.f32 %v1535, %v1693
    %v1709 = vadd.f32 %v1536, %v1693
    %v1710 = vadd.f32 %v1537, %v1693
    %v1711 = vadd.f32 %v1538, %v1693
    %v1712 = vadd.f32 %v1539, %v1693
    %v1713 = vadd.f32 %v1540, %v1693
    %v1714 = vadd.f32 %v1541, %v1693
    %v1715 = vadd.f32 %v1542, %v1693
    %v1716 = vadd.f32 %v1543, %v1693
    %v1717 = vadd.f32 %v1544, %v1693
    %v1718 = vadd.f32 %v1545, %v1693
    %v1719 = vadd.f32 %v1546, %v1693
    %v1720 = vadd.f32 %v1547, %v1693
    %v1721 = vadd.f32 %v1548, %v1693
    %v1722 = vadd.f32 %v1549, %v1693
    %v1723 = vadd.f32 %v1550, %v1693
    %v1724 = vadd.f32 %v1551, %v1693
    %v1725 = vadd.f32 %v1552, %v1693
    %v1726 = vadd.f32 %v1553, %v1693
    %v1727 = vadd.f32 %v1554, %v1693
    %v1728 = vadd.f32 %v1555, %v1693
    %v1729 = vadd.f32 %v1556, %v1693
    %v1730 = vadd.f32 %v1557, %v1693
    %v1731 = vadd.f32 %v1558, %v1693
    %v1732 = vadd.f32 %v1559, %v1693
    %v1733 = vadd.f32 %v1560, %v1693
    %v1734 = vadd.f32 %v1561, %v1693
    %v1735 = vadd.f32 %v1562, %v1693
    %v1736 = vadd.f32 %v1563, %v1693
    %v1737 = vadd.f32 %v1564, %v1693
    %v1738 = vadd.f32 %v1565, %v1693
    %v1739 = vadd.f32 %v1566, %v1693
    %v1740 = vadd.f32 %v1567, %v1693
    %v1741 = vadd.f32 %v1568, %v1693
    %v1742 = vadd.f32 %v1569, %v1693
    %v1743 = vadd.f32 %v1570, %v1693
    %v1744 = vadd.f32 %v1571, %v1693
    %v1745 = vadd.f32 %v1572, %v1693
    %v1746 = vadd.f32 %v1573, %v1693
    %v1747 = vadd.f32 %v1574, %v1693
    %v1748 = vadd.f32 %v1575, %v1693
    %v1749 = vadd.f32 %v1576, %v1693
    %v1750 = vadd.f32 %v1577, %v1693
    %v1751 = vadd.f32 %v1578, %v1693
    %v1752 = vadd.f32 %v1579, %v1693
    %v1753 = vadd.f32 %v1580, %v1693
    %v1754 = vadd.f32 %v1581, %v1693
    %v1755 = vadd.f32 %v1582, %v1693
    %v1756 = vadd.f32 %v1583, %v1693
    %v1757 = vadd.f32 %v1584, %v1693
    %v1758 = vadd.f32 %v1585, %v1693
    %v1759 = vadd.f32 %v1586, %v1693
    %v1760 = vadd.f32 %v1587, %v1693
    %v1761 = vadd.f32 %v1588, %v1693
    %v1762 = vadd.f32 %v1589, %v1693
    %v1763 = vadd.f32 %v1590, %v1693
    %v1764 = vadd.f32 %v1591, %v1693
    %v1765 = vadd.f32 %v1592, %v1693
    %v1766 = vadd.f32 %v1593, %v1693
    %v1767 = vadd.f32 %v1594, %v1693
    %v1768 = vadd.f32 %v1595, %v1693
    %v1769 = vadd.f32 %v1596, %v1693
    %v1770 = vadd.f32 %v1597, %v1693
    %v1771 = vadd.f32 %v1598, %v1693
    %v1772 = vadd.f32 %v1599, %v1693
    %v1773 = vadd.f32 %v1600, %v1693
    %v1774 = vadd.f32 %v1601, %v1693
    %v1775 = vadd.f32 %v1602, %v1693
    %v1776 = vadd.f32 %v1603, %v1693
    %v1777 = vadd.f32 %v1604, %v1693
    %v1778 = vadd.f32 %v1605, %v1693
    %v1779 = vadd.f32 %v1606, %v1693
    %v1780 = vadd.f32 %v1607, %v1693
    %v1781 = vadd.f32 %v1608, %v1693
    %v1782 = vadd.f32 %v1609, %v1693
    %v1783 = vadd.f32 %v1610, %v1693
    %v1784 = vadd.f32 %v1611, %v1693
    %v1785 = vadd.f32 %v1612, %v1693
    %v1786 = vadd.f32 %v1613, %v1693
    %v1787 = vadd.f32 %v1614, %v1693
    %v1788 = vadd.f32 %v1615, %v1693
    %v1789 = vadd.f32 %v1616, %v1693
    %v1790 = vadd.f32 %v1617, %v1693
    %v1791 = vadd.f32 %v1618, %v1693
    %v1792 = vadd.f32 %v1619, %v1693
    %v1793 = vadd.f32 %v1620, %v1693
    %v1794 = vadd.f32 %v1621, %v1693
    %v1795 = vadd.f32 %v1622, %v1693
    %v1796 = vadd.f32 %v1623, %v1693
    %v1797 = vadd.f32 %v1624, %v1693
    %v1798 = vadd.f32 %v1625, %v1693
    %v1799 = vadd.f32 %v1626, %v1693
    %v1800 = vadd.f32 %v1627, %v1693
    %v1801 = vadd.f32 %v1628, %v1693
    %v1802 = vadd.f32 %v1629, %v1693
    %v1803 = vadd.f32 %v1630, %v1693
    %v1804 = vadd.f32 %v1631, %v1693
    %v1805 = vadd.f32 %v1632, %v1693
    %v1806 = vadd.f32 %v1633, %v1693
    %v1807 = vadd.f32 %v1634, %v1693
    %v1808 = vadd.f32 %v1635, %v1693
    %v1809 = vadd.f32 %v1636, %v1693
    %v1810 = vadd.f32 %v1637, %v1693
    %v1811 = vadd.f32 %v1638, %v1693
    %v1812 = vadd.f32 %v1639, %v1693
    %v1813 = vadd.f32 %v1640, %v1693
    %v1814 = vadd.f32 %v1641, %v1693
    %v1815 = vadd.f32 %v1642, %v1693
    %v1816 = vadd.f32 %v1643, %v1693
    %v1817 = vadd.f32 %v1644, %v1693
    %v1818 = vadd.f32 %v1645, %v1693
    %v1819 = vadd.f32 %v1646, %v1693
    %v1820 = vadd.f32 %v1647, %v1693
    %v1821 = vadd.f32 %v1648, %v1693
    %v1822 = vadd.f32 %v1649, %v1693
    %v1823 = vadd.f32 %v1650, %v1693
    %v1824 = vadd.f32 %v1651, %v1693
    %v1825 = vadd.f32 %v1652, %v1693
    %v1826 = vadd.f32 %v1653, %v1693
    %v1827 = vadd.f32 %v1654, %v1693
    %v1828 = vadd.f32 %v1655, %v1693
    %v1829 = vadd.f32 %v1656, %v1693
    %v1830 = vadd.f32 %v1657, %v1693
    %v1831 = vadd.f32 %v1658, %v1693
    %v1832 = vadd.f32 %v1659, %v1693
    %v1833 = vadd.f32 %v1660, %v1693
    %v1834 = vadd.f32 %v1661, %v1693
    %v1835 = vadd.f32 %v1662, %v1693
    %v1836 = vadd.f32 %v1663, %v1693
    %v1837 = vadd.f32 %v1664, %v1693
    %v1838 = vadd.f32 %v1665, %v1693
    %v1839 = vadd.f32 %v1666, %v1693
    %v1840 = vadd.f32 %v1667, %v1693
    %v1841 = vadd.f32 %v1668, %v1693
    %v1842 = vadd.f32 %v1669, %v1693
    %v1843 = vadd.f32 %v1670, %v1693
    %v1844 = vadd.f32 %v1671, %v1693
    %v1845 = vadd.f32 %v1672, %v1693
    %v1846 = vadd.f32 %v1673, %v1693
    %v1847 = vadd.f32 %v1674, %v1693
    %v1848 = vadd.f32 %v1675, %v1693
    %v1849 = vadd.f32 %v1676, %v1693
    %v1850 = vadd.f32 %v1677, %v1693
    %v1851 = vadd.f32 %v1678, %v1693
    %v1852 = vadd.f32 %v1679, %v1693
    %v1853 = vadd.f32 %v1680, %v1693
    %v1854 = vadd.f32 %v1681, %v1693
    %v1855 = vadd.f32 %v1682, %v1693
    %v1856 = vadd.f32 %v1683, %v1693
    %v1857 = vadd.f32 %v1684, %v1693
    %v1858 = vadd.f32 %v1685, %v1693
    %v1859 = vadd.f32 %v1686, %v1693
    %v1860 = vadd.f32 %v1687, %v1693
    %v1861 = vadd.f32 %v1688, %v1693
    %v1862 = vadd.f32 %v1689, %v1693
    %v1863 = vadd.f32 %v1690, %v1693
    %v1864 = vadd.f32 %v1691, %v1693
    %v1865 = vadd.f32 %v1692, %v1693
    %v1866 = vmax.f32 %v1694, %v1737
    %v1867 = vmax.f32 %v1695, %v1738
    %v1868 = vmax.f32 %v1696, %v1739
    %v1869 = vmax.f32 %v1697, %v1740
    %v1870 = vmax.f32 %v1698, %v1741
    %v1871 = vmax.f32 %v1699, %v1742
    %v1872 = vmax.f32 %v1700, %v1743
    %v1873 = vmax.f32 %v1701, %v1744
    %v1874 = vmax.f32 %v1702, %v1745
    %v1875 = vmax.f32 %v1703, %v1746
    %v1876 = vmax.f32 %v1704, %v1747
    %v1877 = vmax.f32 %v1705, %v1748
    %v1878 = vmax.f32 %v1706, %v1749
    %v1879 = vmax.f32 %v1707, %v1750
    %v1880 = vmax.f32 %v1708, %v1751
    %v1881 = vmax.f32 %v1709, %v1752
    %v1882 = vmax.f32 %v1710, %v1753
    %v1883 = vmax.f32 %v1711, %v1754
    %v1884 = vmax.f32 %v1712, %v1755
    %v1885 = vmax.f32 %v1713, %v1756
    %v1886 = vmax.f32 %v1714, %v1757
    %v1887 = vmax.f32 %v1715, %v1758
    %v1888 = vmax.f32 %v1716, %v1759
    %v1889 = vmax.f32 %v1717, %v1760
    %v1890 = vmax.f32 %v1718, %v1761
    %v1891 = vmax.f32 %v1719, %v1762
    %v1892 = vmax.f32 %v1720, %v1763
    %v1893 = vmax.f32 %v1721, %v1764
    %v1894 = vmax.f32 %v1722, %v1765
    %v1895 = vmax.f32 %v1723, %v1766
    %v1896 = vmax.f32 %v1724, %v1767
    %v1897 = vmax.f32 %v1725, %v1768
    %v1898 = vmax.f32 %v1726, %v1769
    %v1899 = vmax.f32 %v1727, %v1770
    %v1900 = vmax.f32 %v1728, %v1771
    %v1901 = vmax.f32 %v1729, %v1772
    %v1902 = vmax.f32 %v1730, %v1773
    %v1903 = vmax.f32 %v1731, %v1774
    %v1904 = vmax.f32 %v1732, %v1775
    %v1905 = vmax.f32 %v1733, %v1776
    %v1906 = vmax.f32 %v1734, %v1777
    %v1907 = vmax.f32 %v1735, %v1778
    %v1908 = vmax.f32 %v1736, %v1779
    %v1909 = vmax.f32 %v1780, %v1823
    %v1910 = vmax.f32 %v1781, %v1824
    %v1911 = vmax.f32 %v1782, %v1825
    %v1912 = vmax.f32 %v1783, %v1826
    %v1913 = vmax.f32 %v1784, %v1827
    %v1914 = vmax.f32 %v1785, %v1828
    %v1915 = vmax.f32 %v1786, %v1829
    %v1916 = vmax.f32 %v1787, %v1830
    %v1917 = vmax.f32 %v1788, %v1831
    %v1918 = vmax.f32 %v1789, %v1832
    %v1919 = vmax.f32 %v1790, %v1833
    %v1920 = vmax.f32 %v1791, %v1834
    %v1921 = vmax.f32 %v1792, %v1835
    %v1922 = vmax.f32 %v1793, %v1836
    %v1923 = vmax.f32 %v1794, %v1837
    %v1924 = vmax.f32 %v1795, %v1838
    %v1925 = vmax.f32 %v1796, %v1839
    %v1926 = vmax.f32 %v1797, %v1840
    %v1927 = vmax.f32 %v1798, %v1841
    %v1928 = vmax.f32 %v1799, %v1842
    %v1929 = vmax.f32 %v1800, %v1843
    %v1930 = vmax.f32 %v1801, %v1844
    %v1931 = vmax.f32 %v1802, %v1845
    %v1932 = vmax.f32 %v1803, %v1846
    %v1933 = vmax.f32 %v1804, %v1847
    %v1934 = vmax.f32 %v1805, %v1848
    %v1935 = vmax.f32 %v1806, %v1849
    %v1936 = vmax.f32 %v1807, %v1850
    %v1937 = vmax.f32 %v1808, %v1851
    %v1938 = vmax.f32 %v1809, %v1852
    %v1939 = vmax.f32 %v1810, %v1853
    %v1940 = vmax.f32 %v1811, %v1854
    %v1941 = vmax.f32 %v1812, %v1855
    %v1942 = vmax.f32 %v1813, %v1856
    %v1943 = vmax.f32 %v1814, %v1857
    %v1944 = vmax.f32 %v1815, %v1858
    %v1945 = vmax.f32 %v1816, %v1859
    %v1946 = vmax.f32 %v1817, %v1860
    %v1947 = vmax.f32 %v1818, %v1861
    %v1948 = vmax.f32 %v1819, %v1862
    %v1949 = vmax.f32 %v1820, %v1863
    %v1950 = vmax.f32 %v1821, %v1864
    %v1951 = vmax.f32 %v1822, %v1865
    %v1952 = vmax.f32 %v1866, %v1909
    %v1953 = vmax.f32 %v1867, %v1910
    %v1954 = vmax.f32 %v1868, %v1911
    %v1955 = vmax.f32 %v1869, %v1912
    %v1956 = vmax.f32 %v1870, %v1913
    %v1957 = vmax.f32 %v1871, %v1914
    %v1958 = vmax.f32 %v1872, %v1915
    %v1959 = vmax.f32 %v1873, %v1916
    %v1960 = vmax.f32 %v1874, %v1917
    %v1961 = vmax.f32 %v1875, %v1918
    %v1962 = vmax.f32 %v1876, %v1919
    %v1963 = vmax.f32 %v1877, %v1920
    %v1964 = vmax.f32 %v1878, %v1921
    %v1965 = vmax.f32 %v1879, %v1922
    %v1966 = vmax.f32 %v1880, %v1923
    %v1967 = vmax.f32 %v1881, %v1924
    %v1968 = vmax.f32 %v1882, %v1925
    %v1969 = vmax.f32 %v1883, %v1926
    %v1970 = vmax.f32 %v1884, %v1927
    %v1971 = vmax.f32 %v1885, %v1928
    %v1972 = vmax.f32 %v1886, %v1929
    %v1973 = vmax.f32 %v1887, %v1930
    %v1974 = vmax.f32 %v1888, %v1931
    %v1975 = vmax.f32 %v1889, %v1932
    %v1976 = vmax.f32 %v1890, %v1933
    %v1977 = vmax.f32 %v1891, %v1934
    %v1978 = vmax.f32 %v1892, %v1935
    %v1979 = vmax.f32 %v1893, %v1936
    %v1980 = vmax.f32 %v1894, %v1937
    %v1981 = vmax.f32 %v1895, %v1938
    %v1982 = vmax.f32 %v1896, %v1939
    %v1983 = vmax.f32 %v1897, %v1940
    %v1984 = vmax.f32 %v1898, %v1941
    %v1985 = vmax.f32 %v1899, %v1942
    %v1986 = vmax.f32 %v1900, %v1943
    %v1987 = vmax.f32 %v1901, %v1944
    %v1988 = vmax.f32 %v1902, %v1945
    %v1989 = vmax.f32 %v1903, %v1946
    %v1990 = vmax.f32 %v1904, %v1947
    %v1991 = vmax.f32 %v1905, %v1948
    %v1992 = vmax.f32 %v1906, %v1949
    %v1993 = vmax.f32 %v1907, %v1950
    %v1994 = vmax.f32 %v1908, %v1951
    %v1995 = vpack.c.bf16 %v1953, %v1952
    %v1996 = vpack.c.bf16 %v1955, %v1954
    %v1997 = vpack.c.bf16 %v1957, %v1956
    %v1998 = vpack.c.bf16 %v1959, %v1958
    %v1999 = vpack.c.bf16 %v1961, %v1960
    %v2000 = vpack.c.bf16 %v1963, %v1962
    %v2001 = vpack.c.bf16 %v1965, %v1964
    %v2002 = vpack.c.bf16 %v1967, %v1966
    %v2003 = vpack.c.bf16 %v1969, %v1968
    %v2004 = vpack.c.bf16 %v1971, %v1970
    %v2005 = vpack.c.bf16 %v1973, %v1972
    %v2006 = vpack.c.bf16 %v1975, %v1974
    %v2007 = vpack.c.bf16 %v1977, %v1976
    %v2008 = vpack.c.bf16 %v1979, %v1978
    %v2009 = vpack.c.bf16 %v1981, %v1980
    %v2010 = vpack.c.bf16 %v1983, %v1982
    %v2011 = vpack.c.bf16 %v1985, %v1984
    %v2012 = vpack.c.bf16 %v1987, %v1986
    %v2013 = vpack.c.bf16 %v1989, %v1988
    %v2014 = vpack.c.bf16 %v1991, %v1990
    %v2015 = vpack.c.bf16 %v1993, %v1992
    %v2016 = vpack.c.bf16 %v1994, %v1994
    %v2017 = vld [vmem:[%s2] sm:$0xf]
    %v2018 = vld [vmem:[%s2 + $0x4] sm:$0xf]
    %v2019 = vld [vmem:[%s2 + $0x8] sm:$0xf]
    %v2020 = vld [vmem:[%s2 + $0xc] sm:$0xf]
    %v2021 = vperm.slane %v28, 0
    %v2026 = vunpack.c.l.b16 %v2017
    %v2027 = vunpack.c.l.b16 %v2018
    %v2028 = vunpack.c.l.b16 %v2019
    %v2029 = vunpack.c.l.b16 %v2020
    %v2030 = vpack.c.b16 %v2027, %v2026
    %v2031 = vpack.c.b16 %v2029, %v2028
    %vm2034 = vcmask 261120
    %v2036 = vsel %vm2034, %v1995, 0
    %v2039 = vsel %vm2034, %v1996, 0
    %v2042 = vsel %vm2034, %v1997, 0
    %v2045 = vsel %vm2034, %v1998, 0
    %v2048 = vsel %vm2034, %v1999, 0
    %v2051 = vsel %vm2034, %v2000, 0
    %v2054 = vsel %vm2034, %v2001, 0
    %v2057 = vsel %vm2034, %v2002, 0
    %v2060 = vsel %vm2034, %v2003, 0
    %v2063 = vsel %vm2034, %v2004, 0
    %v2066 = vsel %vm2034, %v2005, 0
    %v2069 = vsel %vm2034, %v2006, 0
    %v2072 = vsel %vm2034, %v2007, 0
    %v2075 = vsel %vm2034, %v2008, 0
    %v2078 = vsel %vm2034, %v2009, 0
    %v2081 = vsel %vm2034, %v2010, 0
    %v2084 = vsel %vm2034, %v2011, 0
    %v2087 = vsel %vm2034, %v2012, 0
    %v2090 = vsel %vm2034, %v2013, 0
    %v2093 = vsel %vm2034, %v2014, 0
    %v2096 = vsel %vm2034, %v2015, 0
    %v2099 = vsel %vm2034, %v2016, 0
    %2101 = vmatpush.bf16.msra.mxu0 0
    %2102 = vmatpush.bf16.msra.mxu0 0
    %2103 = vmatpush.bf16.msra.mxu0 0
    %2104 = vmatpush.bf16.msra.mxu0 0
    %2105 = vmatpush.bf16.msra.mxu0 0
    %2106 = vmatpush.bf16.msra.mxu0 0
    %2107 = vmatpush.bf16.msra.mxu0 %v2031
    %2108 = vmatpush.bf16.msra.mxu0 %v2030
    %2109 = vmatmul.bf16.gmra.mxu0 %v2036
    %v2110 = vpop.f32.mrf.mxu0
    %v2111 = vadd.f32 %v2021, %v2110
    %v2112 = vpop.f32.mrf.mxu0
    %v2113 = vadd.f32 %v2021, %v2112
    %2114 = vmatmul.bf16.gmra.mxu0 %v2039
    %v2115 = vpop.f32.mrf.mxu0
    %v2116 = vadd.f32 %v2021, %v2115
    %v2117 = vpop.f32.mrf.mxu0
    %v2118 = vadd.f32 %v2021, %v2117
    %2119 = vmatmul.bf16.gmra.mxu0 %v2042
    %v2120 = vpop.f32.mrf.mxu0
    %v2121 = vadd.f32 %v2021, %v2120
    %v2122 = vpop.f32.mrf.mxu0
    %v2123 = vadd.f32 %v2021, %v2122
    %2124 = vmatmul.bf16.gmra.mxu0 %v2045
    %v2125 = vpop.f32.mrf.mxu0
    %v2126 = vadd.f32 %v2021, %v2125
    %v2127 = vpop.f32.mrf.mxu0
    %v2128 = vadd.f32 %v2021, %v2127
    %2129 = vmatmul.bf16.gmra.mxu0 %v2048
    %v2130 = vpop.f32.mrf.mxu0
    %v2131 = vadd.f32 %v2021, %v2130
    %v2132 = vpop.f32.mrf.mxu0
    %v2133 = vadd.f32 %v2021, %v2132
    %2134 = vmatmul.bf16.gmra.mxu0 %v2051
    %v2135 = vpop.f32.mrf.mxu0
    %v2136 = vadd.f32 %v2021, %v2135
    %v2137 = vpop.f32.mrf.mxu0
    %v2138 = vadd.f32 %v2021, %v2137
    %2139 = vmatmul.bf16.gmra.mxu0 %v2054
    %v2140 = vpop.f32.mrf.mxu0
    %v2141 = vadd.f32 %v2021, %v2140
    %v2142 = vpop.f32.mrf.mxu0
    %v2143 = vadd.f32 %v2021, %v2142
    %2144 = vmatmul.bf16.gmra.mxu0 %v2057
    %v2145 = vpop.f32.mrf.mxu0
    %v2146 = vadd.f32 %v2021, %v2145
    %v2147 = vpop.f32.mrf.mxu0
    %v2148 = vadd.f32 %v2021, %v2147
    %2149 = vmatmul.bf16.gmra.mxu0 %v2060
    %v2150 = vpop.f32.mrf.mxu0
    %v2151 = vadd.f32 %v2021, %v2150
    %v2152 = vpop.f32.mrf.mxu0
    %v2153 = vadd.f32 %v2021, %v2152
    %2154 = vmatmul.bf16.gmra.mxu0 %v2063
    %v2155 = vpop.f32.mrf.mxu0
    %v2156 = vadd.f32 %v2021, %v2155
    %v2157 = vpop.f32.mrf.mxu0
    %v2158 = vadd.f32 %v2021, %v2157
    %2159 = vmatmul.bf16.gmra.mxu0 %v2066
    %v2160 = vpop.f32.mrf.mxu0
    %v2161 = vadd.f32 %v2021, %v2160
    %v2162 = vpop.f32.mrf.mxu0
    %v2163 = vadd.f32 %v2021, %v2162
    %2164 = vmatmul.bf16.gmra.mxu0 %v2069
    %v2165 = vpop.f32.mrf.mxu0
    %v2166 = vadd.f32 %v2021, %v2165
    %v2167 = vpop.f32.mrf.mxu0
    %v2168 = vadd.f32 %v2021, %v2167
    %2169 = vmatmul.bf16.gmra.mxu0 %v2072
    %v2170 = vpop.f32.mrf.mxu0
    %v2171 = vadd.f32 %v2021, %v2170
    %v2172 = vpop.f32.mrf.mxu0
    %v2173 = vadd.f32 %v2021, %v2172
    %2174 = vmatmul.bf16.gmra.mxu0 %v2075
    %v2175 = vpop.f32.mrf.mxu0
    %v2176 = vadd.f32 %v2021, %v2175
    %v2177 = vpop.f32.mrf.mxu0
    %v2178 = vadd.f32 %v2021, %v2177
    %2179 = vmatmul.bf16.gmra.mxu0 %v2078
    %v2180 = vpop.f32.mrf.mxu0
    %v2181 = vadd.f32 %v2021, %v2180
    %v2182 = vpop.f32.mrf.mxu0
    %v2183 = vadd.f32 %v2021, %v2182
    %2184 = vmatmul.bf16.gmra.mxu0 %v2081
    %v2185 = vpop.f32.mrf.mxu0
    %v2186 = vadd.f32 %v2021, %v2185
    %v2187 = vpop.f32.mrf.mxu0
    %v2188 = vadd.f32 %v2021, %v2187
    %2189 = vmatmul.bf16.gmra.mxu0 %v2084
    %v2190 = vpop.f32.mrf.mxu0
    %v2191 = vadd.f32 %v2021, %v2190
    %v2192 = vpop.f32.mrf.mxu0
    %v2193 = vadd.f32 %v2021, %v2192
    %2194 = vmatmul.bf16.gmra.mxu0 %v2087
    %v2195 = vpop.f32.mrf.mxu0
    %v2196 = vadd.f32 %v2021, %v2195
    %v2197 = vpop.f32.mrf.mxu0
    %v2198 = vadd.f32 %v2021, %v2197
    %2199 = vmatmul.bf16.gmra.mxu0 %v2090
    %v2200 = vpop.f32.mrf.mxu0
    %v2201 = vadd.f32 %v2021, %v2200
    %v2202 = vpop.f32.mrf.mxu0
    %v2203 = vadd.f32 %v2021, %v2202
    %2204 = vmatmul.bf16.gmra.mxu0 %v2093
    %v2205 = vpop.f32.mrf.mxu0
    %v2206 = vadd.f32 %v2021, %v2205
    %v2207 = vpop.f32.mrf.mxu0
    %v2208 = vadd.f32 %v2021, %v2207
    %2209 = vmatmul.bf16.gmra.mxu0 %v2096
    %v2210 = vpop.f32.mrf.mxu0
    %v2211 = vadd.f32 %v2021, %v2210
    %v2212 = vpop.f32.mrf.mxu0
    %v2213 = vadd.f32 %v2021, %v2212
    %2214 = vmatmul.bf16.gmra.mxu0 %v2099
    %v2215 = vpop.f32.mrf.mxu0
    %v2216 = vadd.f32 %v2021, %v2215
    %v2217 = vpop.f32.mrf.mxu0
    %2218 = vdwg.mxu0
    %v2219 = vmax.f32 %v2111, 0.0
    %v2220 = vmax.f32 %v2113, 0.0
    %v2221 = vmax.f32 %v2116, 0.0
    %v2222 = vmax.f32 %v2118, 0.0
    %v2223 = vmax.f32 %v2121, 0.0
    %v2224 = vmax.f32 %v2123, 0.0
    %v2225 = vmax.f32 %v2126, 0.0
    %v2226 = vmax.f32 %v2128, 0.0
    %v2227 = vmax.f32 %v2131, 0.0
    %v2228 = vmax.f32 %v2133, 0.0
    %v2229 = vmax.f32 %v2136, 0.0
    %v2230 = vmax.f32 %v2138, 0.0
    %v2231 = vmax.f32 %v2141, 0.0
    %v2232 = vmax.f32 %v2143, 0.0
    %v2233 = vmax.f32 %v2146, 0.0
    %v2234 = vmax.f32 %v2148, 0.0
    %v2235 = vmax.f32 %v2151, 0.0
    %v2236 = vmax.f32 %v2153, 0.0
    %v2237 = vmax.f32 %v2156, 0.0
    %v2238 = vmax.f32 %v2158, 0.0
    %v2239 = vmax.f32 %v2161, 0.0
    %v2240 = vmax.f32 %v2163, 0.0
    %v2241 = vmax.f32 %v2166, 0.0
    %v2242 = vmax.f32 %v2168, 0.0
    %v2243 = vmax.f32 %v2171, 0.0
    %v2244 = vmax.f32 %v2173, 0.0
    %v2245 = vmax.f32 %v2176, 0.0
    %v2246 = vmax.f32 %v2178, 0.0
    %v2247 = vmax.f32 %v2181, 0.0
    %v2248 = vmax.f32 %v2183, 0.0
    %v2249 = vmax.f32 %v2186, 0.0
    %v2250 = vmax.f32 %v2188, 0.0
    %v2251 = vmax.f32 %v2191, 0.0
    %v2252 = vmax.f32 %v2193, 0.0
    %v2253 = vmax.f32 %v2196, 0.0
    %v2254 = vmax.f32 %v2198, 0.0
    %v2255 = vmax.f32 %v2201, 0.0
    %v2256 = vmax.f32 %v2203, 0.0
    %v2257 = vmax.f32 %v2206, 0.0
    %v2258 = vmax.f32 %v2208, 0.0
    %v2259 = vmax.f32 %v2211, 0.0
    %v2260 = vmax.f32 %v2213, 0.0
    %v2261 = vmax.f32 %v2216, 0.0
    %2262 = vst.msk [vmem:[#allocation2] sm:$0xff] %vm2034, %v2219
    %2263 = vst.msk [vmem:[#allocation2 + $0x8] sm:$0xff] %vm2034, %v2220
    %2264 = vst.msk [vmem:[#allocation2 + $0x10] sm:$0xff] %vm2034, %v2221
    %2265 = vst.msk [vmem:[#allocation2 + $0x18] sm:$0xff] %vm2034, %v2222
    %2266 = vst.msk [vmem:[#allocation2 + $0x20] sm:$0xff] %vm2034, %v2223
    %2267 = vst.msk [vmem:[#allocation2 + $0x28] sm:$0xff] %vm2034, %v2224
    %2268 = vst.msk [vmem:[#allocation2 + $0x30] sm:$0xff] %vm2034, %v2225
    %2269 = vst.msk [vmem:[#allocation2 + $0x38] sm:$0xff] %vm2034, %v2226
    %2270 = vst.msk [vmem:[#allocation2 + $0x40] sm:$0xff] %vm2034, %v2227
    %2271 = vst.msk [vmem:[#allocation2 + $0x48] sm:$0xff] %vm2034, %v2228
    %2272 = vst.msk [vmem:[#allocation2 + $0x50] sm:$0xff] %vm2034, %v2229
    %2273 = vst.msk [vmem:[#allocation2 + $0x58] sm:$0xff] %vm2034, %v2230
    %2274 = vst.msk [vmem:[#allocation2 + $0x60] sm:$0xff] %vm2034, %v2231
    %2275 = vst.msk [vmem:[#allocation2 + $0x68] sm:$0xff] %vm2034, %v2232
    %2276 = vst.msk [vmem:[#allocation2 + $0x70] sm:$0xff] %vm2034, %v2233
    %2277 = vst.msk [vmem:[#allocation2 + $0x78] sm:$0xff] %vm2034, %v2234
    %2278 = vst.msk [vmem:[#allocation2 + $0x80] sm:$0xff] %vm2034, %v2235
    %2279 = vst.msk [vmem:[#allocation2 + $0x88] sm:$0xff] %vm2034, %v2236
    %2280 = vst.msk [vmem:[#allocation2 + $0x90] sm:$0xff] %vm2034, %v2237
    %2281 = vst.msk [vmem:[#allocation2 + $0x98] sm:$0xff] %vm2034, %v2238
    %2282 = vst.msk [vmem:[#allocation2 + $0xa0] sm:$0xff] %vm2034, %v2239
    %2283 = vst.msk [vmem:[#allocation2 + $0xa8] sm:$0xff] %vm2034, %v2240
    %2284 = vst.msk [vmem:[#allocation2 + $0xb0] sm:$0xff] %vm2034, %v2241
    %2285 = vst.msk [vmem:[#allocation2 + $0xb8] sm:$0xff] %vm2034, %v2242
    %2286 = vst.msk [vmem:[#allocation2 + $0xc0] sm:$0xff] %vm2034, %v2243
    %2287 = vst.msk [vmem:[#allocation2 + $0xc8] sm:$0xff] %vm2034, %v2244
    %2288 = vst.msk [vmem:[#allocation2 + $0xd0] sm:$0xff] %vm2034, %v2245
    %2289 = vst.msk [vmem:[#allocation2 + $0xd8] sm:$0xff] %vm2034, %v2246
    %2290 = vst.msk [vmem:[#allocation2 + $0xe0] sm:$0xff] %vm2034, %v2247
    %2291 = vst.msk [vmem:[#allocation2 + $0xe8] sm:$0xff] %vm2034, %v2248
    %2292 = vst.msk [vmem:[#allocation2 + $0xf0] sm:$0xff] %vm2034, %v2249
    %2293 = vst.msk [vmem:[#allocation2 + $0xf8] sm:$0xff] %vm2034, %v2250
    %2294 = vst.msk [vmem:[#allocation2 + $0x100] sm:$0xff] %vm2034, %v2251
    %2295 = vst.msk [vmem:[#allocation2 + $0x108] sm:$0xff] %vm2034, %v2252
    %2296 = vst.msk [vmem:[#allocation2 + $0x110] sm:$0xff] %vm2034, %v2253
    %2297 = vst.msk [vmem:[#allocation2 + $0x118] sm:$0xff] %vm2034, %v2254
    %2298 = vst.msk [vmem:[#allocation2 + $0x120] sm:$0xff] %vm2034, %v2255
    %2299 = vst.msk [vmem:[#allocation2 + $0x128] sm:$0xff] %vm2034, %v2256
    %2300 = vst.msk [vmem:[#allocation2 + $0x130] sm:$0xff] %vm2034, %v2257
    %2301 = vst.msk [vmem:[#allocation2 + $0x138] sm:$0xff] %vm2034, %v2258
    %2302 = vst.msk [vmem:[#allocation2 + $0x140] sm:$0xff] %vm2034, %v2259
    %2303 = vst.msk [vmem:[#allocation2 + $0x148] sm:$0xff] %vm2034, %v2260
    %2304 = vst.msk [vmem:[#allocation2 + $0x150] sm:$0xff] %vm2034, %v2261
    %v2305 = vld [vmem:[#allocation2] sm:$0xff]
    %v2306 = vld [vmem:[#allocation2 + $0x8] sm:$0xff]
    %v2307 = vld [vmem:[#allocation2 + $0x10] sm:$0xff]
    %v2308 = vld [vmem:[#allocation2 + $0x18] sm:$0xff]
    %v2309 = vld [vmem:[#allocation2 + $0x20] sm:$0xff]
    %v2310 = vld [vmem:[#allocation2 + $0x28] sm:$0xff]
    %v2311 = vld [vmem:[#allocation2 + $0x30] sm:$0xff]
    %v2312 = vld [vmem:[#allocation2 + $0x38] sm:$0xff]
    %v2313 = vld [vmem:[#allocation2 + $0x40] sm:$0xff]
    %v2314 = vld [vmem:[#allocation2 + $0x48] sm:$0xff]
    %v2315 = vld [vmem:[#allocation2 + $0x50] sm:$0xff]
    %v2316 = vld [vmem:[#allocation2 + $0x58] sm:$0xff]
    %v2317 = vld [vmem:[#allocation2 + $0x60] sm:$0xff]
    %v2318 = vld [vmem:[#allocation2 + $0x68] sm:$0xff]
    %v2319 = vld [vmem:[#allocation2 + $0x70] sm:$0xff]
    %v2320 = vld [vmem:[#allocation2 + $0x78] sm:$0xff]
    %v2321 = vld [vmem:[#allocation2 + $0x80] sm:$0xff]
    %v2322 = vld [vmem:[#allocation2 + $0x88] sm:$0xff]
    %v2323 = vld [vmem:[#allocation2 + $0x90] sm:$0xff]
    %v2324 = vld [vmem:[#allocation2 + $0x98] sm:$0xff]
    %v2325 = vld [vmem:[#allocation2 + $0xa0] sm:$0xff]
    %v2326 = vld [vmem:[#allocation2 + $0xa8] sm:$0xff]
    %v2327 = vld [vmem:[#allocation2 + $0xb0] sm:$0xff]
    %v2328 = vld [vmem:[#allocation2 + $0xb8] sm:$0xff]
    %v2329 = vld [vmem:[#allocation2 + $0xc0] sm:$0xff]
    %v2330 = vld [vmem:[#allocation2 + $0xc8] sm:$0xff]
    %v2331 = vld [vmem:[#allocation2 + $0xd0] sm:$0xff]
    %v2332 = vld [vmem:[#allocation2 + $0xd8] sm:$0xff]
    %v2333 = vld [vmem:[#allocation2 + $0xe0] sm:$0xff]
    %v2334 = vld [vmem:[#allocation2 + $0xe8] sm:$0xff]
    %v2335 = vld [vmem:[#allocation2 + $0xf0] sm:$0xff]
    %v2336 = vld [vmem:[#allocation2 + $0xf8] sm:$0xff]
    %v2337 = vld [vmem:[#allocation2 + $0x100] sm:$0xff]
    %v2338 = vld [vmem:[#allocation2 + $0x108] sm:$0xff]
    %v2339 = vld [vmem:[#allocation2 + $0x110] sm:$0xff]
    %v2340 = vld [vmem:[#allocation2 + $0x118] sm:$0xff]
    %v2341 = vld [vmem:[#allocation2 + $0x120] sm:$0xff]
    %v2342 = vld [vmem:[#allocation2 + $0x128] sm:$0xff]
    %v2343 = vld [vmem:[#allocation2 + $0x130] sm:$0x3f]
    %v2344 = vld [vmem:[#allocation2 + $0x1] sm:$0xff]
    %v2345 = vld [vmem:[#allocation2 + $0x9] sm:$0xff]
    %v2346 = vld [vmem:[#allocation2 + $0x11] sm:$0xff]
    %v2347 = vld [vmem:[#allocation2 + $0x19] sm:$0xff]
    %v2348 = vld [vmem:[#allocation2 + $0x21] sm:$0xff]
    %v2349 = vld [vmem:[#allocation2 + $0x29] sm:$0xff]
    %v2350 = vld [vmem:[#allocation2 + $0x31] sm:$0xff]
    %v2351 = vld [vmem:[#allocation2 + $0x39] sm:$0xff]
    %v2352 = vld [vmem:[#allocation2 + $0x41] sm:$0xff]
    %v2353 = vld [vmem:[#allocation2 + $0x49] sm:$0xff]
    %v2354 = vld [vmem:[#allocation2 + $0x51] sm:$0xff]
    %v2355 = vld [vmem:[#allocation2 + $0x59] sm:$0xff]
    %v2356 = vld [vmem:[#allocation2 + $0x61] sm:$0xff]
    %v2357 = vld [vmem:[#allocation2 + $0x69] sm:$0xff]
    %v2358 = vld [vmem:[#allocation2 + $0x71] sm:$0xff]
    %v2359 = vld [vmem:[#allocation2 + $0x79] sm:$0xff]
    %v2360 = vld [vmem:[#allocation2 + $0x81] sm:$0xff]
    %v2361 = vld [vmem:[#allocation2 + $0x89] sm:$0xff]
    %v2362 = vld [vmem:[#allocation2 + $0x91] sm:$0xff]
    %v2363 = vld [vmem:[#allocation2 + $0x99] sm:$0xff]
    %v2364 = vld [vmem:[#allocation2 + $0xa1] sm:$0xff]
    %v2365 = vld [vmem:[#allocation2 + $0xa9] sm:$0xff]
    %v2366 = vld [vmem:[#allocation2 + $0xb1] sm:$0xff]
    %v2367 = vld [vmem:[#allocation2 + $0xb9] sm:$0xff]
    %v2368 = vld [vmem:[#allocation2 + $0xc1] sm:$0xff]
    %v2369 = vld [vmem:[#allocation2 + $0xc9] sm:$0xff]
    %v2370 = vld [vmem:[#allocation2 + $0xd1] sm:$0xff]
    %v2371 = vld [vmem:[#allocation2 + $0xd9] sm:$0xff]
    %v2372 = vld [vmem:[#allocation2 + $0xe1] sm:$0xff]
    %v2373 = vld [vmem:[#allocation2 + $0xe9] sm:$0xff]
    %v2374 = vld [vmem:[#allocation2 + $0xf1] sm:$0xff]
    %v2375 = vld [vmem:[#allocation2 + $0xf9] sm:$0xff]
    %v2376 = vld [vmem:[#allocation2 + $0x101] sm:$0xff]
    %v2377 = vld [vmem:[#allocation2 + $0x109] sm:$0xff]
    %v2378 = vld [vmem:[#allocation2 + $0x111] sm:$0xff]
    %v2379 = vld [vmem:[#allocation2 + $0x119] sm:$0xff]
    %v2380 = vld [vmem:[#allocation2 + $0x121] sm:$0xff]
    %v2381 = vld [vmem:[#allocation2 + $0x129] sm:$0xff]
    %v2382 = vld [vmem:[#allocation2 + $0x131] sm:$0x3f]
    %v2383 = vld [vmem:[#allocation2 + $0x2] sm:$0xff]
    %v2384 = vld [vmem:[#allocation2 + $0xa] sm:$0xff]
    %v2385 = vld [vmem:[#allocation2 + $0x12] sm:$0xff]
    %v2386 = vld [vmem:[#allocation2 + $0x1a] sm:$0xff]
    %v2387 = vld [vmem:[#allocation2 + $0x22] sm:$0xff]
    %v2388 = vld [vmem:[#allocation2 + $0x2a] sm:$0xff]
    %v2389 = vld [vmem:[#allocation2 + $0x32] sm:$0xff]
    %v2390 = vld [vmem:[#allocation2 + $0x3a] sm:$0xff]
    %v2391 = vld [vmem:[#allocation2 + $0x42] sm:$0xff]
    %v2392 = vld [vmem:[#allocation2 + $0x4a] sm:$0xff]
    %v2393 = vld [vmem:[#allocation2 + $0x52] sm:$0xff]
    %v2394 = vld [vmem:[#allocation2 + $0x5a] sm:$0xff]
    %v2395 = vld [vmem:[#allocation2 + $0x62] sm:$0xff]
    %v2396 = vld [vmem:[#allocation2 + $0x6a] sm:$0xff]
    %v2397 = vld [vmem:[#allocation2 + $0x72] sm:$0xff]
    %v2398 = vld [vmem:[#allocation2 + $0x7a] sm:$0xff]
    %v2399 = vld [vmem:[#allocation2 + $0x82] sm:$0xff]
    %v2400 = vld [vmem:[#allocation2 + $0x8a] sm:$0xff]
    %v2401 = vld [vmem:[#allocation2 + $0x92] sm:$0xff]
    %v2402 = vld [vmem:[#allocation2 + $0x9a] sm:$0xff]
    %v2403 = vld [vmem:[#allocation2 + $0xa2] sm:$0xff]
    %v2404 = vld [vmem:[#allocation2 + $0xaa] sm:$0xff]
    %v2405 = vld [vmem:[#allocation2 + $0xb2] sm:$0xff]
    %v2406 = vld [vmem:[#allocation2 + $0xba] sm:$0xff]
    %v2407 = vld [vmem:[#allocation2 + $0xc2] sm:$0xff]
    %v2408 = vld [vmem:[#allocation2 + $0xca] sm:$0xff]
    %v2409 = vld [vmem:[#allocation2 + $0xd2] sm:$0xff]
    %v2410 = vld [vmem:[#allocation2 + $0xda] sm:$0xff]
    %v2411 = vld [vmem:[#allocation2 + $0xe2] sm:$0xff]
    %v2412 = vld [vmem:[#allocation2 + $0xea] sm:$0xff]
    %v2413 = vld [vmem:[#allocation2 + $0xf2] sm:$0xff]
    %v2414 = vld [vmem:[#allocation2 + $0xfa] sm:$0xff]
    %v2415 = vld [vmem:[#allocation2 + $0x102] sm:$0xff]
    %v2416 = vld [vmem:[#allocation2 + $0x10a] sm:$0xff]
    %v2417 = vld [vmem:[#allocation2 + $0x112] sm:$0xff]
    %v2418 = vld [vmem:[#allocation2 + $0x11a] sm:$0xff]
    %v2419 = vld [vmem:[#allocation2 + $0x122] sm:$0xff]
    %v2420 = vld [vmem:[#allocation2 + $0x12a] sm:$0xff]
    %v2421 = vld [vmem:[#allocation2 + $0x132] sm:$0x3f]
    %v2422 = vld [vmem:[#allocation2 + $0xd] sm:$0xff]
    %v2423 = vld [vmem:[#allocation2 + $0x15] sm:$0xff]
    %v2424 = vld [vmem:[#allocation2 + $0x1d] sm:$0xff]
    %v2425 = vld [vmem:[#allocation2 + $0x25] sm:$0xff]
    %v2426 = vld [vmem:[#allocation2 + $0x2d] sm:$0xff]
    %v2427 = vld [vmem:[#allocation2 + $0x35] sm:$0xff]
    %v2428 = vld [vmem:[#allocation2 + $0x3d] sm:$0xff]
    %v2429 = vld [vmem:[#allocation2 + $0x45] sm:$0xff]
    %v2430 = vld [vmem:[#allocation2 + $0x4d] sm:$0xff]
    %v2431 = vld [vmem:[#allocation2 + $0x55] sm:$0xff]
    %v2432 = vld [vmem:[#allocation2 + $0x5d] sm:$0xff]
    %v2433 = vld [vmem:[#allocation2 + $0x65] sm:$0xff]
    %v2434 = vld [vmem:[#allocation2 + $0x6d] sm:$0xff]
    %v2435 = vld [vmem:[#allocation2 + $0x75] sm:$0xff]
    %v2436 = vld [vmem:[#allocation2 + $0x7d] sm:$0xff]
    %v2437 = vld [vmem:[#allocation2 + $0x85] sm:$0xff]
    %v2438 = vld [vmem:[#allocation2 + $0x8d] sm:$0xff]
    %v2439 = vld [vmem:[#allocation2 + $0x95] sm:$0xff]
    %v2440 = vld [vmem:[#allocation2 + $0x9d] sm:$0xff]
    %v2441 = vld [vmem:[#allocation2 + $0xa5] sm:$0xff]
    %v2442 = vld [vmem:[#allocation2 + $0xad] sm:$0xff]
    %v2443 = vld [vmem:[#allocation2 + $0xb5] sm:$0xff]
    %v2444 = vld [vmem:[#allocation2 + $0xbd] sm:$0xff]
    %v2445 = vld [vmem:[#allocation2 + $0xc5] sm:$0xff]
    %v2446 = vld [vmem:[#allocation2 + $0xcd] sm:$0xff]
    %v2447 = vld [vmem:[#allocation2 + $0xd5] sm:$0xff]
    %v2448 = vld [vmem:[#allocation2 + $0xdd] sm:$0xff]
    %v2449 = vld [vmem:[#allocation2 + $0xe5] sm:$0xff]
    %v2450 = vld [vmem:[#allocation2 + $0xed] sm:$0xff]
    %v2451 = vld [vmem:[#allocation2 + $0xf5] sm:$0xff]
    %v2452 = vld [vmem:[#allocation2 + $0xfd] sm:$0xff]
    %v2453 = vld [vmem:[#allocation2 + $0x105] sm:$0xff]
    %v2454 = vld [vmem:[#allocation2 + $0x10d] sm:$0xff]
    %v2455 = vld [vmem:[#allocation2 + $0x115] sm:$0xff]
    %v2456 = vld [vmem:[#allocation2 + $0x11d] sm:$0xff]
    %v2457 = vld [vmem:[#allocation2 + $0x125] sm:$0xff]
    %v2458 = vld [vmem:[#allocation2 + $0x12d] sm:$0xff]
    %v2459 = vld [vmem:[#allocation2 + $0x135] sm:$0xff]
    %v2460 = vld [vmem:[#allocation2 + $0x13d] sm:$0x3f]
    %v2461 = vld [vmem:[#allocation2 + $0xe] sm:$0xff]
    %v2462 = vld [vmem:[#allocation2 + $0x16] sm:$0xff]
    %v2463 = vld [vmem:[#allocation2 + $0x1e] sm:$0xff]
    %v2464 = vld [vmem:[#allocation2 + $0x26] sm:$0xff]
    %v2465 = vld [vmem:[#allocation2 + $0x2e] sm:$0xff]
    %v2466 = vld [vmem:[#allocation2 + $0x36] sm:$0xff]
    %v2467 = vld [vmem:[#allocation2 + $0x3e] sm:$0xff]
    %v2468 = vld [vmem:[#allocation2 + $0x46] sm:$0xff]
    %v2469 = vld [vmem:[#allocation2 + $0x4e] sm:$0xff]
    %v2470 = vld [vmem:[#allocation2 + $0x56] sm:$0xff]
    %v2471 = vld [vmem:[#allocation2 + $0x5e] sm:$0xff]
    %v2472 = vld [vmem:[#allocation2 + $0x66] sm:$0xff]
    %v2473 = vld [vmem:[#allocation2 + $0x6e] sm:$0xff]
    %v2474 = vld [vmem:[#allocation2 + $0x76] sm:$0xff]
    %v2475 = vld [vmem:[#allocation2 + $0x7e] sm:$0xff]
    %v2476 = vld [vmem:[#allocation2 + $0x86] sm:$0xff]
    %v2477 = vld [vmem:[#allocation2 + $0x8e] sm:$0xff]
    %v2478 = vld [vmem:[#allocation2 + $0x96] sm:$0xff]
    %v2479 = vld [vmem:[#allocation2 + $0x9e] sm:$0xff]
    %v2480 = vld [vmem:[#allocation2 + $0xa6] sm:$0xff]
    %v2481 = vld [vmem:[#allocation2 + $0xae] sm:$0xff]
    %v2482 = vld [vmem:[#allocation2 + $0xb6] sm:$0xff]
    %v2483 = vld [vmem:[#allocation2 + $0xbe] sm:$0xff]
    %v2484 = vld [vmem:[#allocation2 + $0xc6] sm:$0xff]
    %v2485 = vld [vmem:[#allocation2 + $0xce] sm:$0xff]
    %v2486 = vld [vmem:[#allocation2 + $0xd6] sm:$0xff]
    %v2487 = vld [vmem:[#allocation2 + $0xde] sm:$0xff]
    %v2488 = vld [vmem:[#allocation2 + $0xe6] sm:$0xff]
    %v2489 = vld [vmem:[#allocation2 + $0xee] sm:$0xff]
    %v2490 = vld [vmem:[#allocation2 + $0xf6] sm:$0xff]
    %v2491 = vld [vmem:[#allocation2 + $0xfe] sm:$0xff]
    %v2492 = vld [vmem:[#allocation2 + $0x106] sm:$0xff]
    %v2493 = vld [vmem:[#allocation2 + $0x10e] sm:$0xff]
    %v2494 = vld [vmem:[#allocation2 + $0x116] sm:$0xff]
    %v2495 = vld [vmem:[#allocation2 + $0x11e] sm:$0xff]
    %v2496 = vld [vmem:[#allocation2 + $0x126] sm:$0xff]
    %v2497 = vld [vmem:[#allocation2 + $0x12e] sm:$0xff]
    %v2498 = vld [vmem:[#allocation2 + $0x136] sm:$0xff]
    %v2499 = vld [vmem:[#allocation2 + $0x13e] sm:$0x3f]
    %v2500 = vld [vmem:[#allocation2 + $0xf] sm:$0xff]
    %v2501 = vld [vmem:[#allocation2 + $0x17] sm:$0xff]
    %v2502 = vld [vmem:[#allocation2 + $0x1f] sm:$0xff]
    %v2503 = vld [vmem:[#allocation2 + $0x27] sm:$0xff]
    %v2504 = vld [vmem:[#allocation2 + $0x2f] sm:$0xff]
    %v2505 = vld [vmem:[#allocation2 + $0x37] sm:$0xff]
    %v2506 = vld [vmem:[#allocation2 + $0x3f] sm:$0xff]
    %v2507 = vld [vmem:[#allocation2 + $0x47] sm:$0xff]
    %v2508 = vld [vmem:[#allocation2 + $0x4f] sm:$0xff]
    %v2509 = vld [vmem:[#allocation2 + $0x57] sm:$0xff]
    %v2510 = vld [vmem:[#allocation2 + $0x5f] sm:$0xff]
    %v2511 = vld [vmem:[#allocation2 + $0x67] sm:$0xff]
    %v2512 = vld [vmem:[#allocation2 + $0x6f] sm:$0xff]
    %v2513 = vld [vmem:[#allocation2 + $0x77] sm:$0xff]
    %v2514 = vld [vmem:[#allocation2 + $0x7f] sm:$0xff]
    %v2515 = vld [vmem:[#allocation2 + $0x87] sm:$0xff]
    %v2516 = vld [vmem:[#allocation2 + $0x8f] sm:$0xff]
    %v2517 = vld [vmem:[#allocation2 + $0x97] sm:$0xff]
    %v2518 = vld [vmem:[#allocation2 + $0x9f] sm:$0xff]
    %v2519 = vld [vmem:[#allocation2 + $0xa7] sm:$0xff]
    %v2520 = vld [vmem:[#allocation2 + $0xaf] sm:$0xff]
    %v2521 = vld [vmem:[#allocation2 + $0xb7] sm:$0xff]
    %v2522 = vld [vmem:[#allocation2 + $0xbf] sm:$0xff]
    %v2523 = vld [vmem:[#allocation2 + $0xc7] sm:$0xff]
    %v2524 = vld [vmem:[#allocation2 + $0xcf] sm:$0xff]
    %v2525 = vld [vmem:[#allocation2 + $0xd7] sm:$0xff]
    %v2526 = vld [vmem:[#allocation2 + $0xdf] sm:$0xff]
    %v2527 = vld [vmem:[#allocation2 + $0xe7] sm:$0xff]
    %v2528 = vld [vmem:[#allocation2 + $0xef] sm:$0xff]
    %v2529 = vld [vmem:[#allocation2 + $0xf7] sm:$0xff]
    %v2530 = vld [vmem:[#allocation2 + $0xff] sm:$0xff]
    %v2531 = vld [vmem:[#allocation2 + $0x107] sm:$0xff]
    %v2532 = vld [vmem:[#allocation2 + $0x10f] sm:$0xff]
    %v2533 = vld [vmem:[#allocation2 + $0x117] sm:$0xff]
    %v2534 = vld [vmem:[#allocation2 + $0x11f] sm:$0xff]
    %v2535 = vld [vmem:[#allocation2 + $0x127] sm:$0xff]
    %v2536 = vld [vmem:[#allocation2 + $0x12f] sm:$0xff]
    %v2537 = vld [vmem:[#allocation2 + $0x137] sm:$0xff]
    %v2538 = vld [vmem:[#allocation2 + $0x13f] sm:$0x3f]
    %v2539 = vld [vmem:[#allocation2 + $0x132] sm:$0xff]
    %v2540 = vld [vmem:[#allocation2 + $0x13a] sm:$0xff]
    %v2541 = vld [vmem:[#allocation2 + $0x142] sm:$0xff]
    %v2542 = vld [vmem:[#allocation2 + $0x14a] sm:$0x3f]
    %v2543 = vld [vmem:[#allocation2 + $0x1b] sm:$0xff]
    %v2544 = vld [vmem:[#allocation2 + $0x23] sm:$0xff]
    %v2545 = vld [vmem:[#allocation2 + $0x2b] sm:$0xff]
    %v2546 = vld [vmem:[#allocation2 + $0x33] sm:$0xff]
    %v2547 = vld [vmem:[#allocation2 + $0x3b] sm:$0xff]
    %v2548 = vld [vmem:[#allocation2 + $0x43] sm:$0xff]
    %v2549 = vld [vmem:[#allocation2 + $0x4b] sm:$0xff]
    %v2550 = vld [vmem:[#allocation2 + $0x53] sm:$0xff]
    %v2551 = vld [vmem:[#allocation2 + $0x5b] sm:$0xff]
    %v2552 = vld [vmem:[#allocation2 + $0x63] sm:$0xff]
    %v2553 = vld [vmem:[#allocation2 + $0x6b] sm:$0xff]
    %v2554 = vld [vmem:[#allocation2 + $0x73] sm:$0xff]
    %v2555 = vld [vmem:[#allocation2 + $0x7b] sm:$0xff]
    %v2556 = vld [vmem:[#allocation2 + $0x83] sm:$0xff]
    %v2557 = vld [vmem:[#allocation2 + $0x8b] sm:$0xff]
    %v2558 = vld [vmem:[#allocation2 + $0x93] sm:$0xff]
    %v2559 = vld [vmem:[#allocation2 + $0x9b] sm:$0xff]
    %v2560 = vld [vmem:[#allocation2 + $0xa3] sm:$0xff]
    %v2561 = vld [vmem:[#allocation2 + $0xab] sm:$0xff]
    %v2562 = vld [vmem:[#allocation2 + $0xb3] sm:$0xff]
    %v2563 = vld [vmem:[#allocation2 + $0xbb] sm:$0xff]
    %v2564 = vld [vmem:[#allocation2 + $0xc3] sm:$0xff]
    %v2565 = vld [vmem:[#allocation2 + $0xcb] sm:$0xff]
    %v2566 = vld [vmem:[#allocation2 + $0xd3] sm:$0xff]
    %v2567 = vld [vmem:[#allocation2 + $0xdb] sm:$0xff]
    %v2568 = vld [vmem:[#allocation2 + $0xe3] sm:$0xff]
    %v2569 = vld [vmem:[#allocation2 + $0xeb] sm:$0xff]
    %v2570 = vld [vmem:[#allocation2 + $0xf3] sm:$0xff]
    %v2571 = vld [vmem:[#allocation2 + $0xfb] sm:$0xff]
    %v2572 = vld [vmem:[#allocation2 + $0x103] sm:$0xff]
    %v2573 = vld [vmem:[#allocation2 + $0x10b] sm:$0xff]
    %v2574 = vld [vmem:[#allocation2 + $0x113] sm:$0xff]
    %v2575 = vld [vmem:[#allocation2 + $0x11b] sm:$0xff]
    %v2576 = vld [vmem:[#allocation2 + $0x123] sm:$0xff]
    %v2577 = vld [vmem:[#allocation2 + $0x12b] sm:$0xff]
    %v2578 = vld [vmem:[#allocation2 + $0x133] sm:$0xff]
    %v2579 = vld [vmem:[#allocation2 + $0x13b] sm:$0xff]
    %v2580 = vld [vmem:[#allocation2 + $0x143] sm:$0xff]
    %v2581 = vld [vmem:[#allocation2 + $0x14b] sm:$0x3f]
    %v2582 = vld [vmem:[#allocation2 + $0x1c] sm:$0xff]
    %v2583 = vld [vmem:[#allocation2 + $0x24] sm:$0xff]
    %v2584 = vld [vmem:[#allocation2 + $0x2c] sm:$0xff]
    %v2585 = vld [vmem:[#allocation2 + $0x34] sm:$0xff]
    %v2586 = vld [vmem:[#allocation2 + $0x3c] sm:$0xff]
    %v2587 = vld [vmem:[#allocation2 + $0x44] sm:$0xff]
    %v2588 = vld [vmem:[#allocation2 + $0x4c] sm:$0xff]
    %v2589 = vld [vmem:[#allocation2 + $0x54] sm:$0xff]
    %v2590 = vld [vmem:[#allocation2 + $0x5c] sm:$0xff]
    %v2591 = vld [vmem:[#allocation2 + $0x64] sm:$0xff]
    %v2592 = vld [vmem:[#allocation2 + $0x6c] sm:$0xff]
    %v2593 = vld [vmem:[#allocation2 + $0x74] sm:$0xff]
    %v2594 = vld [vmem:[#allocation2 + $0x7c] sm:$0xff]
    %v2595 = vld [vmem:[#allocation2 + $0x84] sm:$0xff]
    %v2596 = vld [vmem:[#allocation2 + $0x8c] sm:$0xff]
    %v2597 = vld [vmem:[#allocation2 + $0x94] sm:$0xff]
    %v2598 = vld [vmem:[#allocation2 + $0x9c] sm:$0xff]
    %v2599 = vld [vmem:[#allocation2 + $0xa4] sm:$0xff]
    %v2600 = vld [vmem:[#allocation2 + $0xac] sm:$0xff]
    %v2601 = vld [vmem:[#allocation2 + $0xb4] sm:$0xff]
    %v2602 = vld [vmem:[#allocation2 + $0xbc] sm:$0xff]
    %v2603 = vld [vmem:[#allocation2 + $0xc4] sm:$0xff]
    %v2604 = vld [vmem:[#allocation2 + $0xcc] sm:$0xff]
    %v2605 = vld [vmem:[#allocation2 + $0xd4] sm:$0xff]
    %v2606 = vld [vmem:[#allocation2 + $0xdc] sm:$0xff]
    %v2607 = vld [vmem:[#allocation2 + $0xe4] sm:$0xff]
    %v2608 = vld [vmem:[#allocation2 + $0xec] sm:$0xff]
    %v2609 = vld [vmem:[#allocation2 + $0xf4] sm:$0xff]
    %v2610 = vld [vmem:[#allocation2 + $0xfc] sm:$0xff]
    %v2611 = vld [vmem:[#allocation2 + $0x104] sm:$0xff]
    %v2612 = vld [vmem:[#allocation2 + $0x10c] sm:$0xff]
    %v2613 = vld [vmem:[#allocation2 + $0x114] sm:$0xff]
    %v2614 = vld [vmem:[#allocation2 + $0x11c] sm:$0xff]
    %v2615 = vld [vmem:[#allocation2 + $0x124] sm:$0xff]
    %v2616 = vld [vmem:[#allocation2 + $0x12c] sm:$0xff]
    %v2617 = vld [vmem:[#allocation2 + $0x134] sm:$0xff]
    %v2618 = vld [vmem:[#allocation2 + $0x13c] sm:$0xff]
    %v2619 = vld [vmem:[#allocation2 + $0x144] sm:$0xff]
    %v2620 = vld [vmem:[#allocation2 + $0x14c] sm:$0x3f]
    %2660 = vrot.lane.b32.xlu0 %v2344, 32
    %v2661 = vpop.permute.xlu0 %2660
    %2662 = vrot.lane.b32.xlu0 %v2345, 32
    %v2663 = vpop.permute.xlu0 %2662
    %2664 = vrot.lane.b32.xlu0 %v2346, 32
    %v2665 = vpop.permute.xlu0 %2664
    %2666 = vrot.lane.b32.xlu0 %v2347, 32
    %v2667 = vpop.permute.xlu0 %2666
    %2668 = vrot.lane.b32.xlu0 %v2348, 32
    %v2669 = vpop.permute.xlu0 %2668
    %2670 = vrot.lane.b32.xlu0 %v2349, 32
    %v2671 = vpop.permute.xlu0 %2670
    %2672 = vrot.lane.b32.xlu0 %v2350, 32
    %v2673 = vpop.permute.xlu0 %2672
    %2674 = vrot.lane.b32.xlu0 %v2351, 32
    %v2675 = vpop.permute.xlu0 %2674
    %2676 = vrot.lane.b32.xlu0 %v2352, 32
    %v2677 = vpop.permute.xlu0 %2676
    %2678 = vrot.lane.b32.xlu0 %v2353, 32
    %v2679 = vpop.permute.xlu0 %2678
    %2680 = vrot.lane.b32.xlu0 %v2354, 32
    %v2681 = vpop.permute.xlu0 %2680
    %2682 = vrot.lane.b32.xlu0 %v2355, 32
    %v2683 = vpop.permute.xlu0 %2682
    %2684 = vrot.lane.b32.xlu0 %v2356, 32
    %v2685 = vpop.permute.xlu0 %2684
    %2686 = vrot.lane.b32.xlu0 %v2357, 32
    %v2687 = vpop.permute.xlu0 %2686
    %2688 = vrot.lane.b32.xlu0 %v2358, 32
    %v2689 = vpop.permute.xlu0 %2688
    %2690 = vrot.lane.b32.xlu0 %v2359, 32
    %v2691 = vpop.permute.xlu0 %2690
    %2692 = vrot.lane.b32.xlu0 %v2360, 32
    %v2693 = vpop.permute.xlu0 %2692
    %2694 = vrot.lane.b32.xlu0 %v2361, 32
    %v2695 = vpop.permute.xlu0 %2694
    %2696 = vrot.lane.b32.xlu0 %v2362, 32
    %v2697 = vpop.permute.xlu0 %2696
    %2698 = vrot.lane.b32.xlu0 %v2363, 32
    %v2699 = vpop.permute.xlu0 %2698
    %2700 = vrot.lane.b32.xlu0 %v2364, 32
    %v2701 = vpop.permute.xlu0 %2700
    %2702 = vrot.lane.b32.xlu0 %v2365, 32
    %v2703 = vpop.permute.xlu0 %2702
    %2704 = vrot.lane.b32.xlu0 %v2366, 32
    %v2705 = vpop.permute.xlu0 %2704
    %2706 = vrot.lane.b32.xlu0 %v2367, 32
    %v2707 = vpop.permute.xlu0 %2706
    %2708 = vrot.lane.b32.xlu0 %v2368, 32
    %v2709 = vpop.permute.xlu0 %2708
    %2710 = vrot.lane.b32.xlu0 %v2369, 32
    %v2711 = vpop.permute.xlu0 %2710
    %2712 = vrot.lane.b32.xlu0 %v2370, 32
    %v2713 = vpop.permute.xlu0 %2712
    %2714 = vrot.lane.b32.xlu0 %v2371, 32
    %v2715 = vpop.permute.xlu0 %2714
    %2716 = vrot.lane.b32.xlu0 %v2372, 32
    %v2717 = vpop.permute.xlu0 %2716
    %2718 = vrot.lane.b32.xlu0 %v2373, 32
    %v2719 = vpop.permute.xlu0 %2718
    %2720 = vrot.lane.b32.xlu0 %v2374, 32
    %v2721 = vpop.permute.xlu0 %2720
    %2722 = vrot.lane.b32.xlu0 %v2375, 32
    %v2723 = vpop.permute.xlu0 %2722
    %2724 = vrot.lane.b32.xlu0 %v2376, 32
    %v2725 = vpop.permute.xlu0 %2724
    %2726 = vrot.lane.b32.xlu0 %v2377, 32
    %v2727 = vpop.permute.xlu0 %2726
    %2728 = vrot.lane.b32.xlu0 %v2378, 32
    %v2729 = vpop.permute.xlu0 %2728
    %2730 = vrot.lane.b32.xlu0 %v2379, 32
    %v2731 = vpop.permute.xlu0 %2730
    %2732 = vrot.lane.b32.xlu0 %v2380, 32
    %v2733 = vpop.permute.xlu0 %2732
    %2734 = vrot.lane.b32.xlu0 %v2381, 32
    %v2735 = vpop.permute.xlu0 %2734
    %2736 = vrot.lane.b32.xlu0 %v2382, 32
    %v2737 = vpop.permute.xlu0 %2736
    %2816 = vrot.lane.b32.xlu0 %v2383, 64
    %v2817 = vpop.permute.xlu0 %2816
    %2818 = vrot.lane.b32.xlu0 %v2384, 64
    %v2819 = vpop.permute.xlu0 %2818
    %2820 = vrot.lane.b32.xlu0 %v2385, 64
    %v2821 = vpop.permute.xlu0 %2820
    %2822 = vrot.lane.b32.xlu0 %v2386, 64
    %v2823 = vpop.permute.xlu0 %2822
    %2824 = vrot.lane.b32.xlu0 %v2387, 64
    %v2825 = vpop.permute.xlu0 %2824
    %2826 = vrot.lane.b32.xlu0 %v2388, 64
    %v2827 = vpop.permute.xlu0 %2826
    %2828 = vrot.lane.b32.xlu0 %v2389, 64
    %v2829 = vpop.permute.xlu0 %2828
    %2830 = vrot.lane.b32.xlu0 %v2390, 64
    %v2831 = vpop.permute.xlu0 %2830
    %2832 = vrot.lane.b32.xlu0 %v2391, 64
    %v2833 = vpop.permute.xlu0 %2832
    %2834 = vrot.lane.b32.xlu0 %v2392, 64
    %v2835 = vpop.permute.xlu0 %2834
    %2836 = vrot.lane.b32.xlu0 %v2393, 64
    %v2837 = vpop.permute.xlu0 %2836
    %2838 = vrot.lane.b32.xlu0 %v2394, 64
    %v2839 = vpop.permute.xlu0 %2838
    %2840 = vrot.lane.b32.xlu0 %v2395, 64
    %v2841 = vpop.permute.xlu0 %2840
    %2842 = vrot.lane.b32.xlu0 %v2396, 64
    %v2843 = vpop.permute.xlu0 %2842
    %2844 = vrot.lane.b32.xlu0 %v2397, 64
    %v2845 = vpop.permute.xlu0 %2844
    %2846 = vrot.lane.b32.xlu0 %v2398, 64
    %v2847 = vpop.permute.xlu0 %2846
    %2848 = vrot.lane.b32.xlu0 %v2399, 64
    %v2849 = vpop.permute.xlu0 %2848
    %2850 = vrot.lane.b32.xlu0 %v2400, 64
    %v2851 = vpop.permute.xlu0 %2850
    %2852 = vrot.lane.b32.xlu0 %v2401, 64
    %v2853 = vpop.permute.xlu0 %2852
    %2854 = vrot.lane.b32.xlu0 %v2402, 64
    %v2855 = vpop.permute.xlu0 %2854
    %2856 = vrot.lane.b32.xlu0 %v2403, 64
    %v2857 = vpop.permute.xlu0 %2856
    %2858 = vrot.lane.b32.xlu0 %v2404, 64
    %v2859 = vpop.permute.xlu0 %2858
    %2860 = vrot.lane.b32.xlu0 %v2405, 64
    %v2861 = vpop.permute.xlu0 %2860
    %2862 = vrot.lane.b32.xlu0 %v2406, 64
    %v2863 = vpop.permute.xlu0 %2862
    %2864 = vrot.lane.b32.xlu0 %v2407, 64
    %v2865 = vpop.permute.xlu0 %2864
    %2866 = vrot.lane.b32.xlu0 %v2408, 64
    %v2867 = vpop.permute.xlu0 %2866
    %2868 = vrot.lane.b32.xlu0 %v2409, 64
    %v2869 = vpop.permute.xlu0 %2868
    %2870 = vrot.lane.b32.xlu0 %v2410, 64
    %v2871 = vpop.permute.xlu0 %2870
    %2872 = vrot.lane.b32.xlu0 %v2411, 64
    %v2873 = vpop.permute.xlu0 %2872
    %2874 = vrot.lane.b32.xlu0 %v2412, 64
    %v2875 = vpop.permute.xlu0 %2874
    %2876 = vrot.lane.b32.xlu0 %v2413, 64
    %v2877 = vpop.permute.xlu0 %2876
    %2878 = vrot.lane.b32.xlu0 %v2414, 64
    %v2879 = vpop.permute.xlu0 %2878
    %2880 = vrot.lane.b32.xlu0 %v2415, 64
    %v2881 = vpop.permute.xlu0 %2880
    %2882 = vrot.lane.b32.xlu0 %v2416, 64
    %v2883 = vpop.permute.xlu0 %2882
    %2884 = vrot.lane.b32.xlu0 %v2417, 64
    %v2885 = vpop.permute.xlu0 %2884
    %2886 = vrot.lane.b32.xlu0 %v2418, 64
    %v2887 = vpop.permute.xlu0 %2886
    %2888 = vrot.lane.b32.xlu0 %v2419, 64
    %v2889 = vpop.permute.xlu0 %2888
    %2890 = vrot.lane.b32.xlu0 %v2420, 64
    %v2891 = vpop.permute.xlu0 %2890
    %2892 = vrot.lane.b32.xlu0 %v2421, 64
    %v2893 = vpop.permute.xlu0 %2892
    %2972 = vrot.lane.b32.xlu0 %v2422, 96
    %v2973 = vpop.permute.xlu0 %2972
    %2974 = vrot.lane.b32.xlu0 %v2423, 96
    %v2975 = vpop.permute.xlu0 %2974
    %2976 = vrot.lane.b32.xlu0 %v2424, 96
    %v2977 = vpop.permute.xlu0 %2976
    %2978 = vrot.lane.b32.xlu0 %v2425, 96
    %v2979 = vpop.permute.xlu0 %2978
    %2980 = vrot.lane.b32.xlu0 %v2426, 96
    %v2981 = vpop.permute.xlu0 %2980
    %2982 = vrot.lane.b32.xlu0 %v2427, 96
    %v2983 = vpop.permute.xlu0 %2982
    %2984 = vrot.lane.b32.xlu0 %v2428, 96
    %v2985 = vpop.permute.xlu0 %2984
    %2986 = vrot.lane.b32.xlu0 %v2429, 96
    %v2987 = vpop.permute.xlu0 %2986
    %2988 = vrot.lane.b32.xlu0 %v2430, 96
    %v2989 = vpop.permute.xlu0 %2988
    %2990 = vrot.lane.b32.xlu0 %v2431, 96
    %v2991 = vpop.permute.xlu0 %2990
    %2992 = vrot.lane.b32.xlu0 %v2432, 96
    %v2993 = vpop.permute.xlu0 %2992
    %2994 = vrot.lane.b32.xlu0 %v2433, 96
    %v2995 = vpop.permute.xlu0 %2994
    %2996 = vrot.lane.b32.xlu0 %v2434, 96
    %v2997 = vpop.permute.xlu0 %2996
    %2998 = vrot.lane.b32.xlu0 %v2435, 96
    %v2999 = vpop.permute.xlu0 %2998
    %3000 = vrot.lane.b32.xlu0 %v2436, 96
    %v3001 = vpop.permute.xlu0 %3000
    %3002 = vrot.lane.b32.xlu0 %v2437, 96
    %v3003 = vpop.permute.xlu0 %3002
    %3004 = vrot.lane.b32.xlu0 %v2438, 96
    %v3005 = vpop.permute.xlu0 %3004
    %3006 = vrot.lane.b32.xlu0 %v2439, 96
    %v3007 = vpop.permute.xlu0 %3006
    %3008 = vrot.lane.b32.xlu0 %v2440, 96
    %v3009 = vpop.permute.xlu0 %3008
    %3010 = vrot.lane.b32.xlu0 %v2441, 96
    %v3011 = vpop.permute.xlu0 %3010
    %3012 = vrot.lane.b32.xlu0 %v2442, 96
    %v3013 = vpop.permute.xlu0 %3012
    %3014 = vrot.lane.b32.xlu0 %v2443, 96
    %v3015 = vpop.permute.xlu0 %3014
    %3016 = vrot.lane.b32.xlu0 %v2444, 96
    %v3017 = vpop.permute.xlu0 %3016
    %3018 = vrot.lane.b32.xlu0 %v2445, 96
    %v3019 = vpop.permute.xlu0 %3018
    %3020 = vrot.lane.b32.xlu0 %v2446, 96
    %v3021 = vpop.permute.xlu0 %3020
    %3022 = vrot.lane.b32.xlu0 %v2447, 96
    %v3023 = vpop.permute.xlu0 %3022
    %3024 = vrot.lane.b32.xlu0 %v2448, 96
    %v3025 = vpop.permute.xlu0 %3024
    %3026 = vrot.lane.b32.xlu0 %v2449, 96
    %v3027 = vpop.permute.xlu0 %3026
    %3028 = vrot.lane.b32.xlu0 %v2450, 96
    %v3029 = vpop.permute.xlu0 %3028
    %3030 = vrot.lane.b32.xlu0 %v2451, 96
    %v3031 = vpop.permute.xlu0 %3030
    %3032 = vrot.lane.b32.xlu0 %v2452, 96
    %v3033 = vpop.permute.xlu0 %3032
    %3034 = vrot.lane.b32.xlu0 %v2453, 96
    %v3035 = vpop.permute.xlu0 %3034
    %3036 = vrot.lane.b32.xlu0 %v2454, 96
    %v3037 = vpop.permute.xlu0 %3036
    %3038 = vrot.lane.b32.xlu0 %v2455, 96
    %v3039 = vpop.permute.xlu0 %3038
    %3040 = vrot.lane.b32.xlu0 %v2456, 96
    %v3041 = vpop.permute.xlu0 %3040
    %3042 = vrot.lane.b32.xlu0 %v2457, 96
    %v3043 = vpop.permute.xlu0 %3042
    %3044 = vrot.lane.b32.xlu0 %v2458, 96
    %v3045 = vpop.permute.xlu0 %3044
    %3046 = vrot.lane.b32.xlu0 %v2459, 96
    %v3047 = vpop.permute.xlu0 %3046
    %3048 = vrot.lane.b32.xlu0 %v2460, 96
    %v3049 = vpop.permute.xlu0 %3048
    %3128 = vrot.lane.b32.xlu0 %v2500, 32
    %v3129 = vpop.permute.xlu0 %3128
    %3130 = vrot.lane.b32.xlu0 %v2501, 32
    %v3131 = vpop.permute.xlu0 %3130
    %3132 = vrot.lane.b32.xlu0 %v2502, 32
    %v3133 = vpop.permute.xlu0 %3132
    %3134 = vrot.lane.b32.xlu0 %v2503, 32
    %v3135 = vpop.permute.xlu0 %3134
    %3136 = vrot.lane.b32.xlu0 %v2504, 32
    %v3137 = vpop.permute.xlu0 %3136
    %3138 = vrot.lane.b32.xlu0 %v2505, 32
    %v3139 = vpop.permute.xlu0 %3138
    %3140 = vrot.lane.b32.xlu0 %v2506, 32
    %v3141 = vpop.permute.xlu0 %3140
    %3142 = vrot.lane.b32.xlu0 %v2507, 32
    %v3143 = vpop.permute.xlu0 %3142
    %3144 = vrot.lane.b32.xlu0 %v2508, 32
    %v3145 = vpop.permute.xlu0 %3144
    %3146 = vrot.lane.b32.xlu0 %v2509, 32
    %v3147 = vpop.permute.xlu0 %3146
    %3148 = vrot.lane.b32.xlu0 %v2510, 32
    %v3149 = vpop.permute.xlu0 %3148
    %3150 = vrot.lane.b32.xlu0 %v2511, 32
    %v3151 = vpop.permute.xlu0 %3150
    %3152 = vrot.lane.b32.xlu0 %v2512, 32
    %v3153 = vpop.permute.xlu0 %3152
    %3154 = vrot.lane.b32.xlu0 %v2513, 32
    %v3155 = vpop.permute.xlu0 %3154
    %3156 = vrot.lane.b32.xlu0 %v2514, 32
    %v3157 = vpop.permute.xlu0 %3156
    %3158 = vrot.lane.b32.xlu0 %v2515, 32
    %v3159 = vpop.permute.xlu0 %3158
    %3160 = vrot.lane.b32.xlu0 %v2516, 32
    %v3161 = vpop.permute.xlu0 %3160
    %3162 = vrot.lane.b32.xlu0 %v2517, 32
    %v3163 = vpop.permute.xlu0 %3162
    %3164 = vrot.lane.b32.xlu0 %v2518, 32
    %v3165 = vpop.permute.xlu0 %3164
    %3166 = vrot.lane.b32.xlu0 %v2519, 32
    %v3167 = vpop.permute.xlu0 %3166
    %3168 = vrot.lane.b32.xlu0 %v2520, 32
    %v3169 = vpop.permute.xlu0 %3168
    %3170 = vrot.lane.b32.xlu0 %v2521, 32
    %v3171 = vpop.permute.xlu0 %3170
    %3172 = vrot.lane.b32.xlu0 %v2522, 32
    %v3173 = vpop.permute.xlu0 %3172
    %3174 = vrot.lane.b32.xlu0 %v2523, 32
    %v3175 = vpop.permute.xlu0 %3174
    %3176 = vrot.lane.b32.xlu0 %v2524, 32
    %v3177 = vpop.permute.xlu0 %3176
    %3178 = vrot.lane.b32.xlu0 %v2525, 32
    %v3179 = vpop.permute.xlu0 %3178
    %3180 = vrot.lane.b32.xlu0 %v2526, 32
    %v3181 = vpop.permute.xlu0 %3180
    %3182 = vrot.lane.b32.xlu0 %v2527, 32
    %v3183 = vpop.permute.xlu0 %3182
    %3184 = vrot.lane.b32.xlu0 %v2528, 32
    %v3185 = vpop.permute.xlu0 %3184
    %3186 = vrot.lane.b32.xlu0 %v2529, 32
    %v3187 = vpop.permute.xlu0 %3186
    %3188 = vrot.lane.b32.xlu0 %v2530, 32
    %v3189 = vpop.permute.xlu0 %3188
    %3190 = vrot.lane.b32.xlu0 %v2531, 32
    %v3191 = vpop.permute.xlu0 %3190
    %3192 = vrot.lane.b32.xlu0 %v2532, 32
    %v3193 = vpop.permute.xlu0 %3192
    %3194 = vrot.lane.b32.xlu0 %v2533, 32
    %v3195 = vpop.permute.xlu0 %3194
    %3196 = vrot.lane.b32.xlu0 %v2534, 32
    %v3197 = vpop.permute.xlu0 %3196
    %3198 = vrot.lane.b32.xlu0 %v2535, 32
    %v3199 = vpop.permute.xlu0 %3198
    %3200 = vrot.lane.b32.xlu0 %v2536, 32
    %v3201 = vpop.permute.xlu0 %3200
    %3202 = vrot.lane.b32.xlu0 %v2537, 32
    %v3203 = vpop.permute.xlu0 %3202
    %3204 = vrot.lane.b32.xlu0 %v2538, 32
    %v3205 = vpop.permute.xlu0 %3204
    %3249 = vrot.lane.b32.xlu0 %v2539, 64
    %v3250 = vpop.permute.xlu0 %3249
    %3251 = vrot.lane.b32.xlu0 %v2540, 64
    %v3252 = vpop.permute.xlu0 %3251
    %3253 = vrot.lane.b32.xlu0 %v2541, 64
    %v3254 = vpop.permute.xlu0 %3253
    %3255 = vrot.lane.b32.xlu0 %v2542, 64
    %v3256 = vpop.permute.xlu0 %3255
    %3300 = vrot.lane.b32.xlu0 %v2543, 96
    %v3301 = vpop.permute.xlu0 %3300
    %3302 = vrot.lane.b32.xlu0 %v2544, 96
    %v3303 = vpop.permute.xlu0 %3302
    %3304 = vrot.lane.b32.xlu0 %v2545, 96
    %v3305 = vpop.permute.xlu0 %3304
    %3306 = vrot.lane.b32.xlu0 %v2546, 96
    %v3307 = vpop.permute.xlu0 %3306
    %3308 = vrot.lane.b32.xlu0 %v2547, 96
    %v3309 = vpop.permute.xlu0 %3308
    %3310 = vrot.lane.b32.xlu0 %v2548, 96
    %v3311 = vpop.permute.xlu0 %3310
    %3312 = vrot.lane.b32.xlu0 %v2549, 96
    %v3313 = vpop.permute.xlu0 %3312
    %3314 = vrot.lane.b32.xlu0 %v2550, 96
    %v3315 = vpop.permute.xlu0 %3314
    %3316 = vrot.lane.b32.xlu0 %v2551, 96
    %v3317 = vpop.permute.xlu0 %3316
    %3318 = vrot.lane.b32.xlu0 %v2552, 96
    %v3319 = vpop.permute.xlu0 %3318
    %3320 = vrot.lane.b32.xlu0 %v2553, 96
    %v3321 = vpop.permute.xlu0 %3320
    %3322 = vrot.lane.b32.xlu0 %v2554, 96
    %v3323 = vpop.permute.xlu0 %3322
    %3324 = vrot.lane.b32.xlu0 %v2555, 96
    %v3325 = vpop.permute.xlu0 %3324
    %3326 = vrot.lane.b32.xlu0 %v2556, 96
    %v3327 = vpop.permute.xlu0 %3326
    %3328 = vrot.lane.b32.xlu0 %v2557, 96
    %v3329 = vpop.permute.xlu0 %3328
    %3330 = vrot.lane.b32.xlu0 %v2558, 96
    %v3331 = vpop.permute.xlu0 %3330
    %3332 = vrot.lane.b32.xlu0 %v2559, 96
    %v3333 = vpop.permute.xlu0 %3332
    %3334 = vrot.lane.b32.xlu0 %v2560, 96
    %v3335 = vpop.permute.xlu0 %3334
    %3336 = vrot.lane.b32.xlu0 %v2561, 96
    %v3337 = vpop.permute.xlu0 %3336
    %3338 = vrot.lane.b32.xlu0 %v2562, 96
    %v3339 = vpop.permute.xlu0 %3338
    %3340 = vrot.lane.b32.xlu0 %v2563, 96
    %v3341 = vpop.permute.xlu0 %3340
    %3342 = vrot.lane.b32.xlu0 %v2564, 96
    %v3343 = vpop.permute.xlu0 %3342
    %3344 = vrot.lane.b32.xlu0 %v2565, 96
    %v3345 = vpop.permute.xlu0 %3344
    %3346 = vrot.lane.b32.xlu0 %v2566, 96
    %v3347 = vpop.permute.xlu0 %3346
    %3348 = vrot.lane.b32.xlu0 %v2567, 96
    %v3349 = vpop.permute.xlu0 %3348
    %3350 = vrot.lane.b32.xlu0 %v2568, 96
    %v3351 = vpop.permute.xlu0 %3350
    %3352 = vrot.lane.b32.xlu0 %v2569, 96
    %v3353 = vpop.permute.xlu0 %3352
    %3354 = vrot.lane.b32.xlu0 %v2570, 96
    %v3355 = vpop.permute.xlu0 %3354
    %3356 = vrot.lane.b32.xlu0 %v2571, 96
    %v3357 = vpop.permute.xlu0 %3356
    %3358 = vrot.lane.b32.xlu0 %v2572, 96
    %v3359 = vpop.permute.xlu0 %3358
    %3360 = vrot.lane.b32.xlu0 %v2573, 96
    %v3361 = vpop.permute.xlu0 %3360
    %3362 = vrot.lane.b32.xlu0 %v2574, 96
    %v3363 = vpop.permute.xlu0 %3362
    %3364 = vrot.lane.b32.xlu0 %v2575, 96
    %v3365 = vpop.permute.xlu0 %3364
    %3366 = vrot.lane.b32.xlu0 %v2576, 96
    %v3367 = vpop.permute.xlu0 %3366
    %3368 = vrot.lane.b32.xlu0 %v2577, 96
    %v3369 = vpop.permute.xlu0 %3368
    %3370 = vrot.lane.b32.xlu0 %v2578, 96
    %v3371 = vpop.permute.xlu0 %3370
    %3372 = vrot.lane.b32.xlu0 %v2579, 96
    %v3373 = vpop.permute.xlu0 %3372
    %3374 = vrot.lane.b32.xlu0 %v2580, 96
    %v3375 = vpop.permute.xlu0 %3374
    %3376 = vrot.lane.b32.xlu0 %v2581, 96
    %v3377 = vpop.permute.xlu0 %3376
    %v3417 = vsel %vm2034, %v2305, %v2661
    %v3418 = vsel %vm2034, %v2306, %v2663
    %v3419 = vsel %vm2034, %v2307, %v2665
    %v3420 = vsel %vm2034, %v2308, %v2667
    %v3421 = vsel %vm2034, %v2309, %v2669
    %v3422 = vsel %vm2034, %v2310, %v2671
    %v3423 = vsel %vm2034, %v2311, %v2673
    %v3424 = vsel %vm2034, %v2312, %v2675
    %v3425 = vsel %vm2034, %v2313, %v2677
    %v3426 = vsel %vm2034, %v2314, %v2679
    %v3427 = vsel %vm2034, %v2315, %v2681
    %v3428 = vsel %vm2034, %v2316, %v2683
    %v3429 = vsel %vm2034, %v2317, %v2685
    %v3430 = vsel %vm2034, %v2318, %v2687
    %v3431 = vsel %vm2034, %v2319, %v2689
    %v3432 = vsel %vm2034, %v2320, %v2691
    %v3433 = vsel %vm2034, %v2321, %v2693
    %v3434 = vsel %vm2034, %v2322, %v2695
    %v3435 = vsel %vm2034, %v2323, %v2697
    %v3436 = vsel %vm2034, %v2324, %v2699
    %v3437 = vsel %vm2034, %v2325, %v2701
    %v3438 = vsel %vm2034, %v2326, %v2703
    %v3439 = vsel %vm2034, %v2327, %v2705
    %v3440 = vsel %vm2034, %v2328, %v2707
    %v3441 = vsel %vm2034, %v2329, %v2709
    %v3442 = vsel %vm2034, %v2330, %v2711
    %v3443 = vsel %vm2034, %v2331, %v2713
    %v3444 = vsel %vm2034, %v2332, %v2715
    %v3445 = vsel %vm2034, %v2333, %v2717
    %v3446 = vsel %vm2034, %v2334, %v2719
    %v3447 = vsel %vm2034, %v2335, %v2721
    %v3448 = vsel %vm2034, %v2336, %v2723
    %v3449 = vsel %vm2034, %v2337, %v2725
    %v3450 = vsel %vm2034, %v2338, %v2727
    %v3451 = vsel %vm2034, %v2339, %v2729
    %v3452 = vsel %vm2034, %v2340, %v2731
    %v3453 = vsel %vm2034, %v2341, %v2733
    %v3454 = vsel %vm2034, %v2342, %v2735
    %v3455 = vsel %vm2034, %v2343, %v2737
    %vm3456 = vcmask 523264
    %v3457 = vsel %vm3456, %v3417, %v2817
    %v3458 = vsel %vm3456, %v3418, %v2819
    %v3459 = vsel %vm3456, %v3419, %v2821
    %v3460 = vsel %vm3456, %v3420, %v2823
    %v3461 = vsel %vm3456, %v3421, %v2825
    %v3462 = vsel %vm3456, %v3422, %v2827
    %v3463 = vsel %vm3456, %v3423, %v2829
    %v3464 = vsel %vm3456, %v3424, %v2831
    %v3465 = vsel %vm3456, %v3425, %v2833
    %v3466 = vsel %vm3456, %v3426, %v2835
    %v3467 = vsel %vm3456, %v3427, %v2837
    %v3468 = vsel %vm3456, %v3428, %v2839
    %v3469 = vsel %vm3456, %v3429, %v2841
    %v3470 = vsel %vm3456, %v3430, %v2843
    %v3471 = vsel %vm3456, %v3431, %v2845
    %v3472 = vsel %vm3456, %v3432, %v2847
    %v3473 = vsel %vm3456, %v3433, %v2849
    %v3474 = vsel %vm3456, %v3434, %v2851
    %v3475 = vsel %vm3456, %v3435, %v2853
    %v3476 = vsel %vm3456, %v3436, %v2855
    %v3477 = vsel %vm3456, %v3437, %v2857
    %v3478 = vsel %vm3456, %v3438, %v2859
    %v3479 = vsel %vm3456, %v3439, %v2861
    %v3480 = vsel %vm3456, %v3440, %v2863
    %v3481 = vsel %vm3456, %v3441, %v2865
    %v3482 = vsel %vm3456, %v3442, %v2867
    %v3483 = vsel %vm3456, %v3443, %v2869
    %v3484 = vsel %vm3456, %v3444, %v2871
    %v3485 = vsel %vm3456, %v3445, %v2873
    %v3486 = vsel %vm3456, %v3446, %v2875
    %v3487 = vsel %vm3456, %v3447, %v2877
    %v3488 = vsel %vm3456, %v3448, %v2879
    %v3489 = vsel %vm3456, %v3449, %v2881
    %v3490 = vsel %vm3456, %v3450, %v2883
    %v3491 = vsel %vm3456, %v3451, %v2885
    %v3492 = vsel %vm3456, %v3452, %v2887
    %v3493 = vsel %vm3456, %v3453, %v2889
    %v3494 = vsel %vm3456, %v3454, %v2891
    %v3495 = vsel %vm3456, %v3455, %v2893
    %vm3496 = vcmask 785408
    %v3497 = vsel %vm3496, %v3457, %v2973
    %v3498 = vsel %vm3496, %v3458, %v2975
    %v3499 = vsel %vm3496, %v3459, %v2977
    %v3500 = vsel %vm3496, %v3460, %v2979
    %v3501 = vsel %vm3496, %v3461, %v2981
    %v3502 = vsel %vm3496, %v3462, %v2983
    %v3503 = vsel %vm3496, %v3463, %v2985
    %v3504 = vsel %vm3496, %v3464, %v2987
    %v3505 = vsel %vm3496, %v3465, %v2989
    %v3506 = vsel %vm3496, %v3466, %v2991
    %v3507 = vsel %vm3496, %v3467, %v2993
    %v3508 = vsel %vm3496, %v3468, %v2995
    %v3509 = vsel %vm3496, %v3469, %v2997
    %v3510 = vsel %vm3496, %v3470, %v2999
    %v3511 = vsel %vm3496, %v3471, %v3001
    %v3512 = vsel %vm3496, %v3472, %v3003
    %v3513 = vsel %vm3496, %v3473, %v3005
    %v3514 = vsel %vm3496, %v3474, %v3007
    %v3515 = vsel %vm3496, %v3475, %v3009
    %v3516 = vsel %vm3496, %v3476, %v3011
    %v3517 = vsel %vm3496, %v3477, %v3013
    %v3518 = vsel %vm3496, %v3478, %v3015
    %v3519 = vsel %vm3496, %v3479, %v3017
    %v3520 = vsel %vm3496, %v3480, %v3019
    %v3521 = vsel %vm3496, %v3481, %v3021
    %v3522 = vsel %vm3496, %v3482, %v3023
    %v3523 = vsel %vm3496, %v3483, %v3025
    %v3524 = vsel %vm3496, %v3484, %v3027
    %v3525 = vsel %vm3496, %v3485, %v3029
    %v3526 = vsel %vm3496, %v3486, %v3031
    %v3527 = vsel %vm3496, %v3487, %v3033
    %v3528 = vsel %vm3496, %v3488, %v3035
    %v3529 = vsel %vm3496, %v3489, %v3037
    %v3530 = vsel %vm3496, %v3490, %v3039
    %v3531 = vsel %vm3496, %v3491, %v3041
    %v3532 = vsel %vm3496, %v3492, %v3043
    %v3533 = vsel %vm3496, %v3493, %v3045
    %v3534 = vsel %vm3496, %v3494, %v3047
    %v3535 = vsel %vm3496, %v3495, %v3049
    %v3536 = vsel %vm2034, %v2461, %v3129
    %v3537 = vsel %vm2034, %v2462, %v3131
    %v3538 = vsel %vm2034, %v2463, %v3133
    %v3539 = vsel %vm2034, %v2464, %v3135
    %v3540 = vsel %vm2034, %v2465, %v3137
    %v3541 = vsel %vm2034, %v2466, %v3139
    %v3542 = vsel %vm2034, %v2467, %v3141
    %v3543 = vsel %vm2034, %v2468, %v3143
    %v3544 = vsel %vm2034, %v2469, %v3145
    %v3545 = vsel %vm2034, %v2470, %v3147
    %v3546 = vsel %vm2034, %v2471, %v3149
    %v3547 = vsel %vm2034, %v2472, %v3151
    %v3548 = vsel %vm2034, %v2473, %v3153
    %v3549 = vsel %vm2034, %v2474, %v3155
    %v3550 = vsel %vm2034, %v2475, %v3157
    %v3551 = vsel %vm2034, %v2476, %v3159
    %v3552 = vsel %vm2034, %v2477, %v3161
    %v3553 = vsel %vm2034, %v2478, %v3163
    %v3554 = vsel %vm2034, %v2479, %v3165
    %v3555 = vsel %vm2034, %v2480, %v3167
    %v3556 = vsel %vm2034, %v2481, %v3169
    %v3557 = vsel %vm2034, %v2482, %v3171
    %v3558 = vsel %vm2034, %v2483, %v3173
    %v3559 = vsel %vm2034, %v2484, %v3175
    %v3560 = vsel %vm2034, %v2485, %v3177
    %v3561 = vsel %vm2034, %v2486, %v3179
    %v3562 = vsel %vm2034, %v2487, %v3181
    %v3563 = vsel %vm2034, %v2488, %v3183
    %v3564 = vsel %vm2034, %v2489, %v3185
    %v3565 = vsel %vm2034, %v2490, %v3187
    %v3566 = vsel %vm2034, %v2491, %v3189
    %v3567 = vsel %vm2034, %v2492, %v3191
    %v3568 = vsel %vm2034, %v2493, %v3193
    %v3569 = vsel %vm2034, %v2494, %v3195
    %v3570 = vsel %vm2034, %v2495, %v3197
    %v3571 = vsel %vm2034, %v2496, %v3199
    %v3572 = vsel %vm2034, %v2497, %v3201
    %v3573 = vsel %vm2034, %v2498, %v3203
    %v3574 = vsel %vm2034, %v2499, %v3205
    %v3575 = vsel %vm3456, %v3536, %v2823
    %v3576 = vsel %vm3456, %v3537, %v2825
    %v3577 = vsel %vm3456, %v3538, %v2827
    %v3578 = vsel %vm3456, %v3539, %v2829
    %v3579 = vsel %vm3456, %v3540, %v2831
    %v3580 = vsel %vm3456, %v3541, %v2833
    %v3581 = vsel %vm3456, %v3542, %v2835
    %v3582 = vsel %vm3456, %v3543, %v2837
    %v3583 = vsel %vm3456, %v3544, %v2839
    %v3584 = vsel %vm3456, %v3545, %v2841
    %v3585 = vsel %vm3456, %v3546, %v2843
    %v3586 = vsel %vm3456, %v3547, %v2845
    %v3587 = vsel %vm3456, %v3548, %v2847
    %v3588 = vsel %vm3456, %v3549, %v2849
    %v3589 = vsel %vm3456, %v3550, %v2851
    %v3590 = vsel %vm3456, %v3551, %v2853
    %v3591 = vsel %vm3456, %v3552, %v2855
    %v3592 = vsel %vm3456, %v3553, %v2857
    %v3593 = vsel %vm3456, %v3554, %v2859
    %v3594 = vsel %vm3456, %v3555, %v2861
    %v3595 = vsel %vm3456, %v3556, %v2863
    %v3596 = vsel %vm3456, %v3557, %v2865
    %v3597 = vsel %vm3456, %v3558, %v2867
    %v3598 = vsel %vm3456, %v3559, %v2869
    %v3599 = vsel %vm3456, %v3560, %v2871
    %v3600 = vsel %vm3456, %v3561, %v2873
    %v3601 = vsel %vm3456, %v3562, %v2875
    %v3602 = vsel %vm3456, %v3563, %v2877
    %v3603 = vsel %vm3456, %v3564, %v2879
    %v3604 = vsel %vm3456, %v3565, %v2881
    %v3605 = vsel %vm3456, %v3566, %v2883
    %v3606 = vsel %vm3456, %v3567, %v2885
    %v3607 = vsel %vm3456, %v3568, %v2887
    %v3608 = vsel %vm3456, %v3569, %v2889
    %v3609 = vsel %vm3456, %v3570, %v2891
    %v3610 = vsel %vm3456, %v3571, %v3250
    %v3611 = vsel %vm3456, %v3572, %v3252
    %v3612 = vsel %vm3456, %v3573, %v3254
    %v3613 = vsel %vm3456, %v3574, %v3256
    %v3614 = vsel %vm3496, %v3575, %v3301
    %v3615 = vsel %vm3496, %v3576, %v3303
    %v3616 = vsel %vm3496, %v3577, %v3305
    %v3617 = vsel %vm3496, %v3578, %v3307
    %v3618 = vsel %vm3496, %v3579, %v3309
    %v3619 = vsel %vm3496, %v3580, %v3311
    %v3620 = vsel %vm3496, %v3581, %v3313
    %v3621 = vsel %vm3496, %v3582, %v3315
    %v3622 = vsel %vm3496, %v3583, %v3317
    %v3623 = vsel %vm3496, %v3584, %v3319
    %v3624 = vsel %vm3496, %v3585, %v3321
    %v3625 = vsel %vm3496, %v3586, %v3323
    %v3626 = vsel %vm3496, %v3587, %v3325
    %v3627 = vsel %vm3496, %v3588, %v3327
    %v3628 = vsel %vm3496, %v3589, %v3329
    %v3629 = vsel %vm3496, %v3590, %v3331
    %v3630 = vsel %vm3496, %v3591, %v3333
    %v3631 = vsel %vm3496, %v3592, %v3335
    %v3632 = vsel %vm3496, %v3593, %v3337
    %v3633 = vsel %vm3496, %v3594, %v3339
    %v3634 = vsel %vm3496, %v3595, %v3341
    %v3635 = vsel %vm3496, %v3596, %v3343
    %v3636 = vsel %vm3496, %v3597, %v3345
    %v3637 = vsel %vm3496, %v3598, %v3347
    %v3638 = vsel %vm3496, %v3599, %v3349
    %v3639 = vsel %vm3496, %v3600, %v3351
    %v3640 = vsel %vm3496, %v3601, %v3353
    %v3641 = vsel %vm3496, %v3602, %v3355
    %v3642 = vsel %vm3496, %v3603, %v3357
    %v3643 = vsel %vm3496, %v3604, %v3359
    %v3644 = vsel %vm3496, %v3605, %v3361
    %v3645 = vsel %vm3496, %v3606, %v3363
    %v3646 = vsel %vm3496, %v3607, %v3365
    %v3647 = vsel %vm3496, %v3608, %v3367
    %v3648 = vsel %vm3496, %v3609, %v3369
    %v3649 = vsel %vm3496, %v3610, %v3371
    %v3650 = vsel %vm3496, %v3611, %v3373
    %v3651 = vsel %vm3496, %v3612, %v3375
    %v3652 = vsel %vm3496, %v3613, %v3377
    %v3653 = vpack.c.bf16 %v3498, %v3497
    %v3654 = vpack.c.bf16 %v3615, %v3614
    %v3655 = vpack.c.bf16 %v2583, %v2582
    %v3656 = vpack.c.bf16 %v3500, %v3499
    %v3657 = vpack.c.bf16 %v3617, %v3616
    %v3658 = vpack.c.bf16 %v2585, %v2584
    %v3659 = vpack.c.bf16 %v3502, %v3501
    %v3660 = vpack.c.bf16 %v3619, %v3618
    %v3661 = vpack.c.bf16 %v2587, %v2586
    %v3662 = vpack.c.bf16 %v3504, %v3503
    %v3663 = vpack.c.bf16 %v3621, %v3620
    %v3664 = vpack.c.bf16 %v2589, %v2588
    %v3665 = vpack.c.bf16 %v3506, %v3505
    %v3666 = vpack.c.bf16 %v3623, %v3622
    %v3667 = vpack.c.bf16 %v2591, %v2590
    %v3668 = vpack.c.bf16 %v3508, %v3507
    %v3669 = vpack.c.bf16 %v3625, %v3624
    %v3670 = vpack.c.bf16 %v2593, %v2592
    %v3671 = vpack.c.bf16 %v3510, %v3509
    %v3672 = vpack.c.bf16 %v3627, %v3626
    %v3673 = vpack.c.bf16 %v2595, %v2594
    %v3674 = vpack.c.bf16 %v3512, %v3511
    %v3675 = vpack.c.bf16 %v3629, %v3628
    %v3676 = vpack.c.bf16 %v2597, %v2596
    %v3677 = vpack.c.bf16 %v3514, %v3513
    %v3678 = vpack.c.bf16 %v3631, %v3630
    %v3679 = vpack.c.bf16 %v2599, %v2598
    %v3680 = vpack.c.bf16 %v3516, %v3515
    %v3681 = vpack.c.bf16 %v3633, %v3632
    %v3682 = vpack.c.bf16 %v2601, %v2600
    %v3683 = vpack.c.bf16 %v3518, %v3517
    %v3684 = vpack.c.bf16 %v3635, %v3634
    %v3685 = vpack.c.bf16 %v2603, %v2602
    %v3686 = vpack.c.bf16 %v3520, %v3519
    %v3687 = vpack.c.bf16 %v3637, %v3636
    %v3688 = vpack.c.bf16 %v2605, %v2604
    %v3689 = vpack.c.bf16 %v3522, %v3521
    %v3690 = vpack.c.bf16 %v3639, %v3638
    %v3691 = vpack.c.bf16 %v2607, %v2606
    %v3692 = vpack.c.bf16 %v3524, %v3523
    %v3693 = vpack.c.bf16 %v3641, %v3640
    %v3694 = vpack.c.bf16 %v2609, %v2608
    %v3695 = vpack.c.bf16 %v3526, %v3525
    %v3696 = vpack.c.bf16 %v3643, %v3642
    %v3697 = vpack.c.bf16 %v2611, %v2610
    %v3698 = vpack.c.bf16 %v3528, %v3527
    %v3699 = vpack.c.bf16 %v3645, %v3644
    %v3700 = vpack.c.bf16 %v2613, %v2612
    %v3701 = vpack.c.bf16 %v3530, %v3529
    %v3702 = vpack.c.bf16 %v3647, %v3646
    %v3703 = vpack.c.bf16 %v2615, %v2614
    %v3704 = vpack.c.bf16 %v3532, %v3531
    %v3705 = vpack.c.bf16 %v3649, %v3648
    %v3706 = vpack.c.bf16 %v2617, %v2616
    %v3707 = vpack.c.bf16 %v3534, %v3533
    %v3708 = vpack.c.bf16 %v3651, %v3650
    %v3709 = vpack.c.bf16 %v2619, %v2618
    %v3710 = vpack.c.bf16 %v3535, %v3535
    %v3711 = vpack.c.bf16 %v3652, %v3652
    %v3712 = vpack.c.bf16 %v2620, %v2620
    %v3713 = vld [vmem:[%s3] sm:$0xf]
    %v3714 = vld [vmem:[%s3 + $0x4] sm:$0xf]
    %v3715 = vld [vmem:[%s3 + $0x8] sm:$0xf]
    %v3716 = vld [vmem:[%s3 + $0xc] sm:$0xf]
    %v3717 = vld [vmem:[%s3 + $0x10] sm:$0xf]
    %v3718 = vld [vmem:[%s3 + $0x14] sm:$0xf]
    %v3719 = vld [vmem:[%s3 + $0x18] sm:$0xf]
    %v3720 = vld [vmem:[%s3 + $0x1c] sm:$0xf]
    %v3721 = vld [vmem:[%s3 + $0x20] sm:$0xf]
    %v3722 = vld [vmem:[%s3 + $0x24] sm:$0xf]
    %v3723 = vld [vmem:[%s3 + $0x28] sm:$0xf]
    %v3724 = vld [vmem:[%s3 + $0x2c] sm:$0xf]
    %v3725 = vld [vmem:[%s3 + $0x30] sm:$0xf]
    %v3726 = vld [vmem:[%s3 + $0x34] sm:$0xf]
    %v3727 = vld [vmem:[%s3 + $0x38] sm:$0xf]
    %v3728 = vld [vmem:[%s3 + $0x3c] sm:$0xf]
    %v3729 = vld [vmem:[%s3 + $0x40] sm:$0xf]
    %v3730 = vld [vmem:[%s3 + $0x44] sm:$0xf]
    %v3731 = vld [vmem:[%s3 + $0x48] sm:$0xf]
    %v3732 = vld [vmem:[%s3 + $0x4c] sm:$0xf]
    %v3733 = vld [vmem:[%s3 + $0x50] sm:$0xf]
    %v3734 = vld [vmem:[%s3 + $0x54] sm:$0xf]
    %v3735 = vld [vmem:[%s3 + $0x58] sm:$0xf]
    %v3736 = vld [vmem:[%s3 + $0x5c] sm:$0xf]
    %v3737 = vld [vmem:[%s3 + $0x60] sm:$0xf]
    %v3738 = vld [vmem:[%s3 + $0x64] sm:$0xf]
    %v3739 = vld [vmem:[%s3 + $0x68] sm:$0xf]
    %v3740 = vld [vmem:[%s3 + $0x6c] sm:$0xf]
    %v3741 = vld [vmem:[%s3 + $0x70] sm:$0xf]
    %v3742 = vld [vmem:[%s3 + $0x74] sm:$0xf]
    %v3743 = vld [vmem:[%s3 + $0x78] sm:$0xf]
    %v3744 = vld [vmem:[%s3 + $0x7c] sm:$0xf]
    %v3745 = vld [vmem:[%s3 + $0x80] sm:$0xf]
    %v3746 = vld [vmem:[%s3 + $0x84] sm:$0xf]
    %v3747 = vld [vmem:[%s3 + $0x88] sm:$0xf]
    %v3748 = vld [vmem:[%s3 + $0x8c] sm:$0xf]
    %v3749 = vperm.slane %v29, 0
    %v3786 = vunpack.c.l.b16 %v3713
    %v3787 = vunpack.c.l.b16 %v3714
    %v3788 = vunpack.c.l.b16 %v3715
    %v3789 = vunpack.c.l.b16 %v3716
    %v3790 = vunpack.c.l.b16 %v3717
    %v3791 = vunpack.c.l.b16 %v3718
    %v3792 = vunpack.c.l.b16 %v3719
    %v3793 = vunpack.c.l.b16 %v3720
    %v3794 = vunpack.c.l.b16 %v3721
    %v3795 = vunpack.c.l.b16 %v3722
    %v3796 = vunpack.c.l.b16 %v3723
    %v3797 = vunpack.c.l.b16 %v3724
    %v3798 = vunpack.c.l.b16 %v3725
    %v3799 = vunpack.c.l.b16 %v3726
    %v3800 = vunpack.c.l.b16 %v3727
    %v3801 = vunpack.c.l.b16 %v3728
    %v3802 = vunpack.c.l.b16 %v3729
    %v3803 = vunpack.c.l.b16 %v3730
    %v3804 = vunpack.c.l.b16 %v3731
    %v3805 = vunpack.c.l.b16 %v3732
    %v3806 = vunpack.c.l.b16 %v3733
    %v3807 = vunpack.c.l.b16 %v3734
    %v3808 = vunpack.c.l.b16 %v3735
    %v3809 = vunpack.c.l.b16 %v3736
    %v3810 = vunpack.c.l.b16 %v3737
    %v3811 = vunpack.c.l.b16 %v3738
    %v3812 = vunpack.c.l.b16 %v3739
    %v3813 = vunpack.c.l.b16 %v3740
    %v3814 = vunpack.c.l.b16 %v3741
    %v3815 = vunpack.c.l.b16 %v3742
    %v3816 = vunpack.c.l.b16 %v3743
    %v3817 = vunpack.c.l.b16 %v3744
    %v3818 = vunpack.c.l.b16 %v3745
    %v3819 = vunpack.c.l.b16 %v3746
    %v3820 = vunpack.c.l.b16 %v3747
    %v3821 = vunpack.c.l.b16 %v3748
    %v3822 = vpack.c.b16 %v3787, %v3786
    %v3823 = vpack.c.b16 %v3789, %v3788
    %v3824 = vpack.c.b16 %v3791, %v3790
    %v3825 = vpack.c.b16 %v3793, %v3792
    %v3826 = vpack.c.b16 %v3795, %v3794
    %v3827 = vpack.c.b16 %v3797, %v3796
    %v3828 = vpack.c.b16 %v3799, %v3798
    %v3829 = vpack.c.b16 %v3801, %v3800
    %v3830 = vpack.c.b16 %v3803, %v3802
    %v3831 = vpack.c.b16 %v3805, %v3804
    %v3832 = vpack.c.b16 %v3807, %v3806
    %v3833 = vpack.c.b16 %v3809, %v3808
    %v3834 = vpack.c.b16 %v3811, %v3810
    %v3835 = vpack.c.b16 %v3813, %v3812
    %v3836 = vpack.c.b16 %v3815, %v3814
    %v3837 = vpack.c.b16 %v3817, %v3816
    %v3838 = vpack.c.b16 %v3819, %v3818
    %v3839 = vpack.c.b16 %v3821, %v3820
    %v3859 = vsel %vm2034, %v3655, 0
    %v3862 = vsel %vm2034, %v3658, 0
    %v3865 = vsel %vm2034, %v3661, 0
    %v3868 = vsel %vm2034, %v3664, 0
    %v3871 = vsel %vm2034, %v3667, 0
    %v3874 = vsel %vm2034, %v3670, 0
    %v3877 = vsel %vm2034, %v3673, 0
    %v3880 = vsel %vm2034, %v3676, 0
    %v3883 = vsel %vm2034, %v3679, 0
    %v3886 = vsel %vm2034, %v3682, 0
    %v3889 = vsel %vm2034, %v3685, 0
    %v3892 = vsel %vm2034, %v3688, 0
    %v3895 = vsel %vm2034, %v3691, 0
    %v3898 = vsel %vm2034, %v3694, 0
    %v3901 = vsel %vm2034, %v3697, 0
    %v3904 = vsel %vm2034, %v3700, 0
    %v3907 = vsel %vm2034, %v3703, 0
    %v3910 = vsel %vm2034, %v3706, 0
    %v3913 = vsel %vm2034, %v3709, 0
    %v3916 = vsel %vm2034, %v3712, 0
    %3918 = vmatpush.bf16.msra.mxu0 %v3829
    %3919 = vmatpush.bf16.msra.mxu0 %v3828
    %3920 = vmatpush.bf16.msra.mxu0 %v3827
    %3921 = vmatpush.bf16.msra.mxu0 %v3826
    %3922 = vmatpush.bf16.msra.mxu0 %v3825
    %3923 = vmatpush.bf16.msra.mxu0 %v3824
    %3924 = vmatpush.bf16.msra.mxu0 %v3823
    %3925 = vmatpush.bf16.msra.mxu0 %v3822
    %3926 = vmatmul.bf16.gmra.mxu0 %v3653
    %v3927 = vpop.f32.mrf.mxu0
    %v3928 = vadd.f32 %v3749, %v3927
    %v3929 = vpop.f32.mrf.mxu0
    %v3930 = vadd.f32 %v3749, %v3929
    %3931 = vmatmul.bf16.gmra.mxu0 %v3656
    %v3932 = vpop.f32.mrf.mxu0
    %v3933 = vadd.f32 %v3749, %v3932
    %v3934 = vpop.f32.mrf.mxu0
    %v3935 = vadd.f32 %v3749, %v3934
    %3936 = vmatmul.bf16.gmra.mxu0 %v3659
    %v3937 = vpop.f32.mrf.mxu0
    %v3938 = vadd.f32 %v3749, %v3937
    %v3939 = vpop.f32.mrf.mxu0
    %v3940 = vadd.f32 %v3749, %v3939
    %3941 = vmatmul.bf16.gmra.mxu0 %v3662
    %v3942 = vpop.f32.mrf.mxu0
    %v3943 = vadd.f32 %v3749, %v3942
    %v3944 = vpop.f32.mrf.mxu0
    %v3945 = vadd.f32 %v3749, %v3944
    %3946 = vmatmul.bf16.gmra.mxu0 %v3665
    %v3947 = vpop.f32.mrf.mxu0
    %v3948 = vadd.f32 %v3749, %v3947
    %v3949 = vpop.f32.mrf.mxu0
    %v3950 = vadd.f32 %v3749, %v3949
    %3951 = vmatmul.bf16.gmra.mxu0 %v3668
    %v3952 = vpop.f32.mrf.mxu0
    %v3953 = vadd.f32 %v3749, %v3952
    %v3954 = vpop.f32.mrf.mxu0
    %v3955 = vadd.f32 %v3749, %v3954
    %3956 = vmatmul.bf16.gmra.mxu0 %v3671
    %v3957 = vpop.f32.mrf.mxu0
    %v3958 = vadd.f32 %v3749, %v3957
    %v3959 = vpop.f32.mrf.mxu0
    %v3960 = vadd.f32 %v3749, %v3959
    %3961 = vmatmul.bf16.gmra.mxu0 %v3674
    %v3962 = vpop.f32.mrf.mxu0
    %v3963 = vadd.f32 %v3749, %v3962
    %v3964 = vpop.f32.mrf.mxu0
    %v3965 = vadd.f32 %v3749, %v3964
    %3966 = vmatmul.bf16.gmra.mxu0 %v3677
    %v3967 = vpop.f32.mrf.mxu0
    %v3968 = vadd.f32 %v3749, %v3967
    %v3969 = vpop.f32.mrf.mxu0
    %v3970 = vadd.f32 %v3749, %v3969
    %3971 = vmatmul.bf16.gmra.mxu0 %v3680
    %v3972 = vpop.f32.mrf.mxu0
    %v3973 = vadd.f32 %v3749, %v3972
    %v3974 = vpop.f32.mrf.mxu0
    %v3975 = vadd.f32 %v3749, %v3974
    %3976 = vmatmul.bf16.gmra.mxu0 %v3683
    %v3977 = vpop.f32.mrf.mxu0
    %v3978 = vadd.f32 %v3749, %v3977
    %v3979 = vpop.f32.mrf.mxu0
    %v3980 = vadd.f32 %v3749, %v3979
    %3981 = vmatmul.bf16.gmra.mxu0 %v3686
    %v3982 = vpop.f32.mrf.mxu0
    %v3983 = vadd.f32 %v3749, %v3982
    %v3984 = vpop.f32.mrf.mxu0
    %v3985 = vadd.f32 %v3749, %v3984
    %3986 = vmatmul.bf16.gmra.mxu0 %v3689
    %v3987 = vpop.f32.mrf.mxu0
    %v3988 = vadd.f32 %v3749, %v3987
    %v3989 = vpop.f32.mrf.mxu0
    %v3990 = vadd.f32 %v3749, %v3989
    %3991 = vmatmul.bf16.gmra.mxu0 %v3692
    %v3992 = vpop.f32.mrf.mxu0
    %v3993 = vadd.f32 %v3749, %v3992
    %v3994 = vpop.f32.mrf.mxu0
    %v3995 = vadd.f32 %v3749, %v3994
    %3996 = vmatmul.bf16.gmra.mxu0 %v3695
    %v3997 = vpop.f32.mrf.mxu0
    %v3998 = vadd.f32 %v3749, %v3997
    %v3999 = vpop.f32.mrf.mxu0
    %v4000 = vadd.f32 %v3749, %v3999
    %4001 = vmatmul.bf16.gmra.mxu0 %v3698
    %v4002 = vpop.f32.mrf.mxu0
    %v4003 = vadd.f32 %v3749, %v4002
    %v4004 = vpop.f32.mrf.mxu0
    %v4005 = vadd.f32 %v3749, %v4004
    %4006 = vmatmul.bf16.gmra.mxu0 %v3701
    %v4007 = vpop.f32.mrf.mxu0
    %v4008 = vadd.f32 %v3749, %v4007
    %v4009 = vpop.f32.mrf.mxu0
    %v4010 = vadd.f32 %v3749, %v4009
    %4011 = vmatmul.bf16.gmra.mxu0 %v3704
    %v4012 = vpop.f32.mrf.mxu0
    %v4013 = vadd.f32 %v3749, %v4012
    %v4014 = vpop.f32.mrf.mxu0
    %v4015 = vadd.f32 %v3749, %v4014
    %4016 = vmatmul.bf16.gmra.mxu0 %v3707
    %v4017 = vpop.f32.mrf.mxu0
    %v4018 = vadd.f32 %v3749, %v4017
    %v4019 = vpop.f32.mrf.mxu0
    %v4020 = vadd.f32 %v3749, %v4019
    %4021 = vmatmul.bf16.gmra.mxu0 %v3710
    %v4022 = vpop.f32.mrf.mxu0
    %v4023 = vadd.f32 %v3749, %v4022
    %v4024 = vpop.f32.mrf.mxu0
    %4025 = vdwg.mxu0
    %4026 = vmatpush.bf16.msra.mxu0 %v3837
    %4027 = vmatpush.bf16.msra.mxu0 %v3836
    %4028 = vmatpush.bf16.msra.mxu0 %v3835
    %4029 = vmatpush.bf16.msra.mxu0 %v3834
    %4030 = vmatpush.bf16.msra.mxu0 %v3833
    %4031 = vmatpush.bf16.msra.mxu0 %v3832
    %4032 = vmatpush.bf16.msra.mxu0 %v3831
    %4033 = vmatpush.bf16.msra.mxu0 %v3830
    %4034 = vmatmul.bf16.gmra.mxu0 %v3654
    %v4035 = vpop.f32.mrf.mxu0
    %v4036 = vadd.f32 %v3928, %v4035
    %v4037 = vpop.f32.mrf.mxu0
    %v4038 = vadd.f32 %v3930, %v4037
    %4039 = vmatmul.bf16.gmra.mxu0 %v3657
    %v4040 = vpop.f32.mrf.mxu0
    %v4041 = vadd.f32 %v3933, %v4040
    %v4042 = vpop.f32.mrf.mxu0
    %v4043 = vadd.f32 %v3935, %v4042
    %4044 = vmatmul.bf16.gmra.mxu0 %v3660
    %v4045 = vpop.f32.mrf.mxu0
    %v4046 = vadd.f32 %v3938, %v4045
    %v4047 = vpop.f32.mrf.mxu0
    %v4048 = vadd.f32 %v3940, %v4047
    %4049 = vmatmul.bf16.gmra.mxu0 %v3663
    %v4050 = vpop.f32.mrf.mxu0
    %v4051 = vadd.f32 %v3943, %v4050
    %v4052 = vpop.f32.mrf.mxu0
    %v4053 = vadd.f32 %v3945, %v4052
    %4054 = vmatmul.bf16.gmra.mxu0 %v3666
    %v4055 = vpop.f32.mrf.mxu0
    %v4056 = vadd.f32 %v3948, %v4055
    %v4057 = vpop.f32.mrf.mxu0
    %v4058 = vadd.f32 %v3950, %v4057
    %4059 = vmatmul.bf16.gmra.mxu0 %v3669
    %v4060 = vpop.f32.mrf.mxu0
    %v4061 = vadd.f32 %v3953, %v4060
    %v4062 = vpop.f32.mrf.mxu0
    %v4063 = vadd.f32 %v3955, %v4062
    %4064 = vmatmul.bf16.gmra.mxu0 %v3672
    %v4065 = vpop.f32.mrf.mxu0
    %v4066 = vadd.f32 %v3958, %v4065
    %v4067 = vpop.f32.mrf.mxu0
    %v4068 = vadd.f32 %v3960, %v4067
    %4069 = vmatmul.bf16.gmra.mxu0 %v3675
    %v4070 = vpop.f32.mrf.mxu0
    %v4071 = vadd.f32 %v3963, %v4070
    %v4072 = vpop.f32.mrf.mxu0
    %v4073 = vadd.f32 %v3965, %v4072
    %4074 = vmatmul.bf16.gmra.mxu0 %v3678
    %v4075 = vpop.f32.mrf.mxu0
    %v4076 = vadd.f32 %v3968, %v4075
    %v4077 = vpop.f32.mrf.mxu0
    %v4078 = vadd.f32 %v3970, %v4077
    %4079 = vmatmul.bf16.gmra.mxu0 %v3681
    %v4080 = vpop.f32.mrf.mxu0
    %v4081 = vadd.f32 %v3973, %v4080
    %v4082 = vpop.f32.mrf.mxu0
    %v4083 = vadd.f32 %v3975, %v4082
    %4084 = vmatmul.bf16.gmra.mxu0 %v3684
    %v4085 = vpop.f32.mrf.mxu0
    %v4086 = vadd.f32 %v3978, %v4085
    %v4087 = vpop.f32.mrf.mxu0
    %v4088 = vadd.f32 %v3980, %v4087
    %4089 = vmatmul.bf16.gmra.mxu0 %v3687
    %v4090 = vpop.f32.mrf.mxu0
    %v4091 = vadd.f32 %v3983, %v4090
    %v4092 = vpop.f32.mrf.mxu0
    %v4093 = vadd.f32 %v3985, %v4092
    %4094 = vmatmul.bf16.gmra.mxu0 %v3690
    %v4095 = vpop.f32.mrf.mxu0
    %v4096 = vadd.f32 %v3988, %v4095
    %v4097 = vpop.f32.mrf.mxu0
    %v4098 = vadd.f32 %v3990, %v4097
    %4099 = vmatmul.bf16.gmra.mxu0 %v3693
    %v4100 = vpop.f32.mrf.mxu0
    %v4101 = vadd.f32 %v3993, %v4100
    %v4102 = vpop.f32.mrf.mxu0
    %v4103 = vadd.f32 %v3995, %v4102
    %4104 = vmatmul.bf16.gmra.mxu0 %v3696
    %v4105 = vpop.f32.mrf.mxu0
    %v4106 = vadd.f32 %v3998, %v4105
    %v4107 = vpop.f32.mrf.mxu0
    %v4108 = vadd.f32 %v4000, %v4107
    %4109 = vmatmul.bf16.gmra.mxu0 %v3699
    %v4110 = vpop.f32.mrf.mxu0
    %v4111 = vadd.f32 %v4003, %v4110
    %v4112 = vpop.f32.mrf.mxu0
    %v4113 = vadd.f32 %v4005, %v4112
    %4114 = vmatmul.bf16.gmra.mxu0 %v3702
    %v4115 = vpop.f32.mrf.mxu0
    %v4116 = vadd.f32 %v4008, %v4115
    %v4117 = vpop.f32.mrf.mxu0
    %v4118 = vadd.f32 %v4010, %v4117
    %4119 = vmatmul.bf16.gmra.mxu0 %v3705
    %v4120 = vpop.f32.mrf.mxu0
    %v4121 = vadd.f32 %v4013, %v4120
    %v4122 = vpop.f32.mrf.mxu0
    %v4123 = vadd.f32 %v4015, %v4122
    %4124 = vmatmul.bf16.gmra.mxu0 %v3708
    %v4125 = vpop.f32.mrf.mxu0
    %v4126 = vadd.f32 %v4018, %v4125
    %v4127 = vpop.f32.mrf.mxu0
    %v4128 = vadd.f32 %v4020, %v4127
    %4129 = vmatmul.bf16.gmra.mxu0 %v3711
    %v4130 = vpop.f32.mrf.mxu0
    %v4131 = vadd.f32 %v4023, %v4130
    %v4132 = vpop.f32.mrf.mxu0
    %4133 = vdwg.mxu0
    %4134 = vmatpush.bf16.msra.mxu0 0
    %4135 = vmatpush.bf16.msra.mxu0 0
    %4136 = vmatpush.bf16.msra.mxu0 0
    %4137 = vmatpush.bf16.msra.mxu0 0
    %4138 = vmatpush.bf16.msra.mxu0 0
    %4139 = vmatpush.bf16.msra.mxu0 0
    %4140 = vmatpush.bf16.msra.mxu0 %v3839
    %4141 = vmatpush.bf16.msra.mxu0 %v3838
    %4142 = vmatmul.bf16.gmra.mxu0 %v3859
    %v4143 = vpop.f32.mrf.mxu0
    %v4144 = vadd.f32 %v4036, %v4143
    %v4145 = vpop.f32.mrf.mxu0
    %v4146 = vadd.f32 %v4038, %v4145
    %4147 = vmatmul.bf16.gmra.mxu0 %v3862
    %v4148 = vpop.f32.mrf.mxu0
    %v4149 = vadd.f32 %v4041, %v4148
    %v4150 = vpop.f32.mrf.mxu0
    %v4151 = vadd.f32 %v4043, %v4150
    %4152 = vmatmul.bf16.gmra.mxu0 %v3865
    %v4153 = vpop.f32.mrf.mxu0
    %v4154 = vadd.f32 %v4046, %v4153
    %v4155 = vpop.f32.mrf.mxu0
    %v4156 = vadd.f32 %v4048, %v4155
    %4157 = vmatmul.bf16.gmra.mxu0 %v3868
    %v4158 = vpop.f32.mrf.mxu0
    %v4159 = vadd.f32 %v4051, %v4158
    %v4160 = vpop.f32.mrf.mxu0
    %v4161 = vadd.f32 %v4053, %v4160
    %4162 = vmatmul.bf16.gmra.mxu0 %v3871
    %v4163 = vpop.f32.mrf.mxu0
    %v4164 = vadd.f32 %v4056, %v4163
    %v4165 = vpop.f32.mrf.mxu0
    %v4166 = vadd.f32 %v4058, %v4165
    %4167 = vmatmul.bf16.gmra.mxu0 %v3874
    %v4168 = vpop.f32.mrf.mxu0
    %v4169 = vadd.f32 %v4061, %v4168
    %v4170 = vpop.f32.mrf.mxu0
    %v4171 = vadd.f32 %v4063, %v4170
    %4172 = vmatmul.bf16.gmra.mxu0 %v3877
    %v4173 = vpop.f32.mrf.mxu0
    %v4174 = vadd.f32 %v4066, %v4173
    %v4175 = vpop.f32.mrf.mxu0
    %v4176 = vadd.f32 %v4068, %v4175
    %4177 = vmatmul.bf16.gmra.mxu0 %v3880
    %v4178 = vpop.f32.mrf.mxu0
    %v4179 = vadd.f32 %v4071, %v4178
    %v4180 = vpop.f32.mrf.mxu0
    %v4181 = vadd.f32 %v4073, %v4180
    %4182 = vmatmul.bf16.gmra.mxu0 %v3883
    %v4183 = vpop.f32.mrf.mxu0
    %v4184 = vadd.f32 %v4076, %v4183
    %v4185 = vpop.f32.mrf.mxu0
    %v4186 = vadd.f32 %v4078, %v4185
    %4187 = vmatmul.bf16.gmra.mxu0 %v3886
    %v4188 = vpop.f32.mrf.mxu0
    %v4189 = vadd.f32 %v4081, %v4188
    %v4190 = vpop.f32.mrf.mxu0
    %v4191 = vadd.f32 %v4083, %v4190
    %4192 = vmatmul.bf16.gmra.mxu0 %v3889
    %v4193 = vpop.f32.mrf.mxu0
    %v4194 = vadd.f32 %v4086, %v4193
    %v4195 = vpop.f32.mrf.mxu0
    %v4196 = vadd.f32 %v4088, %v4195
    %4197 = vmatmul.bf16.gmra.mxu0 %v3892
    %v4198 = vpop.f32.mrf.mxu0
    %v4199 = vadd.f32 %v4091, %v4198
    %v4200 = vpop.f32.mrf.mxu0
    %v4201 = vadd.f32 %v4093, %v4200
    %4202 = vmatmul.bf16.gmra.mxu0 %v3895
    %v4203 = vpop.f32.mrf.mxu0
    %v4204 = vadd.f32 %v4096, %v4203
    %v4205 = vpop.f32.mrf.mxu0
    %v4206 = vadd.f32 %v4098, %v4205
    %4207 = vmatmul.bf16.gmra.mxu0 %v3898
    %v4208 = vpop.f32.mrf.mxu0
    %v4209 = vadd.f32 %v4101, %v4208
    %v4210 = vpop.f32.mrf.mxu0
    %v4211 = vadd.f32 %v4103, %v4210
    %4212 = vmatmul.bf16.gmra.mxu0 %v3901
    %v4213 = vpop.f32.mrf.mxu0
    %v4214 = vadd.f32 %v4106, %v4213
    %v4215 = vpop.f32.mrf.mxu0
    %v4216 = vadd.f32 %v4108, %v4215
    %4217 = vmatmul.bf16.gmra.mxu0 %v3904
    %v4218 = vpop.f32.mrf.mxu0
    %v4219 = vadd.f32 %v4111, %v4218
    %v4220 = vpop.f32.mrf.mxu0
    %v4221 = vadd.f32 %v4113, %v4220
    %4222 = vmatmul.bf16.gmra.mxu0 %v3907
    %v4223 = vpop.f32.mrf.mxu0
    %v4224 = vadd.f32 %v4116, %v4223
    %v4225 = vpop.f32.mrf.mxu0
    %v4226 = vadd.f32 %v4118, %v4225
    %4227 = vmatmul.bf16.gmra.mxu0 %v3910
    %v4228 = vpop.f32.mrf.mxu0
    %v4229 = vadd.f32 %v4121, %v4228
    %v4230 = vpop.f32.mrf.mxu0
    %v4231 = vadd.f32 %v4123, %v4230
    %4232 = vmatmul.bf16.gmra.mxu0 %v3913
    %v4233 = vpop.f32.mrf.mxu0
    %v4234 = vadd.f32 %v4126, %v4233
    %v4235 = vpop.f32.mrf.mxu0
    %v4236 = vadd.f32 %v4128, %v4235
    %4237 = vmatmul.bf16.gmra.mxu0 %v3916
    %v4238 = vpop.f32.mrf.mxu0
    %v4239 = vadd.f32 %v4131, %v4238
    %v4240 = vpop.f32.mrf.mxu0
    %4241 = vdwg.mxu0
    %v4242 = vmax.f32 %v4144, 0.0
    %v4243 = vmax.f32 %v4146, 0.0
    %v4244 = vmax.f32 %v4149, 0.0
    %v4245 = vmax.f32 %v4151, 0.0
    %v4246 = vmax.f32 %v4154, 0.0
    %v4247 = vmax.f32 %v4156, 0.0
    %v4248 = vmax.f32 %v4159, 0.0
    %v4249 = vmax.f32 %v4161, 0.0
    %v4250 = vmax.f32 %v4164, 0.0
    %v4251 = vmax.f32 %v4166, 0.0
    %v4252 = vmax.f32 %v4169, 0.0
    %v4253 = vmax.f32 %v4171, 0.0
    %v4254 = vmax.f32 %v4174, 0.0
    %v4255 = vmax.f32 %v4176, 0.0
    %v4256 = vmax.f32 %v4179, 0.0
    %v4257 = vmax.f32 %v4181, 0.0
    %v4258 = vmax.f32 %v4184, 0.0
    %v4259 = vmax.f32 %v4186, 0.0
    %v4260 = vmax.f32 %v4189, 0.0
    %v4261 = vmax.f32 %v4191, 0.0
    %v4262 = vmax.f32 %v4194, 0.0
    %v4263 = vmax.f32 %v4196, 0.0
    %v4264 = vmax.f32 %v4199, 0.0
    %v4265 = vmax.f32 %v4201, 0.0
    %v4266 = vmax.f32 %v4204, 0.0
    %v4267 = vmax.f32 %v4206, 0.0
    %v4268 = vmax.f32 %v4209, 0.0
    %v4269 = vmax.f32 %v4211, 0.0
    %v4270 = vmax.f32 %v4214, 0.0
    %v4271 = vmax.f32 %v4216, 0.0
    %v4272 = vmax.f32 %v4219, 0.0
    %v4273 = vmax.f32 %v4221, 0.0
    %v4274 = vmax.f32 %v4224, 0.0
    %v4275 = vmax.f32 %v4226, 0.0
    %v4276 = vmax.f32 %v4229, 0.0
    %v4277 = vmax.f32 %v4231, 0.0
    %v4278 = vmax.f32 %v4234, 0.0
    %v4279 = vmax.f32 %v4236, 0.0
    %v4280 = vmax.f32 %v4239, 0.0
    %v4281 = vperm.slane %v30, 0
    %v4282 = vmul.f32 %v4242, %v4281
    %v4283 = vmul.f32 %v4243, %v4281
    %v4284 = vmul.f32 %v4244, %v4281
    %v4285 = vmul.f32 %v4245, %v4281
    %v4286 = vmul.f32 %v4246, %v4281
    %v4287 = vmul.f32 %v4247, %v4281
    %v4288 = vmul.f32 %v4248, %v4281
    %v4289 = vmul.f32 %v4249, %v4281
    %v4290 = vmul.f32 %v4250, %v4281
    %v4291 = vmul.f32 %v4251, %v4281
    %v4292 = vmul.f32 %v4252, %v4281
    %v4293 = vmul.f32 %v4253, %v4281
    %v4294 = vmul.f32 %v4254, %v4281
    %v4295 = vmul.f32 %v4255, %v4281
    %v4296 = vmul.f32 %v4256, %v4281
    %v4297 = vmul.f32 %v4257, %v4281
    %v4298 = vmul.f32 %v4258, %v4281
    %v4299 = vmul.f32 %v4259, %v4281
    %v4300 = vmul.f32 %v4260, %v4281
    %v4301 = vmul.f32 %v4261, %v4281
    %v4302 = vmul.f32 %v4262, %v4281
    %v4303 = vmul.f32 %v4263, %v4281
    %v4304 = vmul.f32 %v4264, %v4281
    %v4305 = vmul.f32 %v4265, %v4281
    %v4306 = vmul.f32 %v4266, %v4281
    %v4307 = vmul.f32 %v4267, %v4281
    %v4308 = vmul.f32 %v4268, %v4281
    %v4309 = vmul.f32 %v4269, %v4281
    %v4310 = vmul.f32 %v4270, %v4281
    %v4311 = vmul.f32 %v4271, %v4281
    %v4312 = vmul.f32 %v4272, %v4281
    %v4313 = vmul.f32 %v4273, %v4281
    %v4314 = vmul.f32 %v4274, %v4281
    %v4315 = vmul.f32 %v4275, %v4281
    %v4316 = vmul.f32 %v4276, %v4281
    %v4317 = vmul.f32 %v4277, %v4281
    %v4318 = vmul.f32 %v4278, %v4281
    %v4319 = vmul.f32 %v4279, %v4281
    %v4320 = vmul.f32 %v4280, %v4281
    %v4321 = vperm.slane %v31, 0
    %v4322 = vadd.f32 %v4282, %v4321
    %v4323 = vadd.f32 %v4283, %v4321
    %v4324 = vadd.f32 %v4284, %v4321
    %v4325 = vadd.f32 %v4285, %v4321
    %v4326 = vadd.f32 %v4286, %v4321
    %v4327 = vadd.f32 %v4287, %v4321
    %v4328 = vadd.f32 %v4288, %v4321
    %v4329 = vadd.f32 %v4289, %v4321
    %v4330 = vadd.f32 %v4290, %v4321
    %v4331 = vadd.f32 %v4291, %v4321
    %v4332 = vadd.f32 %v4292, %v4321
    %v4333 = vadd.f32 %v4293, %v4321
    %v4334 = vadd.f32 %v4294, %v4321
    %v4335 = vadd.f32 %v4295, %v4321
    %v4336 = vadd.f32 %v4296, %v4321
    %v4337 = vadd.f32 %v4297, %v4321
    %v4338 = vadd.f32 %v4298, %v4321
    %v4339 = vadd.f32 %v4299, %v4321
    %v4340 = vadd.f32 %v4300, %v4321
    %v4341 = vadd.f32 %v4301, %v4321
    %v4342 = vadd.f32 %v4302, %v4321
    %v4343 = vadd.f32 %v4303, %v4321
    %v4344 = vadd.f32 %v4304, %v4321
    %v4345 = vadd.f32 %v4305, %v4321
    %v4346 = vadd.f32 %v4306, %v4321
    %v4347 = vadd.f32 %v4307, %v4321
    %v4348 = vadd.f32 %v4308, %v4321
    %v4349 = vadd.f32 %v4309, %v4321
    %v4350 = vadd.f32 %v4310, %v4321
    %v4351 = vadd.f32 %v4311, %v4321
    %v4352 = vadd.f32 %v4312, %v4321
    %v4353 = vadd.f32 %v4313, %v4321
    %v4354 = vadd.f32 %v4314, %v4321
    %v4355 = vadd.f32 %v4315, %v4321
    %v4356 = vadd.f32 %v4316, %v4321
    %v4357 = vadd.f32 %v4317, %v4321
    %v4358 = vadd.f32 %v4318, %v4321
    %v4359 = vadd.f32 %v4319, %v4321
    %v4360 = vadd.f32 %v4320, %v4321
    %4361 = vst.msk [vmem:[#allocation3] sm:$0xff] %vm2034, %v4322
    %4362 = vst.msk [vmem:[#allocation3 + $0x8] sm:$0xff] %vm2034, %v4323
    %4363 = vst.msk [vmem:[#allocation3 + $0x10] sm:$0xff] %vm2034, %v4324
    %4364 = vst.msk [vmem:[#allocation3 + $0x18] sm:$0xff] %vm2034, %v4325
    %4365 = vst.msk [vmem:[#allocation3 + $0x20] sm:$0xff] %vm2034, %v4326
    %4366 = vst.msk [vmem:[#allocation3 + $0x28] sm:$0xff] %vm2034, %v4327
    %4367 = vst.msk [vmem:[#allocation3 + $0x30] sm:$0xff] %vm2034, %v4328
    %4368 = vst.msk [vmem:[#allocation3 + $0x38] sm:$0xff] %vm2034, %v4329
    %4369 = vst.msk [vmem:[#allocation3 + $0x40] sm:$0xff] %vm2034, %v4330
    %4370 = vst.msk [vmem:[#allocation3 + $0x48] sm:$0xff] %vm2034, %v4331
    %4371 = vst.msk [vmem:[#allocation3 + $0x50] sm:$0xff] %vm2034, %v4332
    %4372 = vst.msk [vmem:[#allocation3 + $0x58] sm:$0xff] %vm2034, %v4333
    %4373 = vst.msk [vmem:[#allocation3 + $0x60] sm:$0xff] %vm2034, %v4334
    %4374 = vst.msk [vmem:[#allocation3 + $0x68] sm:$0xff] %vm2034, %v4335
    %4375 = vst.msk [vmem:[#allocation3 + $0x70] sm:$0xff] %vm2034, %v4336
    %4376 = vst.msk [vmem:[#allocation3 + $0x78] sm:$0xff] %vm2034, %v4337
    %4377 = vst.msk [vmem:[#allocation3 + $0x80] sm:$0xff] %vm2034, %v4338
    %4378 = vst.msk [vmem:[#allocation3 + $0x88] sm:$0xff] %vm2034, %v4339
    %4379 = vst.msk [vmem:[#allocation3 + $0x90] sm:$0xff] %vm2034, %v4340
    %4380 = vst.msk [vmem:[#allocation3 + $0x98] sm:$0xff] %vm2034, %v4341
    %4381 = vst.msk [vmem:[#allocation3 + $0xa0] sm:$0xff] %vm2034, %v4342
    %4382 = vst.msk [vmem:[#allocation3 + $0xa8] sm:$0xff] %vm2034, %v4343
    %4383 = vst.msk [vmem:[#allocation3 + $0xb0] sm:$0xff] %vm2034, %v4344
    %4384 = vst.msk [vmem:[#allocation3 + $0xb8] sm:$0xff] %vm2034, %v4345
    %4385 = vst.msk [vmem:[#allocation3 + $0xc0] sm:$0xff] %vm2034, %v4346
    %4386 = vst.msk [vmem:[#allocation3 + $0xc8] sm:$0xff] %vm2034, %v4347
    %4387 = vst.msk [vmem:[#allocation3 + $0xd0] sm:$0xff] %vm2034, %v4348
    %4388 = vst.msk [vmem:[#allocation3 + $0xd8] sm:$0xff] %vm2034, %v4349
    %4389 = vst.msk [vmem:[#allocation3 + $0xe0] sm:$0xff] %vm2034, %v4350
    %4390 = vst.msk [vmem:[#allocation3 + $0xe8] sm:$0xff] %vm2034, %v4351
    %4391 = vst.msk [vmem:[#allocation3 + $0xf0] sm:$0xff] %vm2034, %v4352
    %4392 = vst.msk [vmem:[#allocation3 + $0xf8] sm:$0xff] %vm2034, %v4353
    %4393 = vst.msk [vmem:[#allocation3 + $0x100] sm:$0xff] %vm2034, %v4354
    %4394 = vst.msk [vmem:[#allocation3 + $0x108] sm:$0xff] %vm2034, %v4355
    %4395 = vst.msk [vmem:[#allocation3 + $0x110] sm:$0xff] %vm2034, %v4356
    %4396 = vst.msk [vmem:[#allocation3 + $0x118] sm:$0xff] %vm2034, %v4357
    %4397 = vst.msk [vmem:[#allocation3 + $0x120] sm:$0xff] %vm2034, %v4358
    %4398 = vst.msk [vmem:[#allocation3 + $0x128] sm:$0xff] %vm2034, %v4359
    %vm4399 = vcmask 259072
    %4400 = vst.msk [vmem:[#allocation3 + $0x130] sm:$0x3f] %vm4399, %v4360
    %v4401 = vld [vmem:[#allocation3] sm:$0xff]
    %v4402 = vld [vmem:[#allocation3 + $0x8] sm:$0xff]
    %v4403 = vld [vmem:[#allocation3 + $0x10] sm:$0xff]
    %v4404 = vld [vmem:[#allocation3 + $0x18] sm:$0xff]
    %v4405 = vld [vmem:[#allocation3 + $0x20] sm:$0xff]
    %v4406 = vld [vmem:[#allocation3 + $0x28] sm:$0xff]
    %v4407 = vld [vmem:[#allocation3 + $0x30] sm:$0xff]
    %v4408 = vld [vmem:[#allocation3 + $0x38] sm:$0xff]
    %v4409 = vld [vmem:[#allocation3 + $0x40] sm:$0xff]
    %v4410 = vld [vmem:[#allocation3 + $0x48] sm:$0xff]
    %v4411 = vld [vmem:[#allocation3 + $0x50] sm:$0xff]
    %v4412 = vld [vmem:[#allocation3 + $0x58] sm:$0xff]
    %v4413 = vld [vmem:[#allocation3 + $0x60] sm:$0xff]
    %v4414 = vld [vmem:[#allocation3 + $0x68] sm:$0xff]
    %v4415 = vld [vmem:[#allocation3 + $0x70] sm:$0xff]
    %v4416 = vld [vmem:[#allocation3 + $0x78] sm:$0xff]
    %v4417 = vld [vmem:[#allocation3 + $0x80] sm:$0xff]
    %v4418 = vld [vmem:[#allocation3 + $0x88] sm:$0xff]
    %v4419 = vld [vmem:[#allocation3 + $0x90] sm:$0xff]
    %v4420 = vld [vmem:[#allocation3 + $0x98] sm:$0xff]
    %v4421 = vld [vmem:[#allocation3 + $0xa0] sm:$0xff]
    %v4422 = vld [vmem:[#allocation3 + $0xa8] sm:$0xff]
    %v4423 = vld [vmem:[#allocation3 + $0xb0] sm:$0xff]
    %v4424 = vld [vmem:[#allocation3 + $0xb8] sm:$0xff]
    %v4425 = vld [vmem:[#allocation3 + $0xc0] sm:$0xff]
    %v4426 = vld [vmem:[#allocation3 + $0xc8] sm:$0xff]
    %v4427 = vld [vmem:[#allocation3 + $0xd0] sm:$0xff]
    %v4428 = vld [vmem:[#allocation3 + $0xd8] sm:$0xff]
    %v4429 = vld [vmem:[#allocation3 + $0xe0] sm:$0xff]
    %v4430 = vld [vmem:[#allocation3 + $0xe8] sm:$0xff]
    %v4431 = vld [vmem:[#allocation3 + $0xf0] sm:$0xff]
    %v4432 = vld [vmem:[#allocation3 + $0xf8] sm:$0xff]
    %v4433 = vld [vmem:[#allocation3 + $0x100] sm:$0xff]
    %v4434 = vld [vmem:[#allocation3 + $0x108] sm:$0xff]
    %v4435 = vld [vmem:[#allocation3 + $0x110] sm:$0xff]
    %v4436 = vld [vmem:[#allocation3 + $0x118] sm:$0xff]
    %v4437 = vld [vmem:[#allocation3 + $0x120] sm:$0xff]
    %v4438 = vld [vmem:[#allocation3 + $0x1] sm:$0xff]
    %v4439 = vld [vmem:[#allocation3 + $0x9] sm:$0xff]
    %v4440 = vld [vmem:[#allocation3 + $0x11] sm:$0xff]
    %v4441 = vld [vmem:[#allocation3 + $0x19] sm:$0xff]
    %v4442 = vld [vmem:[#allocation3 + $0x21] sm:$0xff]
    %v4443 = vld [vmem:[#allocation3 + $0x29] sm:$0xff]
    %v4444 = vld [vmem:[#allocation3 + $0x31] sm:$0xff]
    %v4445 = vld [vmem:[#allocation3 + $0x39] sm:$0xff]
    %v4446 = vld [vmem:[#allocation3 + $0x41] sm:$0xff]
    %v4447 = vld [vmem:[#allocation3 + $0x49] sm:$0xff]
    %v4448 = vld [vmem:[#allocation3 + $0x51] sm:$0xff]
    %v4449 = vld [vmem:[#allocation3 + $0x59] sm:$0xff]
    %v4450 = vld [vmem:[#allocation3 + $0x61] sm:$0xff]
    %v4451 = vld [vmem:[#allocation3 + $0x69] sm:$0xff]
    %v4452 = vld [vmem:[#allocation3 + $0x71] sm:$0xff]
    %v4453 = vld [vmem:[#allocation3 + $0x79] sm:$0xff]
    %v4454 = vld [vmem:[#allocation3 + $0x81] sm:$0xff]
    %v4455 = vld [vmem:[#allocation3 + $0x89] sm:$0xff]
    %v4456 = vld [vmem:[#allocation3 + $0x91] sm:$0xff]
    %v4457 = vld [vmem:[#allocation3 + $0x99] sm:$0xff]
    %v4458 = vld [vmem:[#allocation3 + $0xa1] sm:$0xff]
    %v4459 = vld [vmem:[#allocation3 + $0xa9] sm:$0xff]
    %v4460 = vld [vmem:[#allocation3 + $0xb1] sm:$0xff]
    %v4461 = vld [vmem:[#allocation3 + $0xb9] sm:$0xff]
    %v4462 = vld [vmem:[#allocation3 + $0xc1] sm:$0xff]
    %v4463 = vld [vmem:[#allocation3 + $0xc9] sm:$0xff]
    %v4464 = vld [vmem:[#allocation3 + $0xd1] sm:$0xff]
    %v4465 = vld [vmem:[#allocation3 + $0xd9] sm:$0xff]
    %v4466 = vld [vmem:[#allocation3 + $0xe1] sm:$0xff]
    %v4467 = vld [vmem:[#allocation3 + $0xe9] sm:$0xff]
    %v4468 = vld [vmem:[#allocation3 + $0xf1] sm:$0xff]
    %v4469 = vld [vmem:[#allocation3 + $0xf9] sm:$0xff]
    %v4470 = vld [vmem:[#allocation3 + $0x101] sm:$0xff]
    %v4471 = vld [vmem:[#allocation3 + $0x109] sm:$0xff]
    %v4472 = vld [vmem:[#allocation3 + $0x111] sm:$0xff]
    %v4473 = vld [vmem:[#allocation3 + $0x119] sm:$0xff]
    %v4474 = vld [vmem:[#allocation3 + $0x121] sm:$0xff]
    %v4475 = vmax.f32 %v4401, %v4438
    %v4476 = vmax.f32 %v4402, %v4439
    %v4477 = vmax.f32 %v4403, %v4440
    %v4478 = vmax.f32 %v4404, %v4441
    %v4479 = vmax.f32 %v4405, %v4442
    %v4480 = vmax.f32 %v4406, %v4443
    %v4481 = vmax.f32 %v4407, %v4444
    %v4482 = vmax.f32 %v4408, %v4445
    %v4483 = vmax.f32 %v4409, %v4446
    %v4484 = vmax.f32 %v4410, %v4447
    %v4485 = vmax.f32 %v4411, %v4448
    %v4486 = vmax.f32 %v4412, %v4449
    %v4487 = vmax.f32 %v4413, %v4450
    %v4488 = vmax.f32 %v4414, %v4451
    %v4489 = vmax.f32 %v4415, %v4452
    %v4490 = vmax.f32 %v4416, %v4453
    %v4491 = vmax.f32 %v4417, %v4454
    %v4492 = vmax.f32 %v4418, %v4455
    %v4493 = vmax.f32 %v4419, %v4456
    %v4494 = vmax.f32 %v4420, %v4457
    %v4495 = vmax.f32 %v4421, %v4458
    %v4496 = vmax.f32 %v4422, %v4459
    %v4497 = vmax.f32 %v4423, %v4460
    %v4498 = vmax.f32 %v4424, %v4461
    %v4499 = vmax.f32 %v4425, %v4462
    %v4500 = vmax.f32 %v4426, %v4463
    %v4501 = vmax.f32 %v4427, %v4464
    %v4502 = vmax.f32 %v4428, %v4465
    %v4503 = vmax.f32 %v4429, %v4466
    %v4504 = vmax.f32 %v4430, %v4467
    %v4505 = vmax.f32 %v4431, %v4468
    %v4506 = vmax.f32 %v4432, %v4469
    %v4507 = vmax.f32 %v4433, %v4470
    %v4508 = vmax.f32 %v4434, %v4471
    %v4509 = vmax.f32 %v4435, %v4472
    %v4510 = vmax.f32 %v4436, %v4473
    %v4511 = vmax.f32 %v4437, %v4474
    %v4512 = vld [vmem:[#allocation3 + $0xd] sm:$0xff]
    %v4513 = vld [vmem:[#allocation3 + $0x15] sm:$0xff]
    %v4514 = vld [vmem:[#allocation3 + $0x1d] sm:$0xff]
    %v4515 = vld [vmem:[#allocation3 + $0x25] sm:$0xff]
    %v4516 = vld [vmem:[#allocation3 + $0x2d] sm:$0xff]
    %v4517 = vld [vmem:[#allocation3 + $0x35] sm:$0xff]
    %v4518 = vld [vmem:[#allocation3 + $0x3d] sm:$0xff]
    %v4519 = vld [vmem:[#allocation3 + $0x45] sm:$0xff]
    %v4520 = vld [vmem:[#allocation3 + $0x4d] sm:$0xff]
    %v4521 = vld [vmem:[#allocation3 + $0x55] sm:$0xff]
    %v4522 = vld [vmem:[#allocation3 + $0x5d] sm:$0xff]
    %v4523 = vld [vmem:[#allocation3 + $0x65] sm:$0xff]
    %v4524 = vld [vmem:[#allocation3 + $0x6d] sm:$0xff]
    %v4525 = vld [vmem:[#allocation3 + $0x75] sm:$0xff]
    %v4526 = vld [vmem:[#allocation3 + $0x7d] sm:$0xff]
    %v4527 = vld [vmem:[#allocation3 + $0x85] sm:$0xff]
    %v4528 = vld [vmem:[#allocation3 + $0x8d] sm:$0xff]
    %v4529 = vld [vmem:[#allocation3 + $0x95] sm:$0xff]
    %v4530 = vld [vmem:[#allocation3 + $0x9d] sm:$0xff]
    %v4531 = vld [vmem:[#allocation3 + $0xa5] sm:$0xff]
    %v4532 = vld [vmem:[#allocation3 + $0xad] sm:$0xff]
    %v4533 = vld [vmem:[#allocation3 + $0xb5] sm:$0xff]
    %v4534 = vld [vmem:[#allocation3 + $0xbd] sm:$0xff]
    %v4535 = vld [vmem:[#allocation3 + $0xc5] sm:$0xff]
    %v4536 = vld [vmem:[#allocation3 + $0xcd] sm:$0xff]
    %v4537 = vld [vmem:[#allocation3 + $0xd5] sm:$0xff]
    %v4538 = vld [vmem:[#allocation3 + $0xdd] sm:$0xff]
    %v4539 = vld [vmem:[#allocation3 + $0xe5] sm:$0xff]
    %v4540 = vld [vmem:[#allocation3 + $0xed] sm:$0xff]
    %v4541 = vld [vmem:[#allocation3 + $0xf5] sm:$0xff]
    %v4542 = vld [vmem:[#allocation3 + $0xfd] sm:$0xff]
    %v4543 = vld [vmem:[#allocation3 + $0x105] sm:$0xff]
    %v4544 = vld [vmem:[#allocation3 + $0x10d] sm:$0xff]
    %v4545 = vld [vmem:[#allocation3 + $0x115] sm:$0xff]
    %v4546 = vld [vmem:[#allocation3 + $0x11d] sm:$0xff]
    %v4547 = vld [vmem:[#allocation3 + $0x125] sm:$0xff]
    %v4548 = vld [vmem:[#allocation3 + $0x12d] sm:$0xff]
    %v4549 = vld [vmem:[#allocation3 + $0xe] sm:$0xff]
    %v4550 = vld [vmem:[#allocation3 + $0x16] sm:$0xff]
    %v4551 = vld [vmem:[#allocation3 + $0x1e] sm:$0xff]
    %v4552 = vld [vmem:[#allocation3 + $0x26] sm:$0xff]
    %v4553 = vld [vmem:[#allocation3 + $0x2e] sm:$0xff]
    %v4554 = vld [vmem:[#allocation3 + $0x36] sm:$0xff]
    %v4555 = vld [vmem:[#allocation3 + $0x3e] sm:$0xff]
    %v4556 = vld [vmem:[#allocation3 + $0x46] sm:$0xff]
    %v4557 = vld [vmem:[#allocation3 + $0x4e] sm:$0xff]
    %v4558 = vld [vmem:[#allocation3 + $0x56] sm:$0xff]
    %v4559 = vld [vmem:[#allocation3 + $0x5e] sm:$0xff]
    %v4560 = vld [vmem:[#allocation3 + $0x66] sm:$0xff]
    %v4561 = vld [vmem:[#allocation3 + $0x6e] sm:$0xff]
    %v4562 = vld [vmem:[#allocation3 + $0x76] sm:$0xff]
    %v4563 = vld [vmem:[#allocation3 + $0x7e] sm:$0xff]
    %v4564 = vld [vmem:[#allocation3 + $0x86] sm:$0xff]
    %v4565 = vld [vmem:[#allocation3 + $0x8e] sm:$0xff]
    %v4566 = vld [vmem:[#allocation3 + $0x96] sm:$0xff]
    %v4567 = vld [vmem:[#allocation3 + $0x9e] sm:$0xff]
    %v4568 = vld [vmem:[#allocation3 + $0xa6] sm:$0xff]
    %v4569 = vld [vmem:[#allocation3 + $0xae] sm:$0xff]
    %v4570 = vld [vmem:[#allocation3 + $0xb6] sm:$0xff]
    %v4571 = vld [vmem:[#allocation3 + $0xbe] sm:$0xff]
    %v4572 = vld [vmem:[#allocation3 + $0xc6] sm:$0xff]
    %v4573 = vld [vmem:[#allocation3 + $0xce] sm:$0xff]
    %v4574 = vld [vmem:[#allocation3 + $0xd6] sm:$0xff]
    %v4575 = vld [vmem:[#allocation3 + $0xde] sm:$0xff]
    %v4576 = vld [vmem:[#allocation3 + $0xe6] sm:$0xff]
    %v4577 = vld [vmem:[#allocation3 + $0xee] sm:$0xff]
    %v4578 = vld [vmem:[#allocation3 + $0xf6] sm:$0xff]
    %v4579 = vld [vmem:[#allocation3 + $0xfe] sm:$0xff]
    %v4580 = vld [vmem:[#allocation3 + $0x106] sm:$0xff]
    %v4581 = vld [vmem:[#allocation3 + $0x10e] sm:$0xff]
    %v4582 = vld [vmem:[#allocation3 + $0x116] sm:$0xff]
    %v4583 = vld [vmem:[#allocation3 + $0x11e] sm:$0xff]
    %v4584 = vld [vmem:[#allocation3 + $0x126] sm:$0xff]
    %v4585 = vld [vmem:[#allocation3 + $0x12e] sm:$0xff]
    %v4586 = vmax.f32 %v4512, %v4549
    %v4587 = vmax.f32 %v4513, %v4550
    %v4588 = vmax.f32 %v4514, %v4551
    %v4589 = vmax.f32 %v4515, %v4552
    %v4590 = vmax.f32 %v4516, %v4553
    %v4591 = vmax.f32 %v4517, %v4554
    %v4592 = vmax.f32 %v4518, %v4555
    %v4593 = vmax.f32 %v4519, %v4556
    %v4594 = vmax.f32 %v4520, %v4557
    %v4595 = vmax.f32 %v4521, %v4558
    %v4596 = vmax.f32 %v4522, %v4559
    %v4597 = vmax.f32 %v4523, %v4560
    %v4598 = vmax.f32 %v4524, %v4561
    %v4599 = vmax.f32 %v4525, %v4562
    %v4600 = vmax.f32 %v4526, %v4563
    %v4601 = vmax.f32 %v4527, %v4564
    %v4602 = vmax.f32 %v4528, %v4565
    %v4603 = vmax.f32 %v4529, %v4566
    %v4604 = vmax.f32 %v4530, %v4567
    %v4605 = vmax.f32 %v4531, %v4568
    %v4606 = vmax.f32 %v4532, %v4569
    %v4607 = vmax.f32 %v4533, %v4570
    %v4608 = vmax.f32 %v4534, %v4571
    %v4609 = vmax.f32 %v4535, %v4572
    %v4610 = vmax.f32 %v4536, %v4573
    %v4611 = vmax.f32 %v4537, %v4574
    %v4612 = vmax.f32 %v4538, %v4575
    %v4613 = vmax.f32 %v4539, %v4576
    %v4614 = vmax.f32 %v4540, %v4577
    %v4615 = vmax.f32 %v4541, %v4578
    %v4616 = vmax.f32 %v4542, %v4579
    %v4617 = vmax.f32 %v4543, %v4580
    %v4618 = vmax.f32 %v4544, %v4581
    %v4619 = vmax.f32 %v4545, %v4582
    %v4620 = vmax.f32 %v4546, %v4583
    %v4621 = vmax.f32 %v4547, %v4584
    %v4622 = vmax.f32 %v4548, %v4585
    %v4623 = vmax.f32 %v4475, %v4586
    %v4624 = vmax.f32 %v4476, %v4587
    %v4625 = vmax.f32 %v4477, %v4588
    %v4626 = vmax.f32 %v4478, %v4589
    %v4627 = vmax.f32 %v4479, %v4590
    %v4628 = vmax.f32 %v4480, %v4591
    %v4629 = vmax.f32 %v4481, %v4592
    %v4630 = vmax.f32 %v4482, %v4593
    %v4631 = vmax.f32 %v4483, %v4594
    %v4632 = vmax.f32 %v4484, %v4595
    %v4633 = vmax.f32 %v4485, %v4596
    %v4634 = vmax.f32 %v4486, %v4597
    %v4635 = vmax.f32 %v4487, %v4598
    %v4636 = vmax.f32 %v4488, %v4599
    %v4637 = vmax.f32 %v4489, %v4600
    %v4638 = vmax.f32 %v4490, %v4601
    %v4639 = vmax.f32 %v4491, %v4602
    %v4640 = vmax.f32 %v4492, %v4603
    %v4641 = vmax.f32 %v4493, %v4604
    %v4642 = vmax.f32 %v4494, %v4605
    %v4643 = vmax.f32 %v4495, %v4606
    %v4644 = vmax.f32 %v4496, %v4607
    %v4645 = vmax.f32 %v4497, %v4608
    %v4646 = vmax.f32 %v4498, %v4609
    %v4647 = vmax.f32 %v4499, %v4610
    %v4648 = vmax.f32 %v4500, %v4611
    %v4649 = vmax.f32 %v4501, %v4612
    %v4650 = vmax.f32 %v4502, %v4613
    %v4651 = vmax.f32 %v4503, %v4614
    %v4652 = vmax.f32 %v4504, %v4615
    %v4653 = vmax.f32 %v4505, %v4616
    %v4654 = vmax.f32 %v4506, %v4617
    %v4655 = vmax.f32 %v4507, %v4618
    %v4656 = vmax.f32 %v4508, %v4619
    %v4657 = vmax.f32 %v4509, %v4620
    %v4658 = vmax.f32 %v4510, %v4621
    %v4659 = vmax.f32 %v4511, %v4622
    %4660 = vst.msk [vmem:[#allocation4] sm:$0xff] %vm2034, %v4623
    %4661 = vst.msk [vmem:[#allocation4 + $0x8] sm:$0xff] %vm2034, %v4624
    %4662 = vst.msk [vmem:[#allocation4 + $0x10] sm:$0xff] %vm2034, %v4625
    %4663 = vst.msk [vmem:[#allocation4 + $0x18] sm:$0xff] %vm2034, %v4626
    %4664 = vst.msk [vmem:[#allocation4 + $0x20] sm:$0xff] %vm2034, %v4627
    %4665 = vst.msk [vmem:[#allocation4 + $0x28] sm:$0xff] %vm2034, %v4628
    %4666 = vst.msk [vmem:[#allocation4 + $0x30] sm:$0xff] %vm2034, %v4629
    %4667 = vst.msk [vmem:[#allocation4 + $0x38] sm:$0xff] %vm2034, %v4630
    %4668 = vst.msk [vmem:[#allocation4 + $0x40] sm:$0xff] %vm2034, %v4631
    %4669 = vst.msk [vmem:[#allocation4 + $0x48] sm:$0xff] %vm2034, %v4632
    %4670 = vst.msk [vmem:[#allocation4 + $0x50] sm:$0xff] %vm2034, %v4633
    %4671 = vst.msk [vmem:[#allocation4 + $0x58] sm:$0xff] %vm2034, %v4634
    %4672 = vst.msk [vmem:[#allocation4 + $0x60] sm:$0xff] %vm2034, %v4635
    %4673 = vst.msk [vmem:[#allocation4 + $0x68] sm:$0xff] %vm2034, %v4636
    %4674 = vst.msk [vmem:[#allocation4 + $0x70] sm:$0xff] %vm2034, %v4637
    %4675 = vst.msk [vmem:[#allocation4 + $0x78] sm:$0xff] %vm2034, %v4638
    %4676 = vst.msk [vmem:[#allocation4 + $0x80] sm:$0xff] %vm2034, %v4639
    %4677 = vst.msk [vmem:[#allocation4 + $0x88] sm:$0xff] %vm2034, %v4640
    %4678 = vst.msk [vmem:[#allocation4 + $0x90] sm:$0xff] %vm2034, %v4641
    %4679 = vst.msk [vmem:[#allocation4 + $0x98] sm:$0xff] %vm2034, %v4642
    %4680 = vst.msk [vmem:[#allocation4 + $0xa0] sm:$0xff] %vm2034, %v4643
    %4681 = vst.msk [vmem:[#allocation4 + $0xa8] sm:$0xff] %vm2034, %v4644
    %4682 = vst.msk [vmem:[#allocation4 + $0xb0] sm:$0xff] %vm2034, %v4645
    %4683 = vst.msk [vmem:[#allocation4 + $0xb8] sm:$0xff] %vm2034, %v4646
    %4684 = vst.msk [vmem:[#allocation4 + $0xc0] sm:$0xff] %vm2034, %v4647
    %4685 = vst.msk [vmem:[#allocation4 + $0xc8] sm:$0xff] %vm2034, %v4648
    %4686 = vst.msk [vmem:[#allocation4 + $0xd0] sm:$0xff] %vm2034, %v4649
    %4687 = vst.msk [vmem:[#allocation4 + $0xd8] sm:$0xff] %vm2034, %v4650
    %4688 = vst.msk [vmem:[#allocation4 + $0xe0] sm:$0xff] %vm2034, %v4651
    %4689 = vst.msk [vmem:[#allocation4 + $0xe8] sm:$0xff] %vm2034, %v4652
    %4690 = vst.msk [vmem:[#allocation4 + $0xf0] sm:$0xff] %vm2034, %v4653
    %4691 = vst.msk [vmem:[#allocation4 + $0xf8] sm:$0xff] %vm2034, %v4654
    %4692 = vst.msk [vmem:[#allocation4 + $0x100] sm:$0xff] %vm2034, %v4655
    %4693 = vst.msk [vmem:[#allocation4 + $0x108] sm:$0xff] %vm2034, %v4656
    %4694 = vst.msk [vmem:[#allocation4 + $0x110] sm:$0xff] %vm2034, %v4657
    %4695 = vst.msk [vmem:[#allocation4 + $0x118] sm:$0xff] %vm2034, %v4658
    %4696 = vst.msk [vmem:[#allocation4 + $0x120] sm:$0xff] %vm2034, %v4659
    %v4697 = vld [vmem:[#allocation4] sm:$0x1]
    %v4698 = vld [vmem:[#allocation4 + $0x2] sm:$0x1]
    %v4699 = vld [vmem:[#allocation4 + $0x4] sm:$0x1]
    %v4700 = vld [vmem:[#allocation4 + $0x6] sm:$0x1]
    %v4701 = vld [vmem:[#allocation4 + $0x8] sm:$0x1]
    %v4702 = vld [vmem:[#allocation4 + $0x1a] sm:$0x1]
    %v4703 = vld [vmem:[#allocation4 + $0x1c] sm:$0x1]
    %v4704 = vld [vmem:[#allocation4 + $0x1e] sm:$0x1]
    %v4705 = vld [vmem:[#allocation4 + $0x20] sm:$0x1]
    %v4706 = vld [vmem:[#allocation4 + $0x22] sm:$0x1]
    %v4707 = vld [vmem:[#allocation4 + $0x34] sm:$0x1]
    %v4708 = vld [vmem:[#allocation4 + $0x36] sm:$0x1]
    %v4709 = vld [vmem:[#allocation4 + $0x38] sm:$0x1]
    %v4710 = vld [vmem:[#allocation4 + $0x3a] sm:$0x1]
    %v4711 = vld [vmem:[#allocation4 + $0x3c] sm:$0x1]
    %v4712 = vld [vmem:[#allocation4 + $0x4e] sm:$0x1]
    %v4713 = vld [vmem:[#allocation4 + $0x50] sm:$0x1]
    %v4714 = vld [vmem:[#allocation4 + $0x52] sm:$0x1]
    %v4715 = vld [vmem:[#allocation4 + $0x54] sm:$0x1]
    %v4716 = vld [vmem:[#allocation4 + $0x56] sm:$0x1]
    %v4717 = vld [vmem:[#allocation4 + $0x68] sm:$0x1]
    %v4718 = vld [vmem:[#allocation4 + $0x6a] sm:$0x1]
    %v4719 = vld [vmem:[#allocation4 + $0x6c] sm:$0x1]
    %v4720 = vld [vmem:[#allocation4 + $0x6e] sm:$0x1]
    %v4721 = vld [vmem:[#allocation4 + $0x70] sm:$0x1]
    %4723 = vrot.lane.b32.xlu0 %v4698, 32
    %v4724 = vpop.permute.xlu0 %4723
    %4727 = vrot.lane.b32.xlu0 %v4699, 64
    %v4728 = vpop.permute.xlu0 %4727
    %4731 = vrot.lane.b32.xlu0 %v4700, 96
    %v4732 = vpop.permute.xlu0 %4731
    %4735 = vrot.lane.b32.xlu0 %v4702, 32
    %v4736 = vpop.permute.xlu0 %4735
    %4739 = vrot.lane.b32.xlu0 %v4703, 64
    %v4740 = vpop.permute.xlu0 %4739
    %4743 = vrot.lane.b32.xlu0 %v4704, 96
    %v4744 = vpop.permute.xlu0 %4743
    %4747 = vrot.lane.b32.xlu0 %v4706, 32
    %v4748 = vpop.permute.xlu0 %4747
    %4751 = vrot.lane.b32.xlu0 %v4707, 64
    %v4752 = vpop.permute.xlu0 %4751
    %4755 = vrot.lane.b32.xlu0 %v4708, 96
    %v4756 = vpop.permute.xlu0 %4755
    %4759 = vrot.lane.b32.xlu0 %v4710, 32
    %v4760 = vpop.permute.xlu0 %4759
    %4763 = vrot.lane.b32.xlu0 %v4711, 64
    %v4764 = vpop.permute.xlu0 %4763
    %4767 = vrot.lane.b32.xlu0 %v4712, 96
    %v4768 = vpop.permute.xlu0 %4767
    %v4770 = vsel %vm2034, %v4697, %v4724
    %v4771 = vsel %vm3456, %v4770, %v4728
    %v4772 = vsel %vm3496, %v4771, %v4732
    %v4773 = vsel %vm2034, %v4701, %v4736
    %v4774 = vsel %vm3456, %v4773, %v4740
    %v4775 = vsel %vm3496, %v4774, %v4744
    %v4776 = vsel %vm2034, %v4705, %v4748
    %v4777 = vsel %vm3456, %v4776, %v4752
    %v4778 = vsel %vm3496, %v4777, %v4756
    %v4779 = vsel %vm2034, %v4709, %v4760
    %v4780 = vsel %vm3456, %v4779, %v4764
    %v4781 = vsel %vm3496, %v4780, %v4768
    %4783 = vrot.lane.b32.xlu0 %v4714, 32
    %v4784 = vpop.permute.xlu0 %4783
    %4787 = vrot.lane.b32.xlu0 %v4715, 64
    %v4788 = vpop.permute.xlu0 %4787
    %4791 = vrot.lane.b32.xlu0 %v4716, 96
    %v4792 = vpop.permute.xlu0 %4791
    %4795 = vrot.lane.b32.xlu0 %v4718, 32
    %v4796 = vpop.permute.xlu0 %4795
    %4799 = vrot.lane.b32.xlu0 %v4719, 64
    %v4800 = vpop.permute.xlu0 %4799
    %4803 = vrot.lane.b32.xlu0 %v4720, 96
    %v4804 = vpop.permute.xlu0 %4803
    %v4806 = vsel %vm2034, %v4713, %v4784
    %v4807 = vsel %vm3456, %v4806, %v4788
    %v4808 = vsel %vm3496, %v4807, %v4792
    %v4809 = vsel %vm2034, %v4717, %v4796
    %v4810 = vsel %vm3456, %v4809, %v4800
    %v4811 = vsel %vm3496, %v4810, %v4804
    %v4812 = vld [vmem:[#allocation4 + $0xa9] sm:$0x1]
    %v4813 = vld [vmem:[#allocation4 + $0xab] sm:$0x1]
    %v4814 = vld [vmem:[#allocation4 + $0xad] sm:$0x1]
    %v4815 = vld [vmem:[#allocation4 + $0xaf] sm:$0x1]
    %v4816 = vld [vmem:[#allocation4 + $0xb1] sm:$0x1]
    %v4817 = vld [vmem:[#allocation4 + $0xc3] sm:$0x1]
    %v4818 = vld [vmem:[#allocation4 + $0xc5] sm:$0x1]
    %v4819 = vld [vmem:[#allocation4 + $0xc7] sm:$0x1]
    %v4820 = vld [vmem:[#allocation4 + $0xc9] sm:$0x1]
    %v4821 = vld [vmem:[#allocation4 + $0xcb] sm:$0x1]
    %v4822 = vld [vmem:[#allocation4 + $0xdd] sm:$0x1]
    %v4823 = vld [vmem:[#allocation4 + $0xdf] sm:$0x1]
    %v4824 = vld [vmem:[#allocation4 + $0xe1] sm:$0x1]
    %v4825 = vld [vmem:[#allocation4 + $0xe3] sm:$0x1]
    %v4826 = vld [vmem:[#allocation4 + $0xe5] sm:$0x1]
    %v4827 = vld [vmem:[#allocation4 + $0xf7] sm:$0x1]
    %v4828 = vld [vmem:[#allocation4 + $0xf9] sm:$0x1]
    %v4829 = vld [vmem:[#allocation4 + $0xfb] sm:$0x1]
    %v4830 = vld [vmem:[#allocation4 + $0xfd] sm:$0x1]
    %v4831 = vld [vmem:[#allocation4 + $0xff] sm:$0x1]
    %v4832 = vld [vmem:[#allocation4 + $0x111] sm:$0x1]
    %v4833 = vld [vmem:[#allocation4 + $0x113] sm:$0x1]
    %v4834 = vld [vmem:[#allocation4 + $0x115] sm:$0x1]
    %v4835 = vld [vmem:[#allocation4 + $0x117] sm:$0x1]
    %v4836 = vld [vmem:[#allocation4 + $0x119] sm:$0x1]
    %4838 = vrot.lane.b32.xlu0 %v4813, 32
    %v4839 = vpop.permute.xlu0 %4838
    %4842 = vrot.lane.b32.xlu0 %v4814, 64
    %v4843 = vpop.permute.xlu0 %4842
    %4846 = vrot.lane.b32.xlu0 %v4815, 96
    %v4847 = vpop.permute.xlu0 %4846
    %4850 = vrot.lane.b32.xlu0 %v4817, 32
    %v4851 = vpop.permute.xlu0 %4850
    %4854 = vrot.lane.b32.xlu0 %v4818, 64
    %v4855 = vpop.permute.xlu0 %4854
    %4858 = vrot.lane.b32.xlu0 %v4819, 96
    %v4859 = vpop.permute.xlu0 %4858
    %4862 = vrot.lane.b32.xlu0 %v4821, 32
    %v4863 = vpop.permute.xlu0 %4862
    %4866 = vrot.lane.b32.xlu0 %v4822, 64
    %v4867 = vpop.permute.xlu0 %4866
    %4870 = vrot.lane.b32.xlu0 %v4823, 96
    %v4871 = vpop.permute.xlu0 %4870
    %4874 = vrot.lane.b32.xlu0 %v4825, 32
    %v4875 = vpop.permute.xlu0 %4874
    %4878 = vrot.lane.b32.xlu0 %v4826, 64
    %v4879 = vpop.permute.xlu0 %4878
    %4882 = vrot.lane.b32.xlu0 %v4827, 96
    %v4883 = vpop.permute.xlu0 %4882
    %v4885 = vsel %vm2034, %v4812, %v4839
    %v4886 = vsel %vm3456, %v4885, %v4843
    %v4887 = vsel %vm3496, %v4886, %v4847
    %v4888 = vsel %vm2034, %v4816, %v4851
    %v4889 = vsel %vm3456, %v4888, %v4855
    %v4890 = vsel %vm3496, %v4889, %v4859
    %v4891 = vsel %vm2034, %v4820, %v4863
    %v4892 = vsel %vm3456, %v4891, %v4867
    %v4893 = vsel %vm3496, %v4892, %v4871
    %v4894 = vsel %vm2034, %v4824, %v4875
    %v4895 = vsel %vm3456, %v4894, %v4879
    %v4896 = vsel %vm3496, %v4895, %v4883
    %4898 = vrot.lane.b32.xlu0 %v4829, 32
    %v4899 = vpop.permute.xlu0 %4898
    %4902 = vrot.lane.b32.xlu0 %v4830, 64
    %v4903 = vpop.permute.xlu0 %4902
    %4906 = vrot.lane.b32.xlu0 %v4831, 96
    %v4907 = vpop.permute.xlu0 %4906
    %4910 = vrot.lane.b32.xlu0 %v4833, 32
    %v4911 = vpop.permute.xlu0 %4910
    %4914 = vrot.lane.b32.xlu0 %v4834, 64
    %v4915 = vpop.permute.xlu0 %4914
    %4918 = vrot.lane.b32.xlu0 %v4835, 96
    %v4919 = vpop.permute.xlu0 %4918
    %v4921 = vsel %vm2034, %v4828, %v4899
    %v4922 = vsel %vm3456, %v4921, %v4903
    %v4923 = vsel %vm3496, %v4922, %v4907
    %v4924 = vsel %vm2034, %v4832, %v4911
    %v4925 = vsel %vm3456, %v4924, %v4915
    %v4926 = vsel %vm3496, %v4925, %v4919
    %v4934 = vrot.slane %v4887, 7
    %v4935 = vrot.slane %v4890, 7
    %v4936 = vrot.slane %v4893, 7
    %v4937 = vrot.slane %v4896, 7
    %v4938 = vrot.slane %v4923, 7
    %v4939 = vrot.slane %v4926, 7
    %v4940 = vrot.slane %v4836, 7
    %vm4948 = vcmask 1040384
    %v4949 = vsel %vm4948, %v4772, %v4934
    %v4950 = vsel %vm4948, %v4775, %v4935
    %v4951 = vsel %vm4948, %v4778, %v4936
    %v4952 = vsel %vm4948, %v4781, %v4937
    %v4953 = vsel %vm4948, %v4808, %v4938
    %v4954 = vsel %vm4948, %v4811, %v4939
    %v4955 = vsel %vm4948, %v4721, %v4940
    %v4956 = vpack.c.bf16 %v4949, %v4949
    %v4957 = vpack.c.bf16 %v4950, %v4950
    %v4958 = vpack.c.bf16 %v4951, %v4951
    %v4959 = vpack.c.bf16 %v4952, %v4952
    %v4960 = vpack.c.bf16 %v4953, %v4953
    %v4961 = vpack.c.bf16 %v4954, %v4954
    %v4962 = vpack.c.bf16 %v4955, %v4955
    %v4963 = vld [vmem:[%s4] sm:$0xf]
    %v4964 = vld [vmem:[%s4 + $0x4] sm:$0xf]
    %v4965 = vld [vmem:[%s4 + $0x8] sm:$0xf]
    %v4966 = vld [vmem:[%s4 + $0xc] sm:$0xf]
    %v4967 = vld [vmem:[%s4 + $0x10] sm:$0xf]
    %v4968 = vld [vmem:[%s4 + $0x14] sm:$0xf]
    %v4969 = vld [vmem:[%s4 + $0x18] sm:$0xf]
    %v4970 = vld [vmem:[%s4 + $0x1c] sm:$0xf]
    %v4971 = vld [vmem:[%s4 + $0x20] sm:$0xf]
    %v4972 = vld [vmem:[%s4 + $0x24] sm:$0xf]
    %v4973 = vld [vmem:[%s4 + $0x28] sm:$0xf]
    %v4974 = vld [vmem:[%s4 + $0x2c] sm:$0xf]
    %v4975 = vld [vmem:[%s4 + $0x30] sm:$0xf]
    %v4976 = vld [vmem:[%s4 + $0x34] sm:$0xf]
    %v4977 = vld [vmem:[%s4 + $0x38] sm:$0xf]
    %v4978 = vld [vmem:[%s4 + $0x3c] sm:$0xf]
    %v4979 = vld [vmem:[%s4 + $0x40] sm:$0xf]
    %v4980 = vld [vmem:[%s4 + $0x44] sm:$0xf]
    %v4981 = vld [vmem:[%s4 + $0x48] sm:$0xf]
    %v4982 = vld [vmem:[%s4 + $0x4c] sm:$0xf]
    %v4983 = vld [vmem:[%s4 + $0x50] sm:$0xf]
    %v4984 = vld [vmem:[%s4 + $0x54] sm:$0xf]
    %v4985 = vld [vmem:[%s4 + $0x58] sm:$0xf]
    %v4986 = vld [vmem:[%s4 + $0x5c] sm:$0xf]
    %v4987 = vld [vmem:[%s4 + $0x60] sm:$0xf]
    %v4988 = vld [vmem:[%s4 + $0x64] sm:$0xf]
    %v4989 = vld [vmem:[%s4 + $0x68] sm:$0xf]
    %v4990 = vld [vmem:[%s4 + $0x6c] sm:$0xf]
    %v4991 = vld [vmem:[%s4 + $0x70] sm:$0xf]
    %v4992 = vld [vmem:[%s4 + $0x74] sm:$0xf]
    %v4993 = vld [vmem:[%s4 + $0x78] sm:$0xf]
    %v4994 = vld [vmem:[%s4 + $0x7c] sm:$0xf]
    %v4995 = vld [vmem:[%s4 + $0x80] sm:$0xf]
    %v4996 = vld [vmem:[%s4 + $0x84] sm:$0xf]
    %v4997 = vld [vmem:[%s4 + $0x88] sm:$0xf]
    %v4998 = vld [vmem:[%s4 + $0x8c] sm:$0xf]
    %v4999 = vld [vmem:[%s4 + $0x90] sm:$0xf]
    %v5000 = vld [vmem:[%s4 + $0x94] sm:$0xf]
    %v5001 = vld [vmem:[%s4 + $0x98] sm:$0xf]
    %v5002 = vld [vmem:[%s4 + $0x9c] sm:$0xf]
    %v5003 = vld [vmem:[%s4 + $0xa0] sm:$0xf]
    %v5004 = vld [vmem:[%s4 + $0xa4] sm:$0xf]
    %v5005 = vld [vmem:[%s4 + $0xa8] sm:$0xf]
    %v5006 = vld [vmem:[%s4 + $0xac] sm:$0xf]
    %v5007 = vld [vmem:[%s4 + $0xb0] sm:$0xf]
    %v5008 = vld [vmem:[%s4 + $0xb4] sm:$0xf]
    %v5009 = vld [vmem:[%s4 + $0xb8] sm:$0xf]
    %v5010 = vld [vmem:[%s4 + $0xbc] sm:$0xf]
    %v5011 = vld [vmem:[%s4 + $0xc0] sm:$0xf]
    %v5012 = vld [vmem:[%s4 + $0xc4] sm:$0xf]
    %v5013 = vld [vmem:[%s4 + $0xc8] sm:$0xf]
    %v5014 = vld [vmem:[%s4 + $0xcc] sm:$0xf]
    %v5015 = vld [vmem:[%s4 + $0xd0] sm:$0xf]
    %v5016 = vld [vmem:[%s4 + $0xd4] sm:$0xf]
    %v5017 = vld [vmem:[%s4 + $0xd8] sm:$0xf]
    %v5018 = vld [vmem:[%s4 + $0xdc] sm:$0xf]
    %v5019 = vld [vmem:[%s4 + $0xe0] sm:$0xf]
    %v5020 = vld [vmem:[%s4 + $0xe4] sm:$0xf]
    %v5021 = vld [vmem:[%s4 + $0xe8] sm:$0xf]
    %v5022 = vld [vmem:[%s4 + $0xec] sm:$0xf]
    %v5023 = vld [vmem:[%s4 + $0xf0] sm:$0xf]
    %v5024 = vld [vmem:[%s4 + $0xf4] sm:$0xf]
    %v5025 = vld [vmem:[%s4 + $0xf8] sm:$0xf]
    %v5026 = vld [vmem:[%s4 + $0xfc] sm:$0xf]
    %v5027 = vld [vmem:[%s4 + $0x100] sm:$0xf]
    %v5028 = vld [vmem:[%s4 + $0x104] sm:$0xf]
    %v5029 = vld [vmem:[%s4 + $0x108] sm:$0xf]
    %v5030 = vld [vmem:[%s4 + $0x10c] sm:$0xf]
    %v5031 = vld [vmem:[%s4 + $0x110] sm:$0xf]
    %v5032 = vld [vmem:[%s4 + $0x114] sm:$0xf]
    %v5033 = vld [vmem:[%s4 + $0x118] sm:$0xf]
    %v5034 = vld [vmem:[%s4 + $0x11c] sm:$0xf]
    %v5035 = vld [vmem:[%s4 + $0x120] sm:$0xf]
    %v5036 = vld [vmem:[%s4 + $0x124] sm:$0xf]
    %v5037 = vld [vmem:[%s4 + $0x128] sm:$0xf]
    %v5038 = vld [vmem:[%s4 + $0x12c] sm:$0xf]
    %v5039 = vld [vmem:[%s4 + $0x130] sm:$0xf]
    %v5040 = vld [vmem:[%s4 + $0x134] sm:$0xf]
    %v5041 = vld [vmem:[%s4 + $0x138] sm:$0xf]
    %v5042 = vld [vmem:[%s4 + $0x13c] sm:$0xf]
    %v5043 = vld [vmem:[%s4 + $0x140] sm:$0xf]
    %v5044 = vld [vmem:[%s4 + $0x144] sm:$0xf]
    %v5045 = vld [vmem:[%s4 + $0x148] sm:$0xf]
    %v5046 = vld [vmem:[%s4 + $0x14c] sm:$0xf]
    %v5047 = vld [vmem:[%s4 + $0x150] sm:$0xf]
    %v5048 = vld [vmem:[%s4 + $0x154] sm:$0xf]
    %v5049 = vld [vmem:[%s4 + $0x158] sm:$0xf]
    %v5050 = vld [vmem:[%s4 + $0x15c] sm:$0xf]
    %v5051 = vld [vmem:[%s4 + $0x160] sm:$0xf]
    %v5052 = vld [vmem:[%s4 + $0x164] sm:$0xf]
    %v5053 = vld [vmem:[%s4 + $0x168] sm:$0xf]
    %v5054 = vld [vmem:[%s4 + $0x16c] sm:$0xf]
    %v5055 = vld [vmem:[%s4 + $0x170] sm:$0xf]
    %v5056 = vld [vmem:[%s4 + $0x174] sm:$0xf]
    %v5057 = vld [vmem:[%s4 + $0x178] sm:$0xf]
    %v5058 = vld [vmem:[%s4 + $0x17c] sm:$0xf]
    %v5059 = vld [vmem:[%s4 + $0x180] sm:$0xf]
    %v5060 = vld [vmem:[%s4 + $0x184] sm:$0xf]
    %v5061 = vld [vmem:[%s4 + $0x188] sm:$0xf]
    %v5062 = vld [vmem:[%s4 + $0x18c] sm:$0xf]
    %v5063 = vperm.slane %v32, 0
    %v5164 = vunpack.c.l.b16 %v4963
    %v5165 = vunpack.c.l.b16 %v4964
    %v5166 = vunpack.c.l.b16 %v4965
    %v5167 = vunpack.c.l.b16 %v4966
    %v5168 = vunpack.c.l.b16 %v4967
    %v5169 = vunpack.c.l.b16 %v4968
    %v5170 = vunpack.c.l.b16 %v4969
    %v5171 = vunpack.c.l.b16 %v4970
    %v5172 = vunpack.c.l.b16 %v4971
    %v5173 = vunpack.c.l.b16 %v4972
    %v5174 = vunpack.c.l.b16 %v4973
    %v5175 = vunpack.c.l.b16 %v4974
    %v5176 = vunpack.c.l.b16 %v4975
    %v5177 = vunpack.c.l.b16 %v4976
    %v5178 = vunpack.c.l.b16 %v4977
    %v5179 = vunpack.c.l.b16 %v4978
    %v5180 = vunpack.c.l.b16 %v4979
    %v5181 = vunpack.c.l.b16 %v4980
    %v5182 = vunpack.c.l.b16 %v4981
    %v5183 = vunpack.c.l.b16 %v4982
    %v5184 = vunpack.c.l.b16 %v4983
    %v5185 = vunpack.c.l.b16 %v4984
    %v5186 = vunpack.c.l.b16 %v4985
    %v5187 = vunpack.c.l.b16 %v4986
    %v5188 = vunpack.c.l.b16 %v4987
    %v5189 = vunpack.c.l.b16 %v4988
    %v5190 = vunpack.c.l.b16 %v4989
    %v5191 = vunpack.c.l.b16 %v4990
    %v5192 = vunpack.c.l.b16 %v4991
    %v5193 = vunpack.c.l.b16 %v4992
    %v5194 = vunpack.c.l.b16 %v4993
    %v5195 = vunpack.c.l.b16 %v4994
    %v5196 = vunpack.c.l.b16 %v4995
    %v5197 = vunpack.c.l.b16 %v4996
    %v5198 = vunpack.c.l.b16 %v4997
    %v5199 = vunpack.c.l.b16 %v4998
    %v5200 = vunpack.c.l.b16 %v4999
    %v5201 = vunpack.c.l.b16 %v5000
    %v5202 = vunpack.c.l.b16 %v5001
    %v5203 = vunpack.c.l.b16 %v5002
    %v5204 = vunpack.c.l.b16 %v5003
    %v5205 = vunpack.c.l.b16 %v5004
    %v5206 = vunpack.c.l.b16 %v5005
    %v5207 = vunpack.c.l.b16 %v5006
    %v5208 = vunpack.c.l.b16 %v5007
    %v5209 = vunpack.c.l.b16 %v5008
    %v5210 = vunpack.c.l.b16 %v5009
    %v5211 = vunpack.c.l.b16 %v5010
    %v5212 = vunpack.c.l.b16 %v5011
    %v5213 = vunpack.c.l.b16 %v5012
    %v5214 = vunpack.c.l.b16 %v5013
    %v5215 = vunpack.c.l.b16 %v5014
    %v5216 = vunpack.c.l.b16 %v5015
    %v5217 = vunpack.c.l.b16 %v5016
    %v5218 = vunpack.c.l.b16 %v5017
    %v5219 = vunpack.c.l.b16 %v5018
    %v5220 = vunpack.c.l.b16 %v5019
    %v5221 = vunpack.c.l.b16 %v5020
    %v5222 = vunpack.c.l.b16 %v5021
    %v5223 = vunpack.c.l.b16 %v5022
    %v5224 = vunpack.c.l.b16 %v5023
    %v5225 = vunpack.c.l.b16 %v5024
    %v5226 = vunpack.c.l.b16 %v5025
    %v5227 = vunpack.c.l.b16 %v5026
    %v5228 = vunpack.c.l.b16 %v5027
    %v5229 = vunpack.c.l.b16 %v5028
    %v5230 = vunpack.c.l.b16 %v5029
    %v5231 = vunpack.c.l.b16 %v5030
    %v5232 = vunpack.c.l.b16 %v5031
    %v5233 = vunpack.c.l.b16 %v5032
    %v5234 = vunpack.c.l.b16 %v5033
    %v5235 = vunpack.c.l.b16 %v5034
    %v5236 = vunpack.c.l.b16 %v5035
    %v5237 = vunpack.c.l.b16 %v5036
    %v5238 = vunpack.c.l.b16 %v5037
    %v5239 = vunpack.c.l.b16 %v5038
    %v5240 = vunpack.c.l.b16 %v5039
    %v5241 = vunpack.c.l.b16 %v5040
    %v5242 = vunpack.c.l.b16 %v5041
    %v5243 = vunpack.c.l.b16 %v5042
    %v5244 = vunpack.c.l.b16 %v5043
    %v5245 = vunpack.c.l.b16 %v5044
    %v5246 = vunpack.c.l.b16 %v5045
    %v5247 = vunpack.c.l.b16 %v5046
    %v5248 = vunpack.c.l.b16 %v5047
    %v5249 = vunpack.c.l.b16 %v5048
    %v5250 = vunpack.c.l.b16 %v5049
    %v5251 = vunpack.c.l.b16 %v5050
    %v5252 = vunpack.c.l.b16 %v5051
    %v5253 = vunpack.c.l.b16 %v5052
    %v5254 = vunpack.c.l.b16 %v5053
    %v5255 = vunpack.c.l.b16 %v5054
    %v5256 = vunpack.c.l.b16 %v5055
    %v5257 = vunpack.c.l.b16 %v5056
    %v5258 = vunpack.c.l.b16 %v5057
    %v5259 = vunpack.c.l.b16 %v5058
    %v5260 = vunpack.c.l.b16 %v5059
    %v5261 = vunpack.c.l.b16 %v5060
    %v5262 = vunpack.c.l.b16 %v5061
    %v5263 = vunpack.c.l.b16 %v5062
    %v5264 = vpack.c.b16 %v5165, %v5164
    %v5265 = vpack.c.b16 %v5167, %v5166
    %v5266 = vpack.c.b16 %v5169, %v5168
    %v5267 = vpack.c.b16 %v5171, %v5170
    %v5268 = vpack.c.b16 %v5173, %v5172
    %v5269 = vpack.c.b16 %v5175, %v5174
    %v5270 = vpack.c.b16 %v5177, %v5176
    %v5271 = vpack.c.b16 %v5179, %v5178
    %v5272 = vpack.c.b16 %v5181, %v5180
    %v5273 = vpack.c.b16 %v5183, %v5182
    %v5274 = vpack.c.b16 %v5185, %v5184
    %v5275 = vpack.c.b16 %v5187, %v5186
    %v5276 = vpack.c.b16 %v5189, %v5188
    %v5277 = vpack.c.b16 %v5191, %v5190
    %v5278 = vpack.c.b16 %v5193, %v5192
    %v5279 = vpack.c.b16 %v5195, %v5194
    %v5280 = vpack.c.b16 %v5197, %v5196
    %v5281 = vpack.c.b16 %v5199, %v5198
    %v5282 = vpack.c.b16 %v5201, %v5200
    %v5283 = vpack.c.b16 %v5203, %v5202
    %v5284 = vpack.c.b16 %v5205, %v5204
    %v5285 = vpack.c.b16 %v5207, %v5206
    %v5286 = vpack.c.b16 %v5209, %v5208
    %v5287 = vpack.c.b16 %v5211, %v5210
    %v5288 = vpack.c.b16 %v5213, %v5212
    %v5289 = vpack.c.b16 %v5215, %v5214
    %v5290 = vpack.c.b16 %v5217, %v5216
    %v5291 = vpack.c.b16 %v5219, %v5218
    %v5292 = vpack.c.b16 %v5221, %v5220
    %v5293 = vpack.c.b16 %v5223, %v5222
    %v5294 = vpack.c.b16 %v5225, %v5224
    %v5295 = vpack.c.b16 %v5227, %v5226
    %v5296 = vpack.c.b16 %v5229, %v5228
    %v5297 = vpack.c.b16 %v5231, %v5230
    %v5298 = vpack.c.b16 %v5233, %v5232
    %v5299 = vpack.c.b16 %v5235, %v5234
    %v5300 = vpack.c.b16 %v5237, %v5236
    %v5301 = vpack.c.b16 %v5239, %v5238
    %v5302 = vpack.c.b16 %v5241, %v5240
    %v5303 = vpack.c.b16 %v5243, %v5242
    %v5304 = vpack.c.b16 %v5245, %v5244
    %v5305 = vpack.c.b16 %v5247, %v5246
    %v5306 = vpack.c.b16 %v5249, %v5248
    %v5307 = vpack.c.b16 %v5251, %v5250
    %v5308 = vpack.c.b16 %v5253, %v5252
    %v5309 = vpack.c.b16 %v5255, %v5254
    %v5310 = vpack.c.b16 %v5257, %v5256
    %v5311 = vpack.c.b16 %v5259, %v5258
    %v5312 = vpack.c.b16 %v5261, %v5260
    %v5313 = vpack.c.b16 %v5263, %v5262
    %v5365 = vsel %vm2034, %v4962, 0
    %5367 = vmatpush.bf16.msra.mxu0 %v5271
    %5368 = vmatpush.bf16.msra.mxu0 %v5270
    %5369 = vmatpush.bf16.msra.mxu0 %v5269
    %5370 = vmatpush.bf16.msra.mxu0 %v5268
    %5371 = vmatpush.bf16.msra.mxu0 %v5267
    %5372 = vmatpush.bf16.msra.mxu0 %v5266
    %5373 = vmatpush.bf16.msra.mxu0 %v5265
    %5374 = vmatpush.bf16.msra.mxu0 %v5264
    %5375 = vmatmul.bf16.gmra.mxu0 %v4956
    %v5376 = vpop.f32.mrf.mxu0
    %v5377 = vadd.f32 %v5063, %v5376
    %v5378 = vpop.f32.mrf.mxu0
    %5379 = vdwg.mxu0
    %5380 = vmatpush.bf16.msra.mxu0 %v5279
    %5381 = vmatpush.bf16.msra.mxu0 %v5278
    %5382 = vmatpush.bf16.msra.mxu0 %v5277
    %5383 = vmatpush.bf16.msra.mxu0 %v5276
    %5384 = vmatpush.bf16.msra.mxu0 %v5275
    %5385 = vmatpush.bf16.msra.mxu0 %v5274
    %5386 = vmatpush.bf16.msra.mxu0 %v5273
    %5387 = vmatpush.bf16.msra.mxu0 %v5272
    %5388 = vmatmul.bf16.gmra.mxu0 %v4957
    %v5389 = vpop.f32.mrf.mxu0
    %v5390 = vadd.f32 %v5377, %v5389
    %v5391 = vpop.f32.mrf.mxu0
    %5392 = vdwg.mxu0
    %5393 = vmatpush.bf16.msra.mxu0 %v5287
    %5394 = vmatpush.bf16.msra.mxu0 %v5286
    %5395 = vmatpush.bf16.msra.mxu0 %v5285
    %5396 = vmatpush.bf16.msra.mxu0 %v5284
    %5397 = vmatpush.bf16.msra.mxu0 %v5283
    %5398 = vmatpush.bf16.msra.mxu0 %v5282
    %5399 = vmatpush.bf16.msra.mxu0 %v5281
    %5400 = vmatpush.bf16.msra.mxu0 %v5280
    %5401 = vmatmul.bf16.gmra.mxu0 %v4958
    %v5402 = vpop.f32.mrf.mxu0
    %v5403 = vadd.f32 %v5390, %v5402
    %v5404 = vpop.f32.mrf.mxu0
    %5405 = vdwg.mxu0
    %5406 = vmatpush.bf16.msra.mxu0 %v5295
    %5407 = vmatpush.bf16.msra.mxu0 %v5294
    %5408 = vmatpush.bf16.msra.mxu0 %v5293
    %5409 = vmatpush.bf16.msra.mxu0 %v5292
    %5410 = vmatpush.bf16.msra.mxu0 %v5291
    %5411 = vmatpush.bf16.msra.mxu0 %v5290
    %5412 = vmatpush.bf16.msra.mxu0 %v5289
    %5413 = vmatpush.bf16.msra.mxu0 %v5288
    %5414 = vmatmul.bf16.gmra.mxu0 %v4959
    %v5415 = vpop.f32.mrf.mxu0
    %v5416 = vadd.f32 %v5403, %v5415
    %v5417 = vpop.f32.mrf.mxu0
    %5418 = vdwg.mxu0
    %5419 = vmatpush.bf16.msra.mxu0 %v5303
    %5420 = vmatpush.bf16.msra.mxu0 %v5302
    %5421 = vmatpush.bf16.msra.mxu0 %v5301
    %5422 = vmatpush.bf16.msra.mxu0 %v5300
    %5423 = vmatpush.bf16.msra.mxu0 %v5299
    %5424 = vmatpush.bf16.msra.mxu0 %v5298
    %5425 = vmatpush.bf16.msra.mxu0 %v5297
    %5426 = vmatpush.bf16.msra.mxu0 %v5296
    %5427 = vmatmul.bf16.gmra.mxu0 %v4960
    %v5428 = vpop.f32.mrf.mxu0
    %v5429 = vadd.f32 %v5416, %v5428
    %v5430 = vpop.f32.mrf.mxu0
    %5431 = vdwg.mxu0
    %5432 = vmatpush.bf16.msra.mxu0 %v5311
    %5433 = vmatpush.bf16.msra.mxu0 %v5310
    %5434 = vmatpush.bf16.msra.mxu0 %v5309
    %5435 = vmatpush.bf16.msra.mxu0 %v5308
    %5436 = vmatpush.bf16.msra.mxu0 %v5307
    %5437 = vmatpush.bf16.msra.mxu0 %v5306
    %5438 = vmatpush.bf16.msra.mxu0 %v5305
    %5439 = vmatpush.bf16.msra.mxu0 %v5304
    %5440 = vmatmul.bf16.gmra.mxu0 %v4961
    %v5441 = vpop.f32.mrf.mxu0
    %v5442 = vadd.f32 %v5429, %v5441
    %v5443 = vpop.f32.mrf.mxu0
    %5444 = vdwg.mxu0
    %5445 = vmatpush.bf16.msra.mxu0 0
    %5446 = vmatpush.bf16.msra.mxu0 0
    %5447 = vmatpush.bf16.msra.mxu0 0
    %5448 = vmatpush.bf16.msra.mxu0 0
    %5449 = vmatpush.bf16.msra.mxu0 0
    %5450 = vmatpush.bf16.msra.mxu0 0
    %5451 = vmatpush.bf16.msra.mxu0 %v5313
    %5452 = vmatpush.bf16.msra.mxu0 %v5312
    %5453 = vmatmul.bf16.gmra.mxu0 %v5365
    %v5454 = vpop.f32.mrf.mxu0
    %v5455 = vadd.f32 %v5442, %v5454
    %v5456 = vpop.f32.mrf.mxu0
    %5457 = vdwg.mxu0
    %vm5458 = vcmask 74752
    %v5459 = vsel %vm5458, %v5455, -inf
    %5460 = vmax.xlane.f32.xlu0 %v5459
    %v5461 = vpop.xlane.xlu0 %5460
    %v5462 = vsub.f32 %v5455, %v5461
    %v5463 = vmul.f32 %v5462, 1.442695
    %v5464 = vpow.pop %v5463
    %v5465 = vsel %vm5458, %v5464, 0.0
    %5466 = vadd.xlane.f32.xlu0 %v5465
    %v5467 = vpop.xlane.xlu0 %5466
    %v5468 = vlog2.pop %v5467
    %v5469 = vmul.f32 %v5468, 0.6931472
    %v5470 = vsub.f32 %v5462, %v5469
    %5471 = vst.msk [vmem:[#allocation5] sm:$0x3] %vm5458, %v5470
    // Predicated region
    $region26: #{net_forward.1} parent=1 // pred_check
      _
    $region27: #{net_forward.1} parent=1 // pred_check_branch
      %5473 = sbr.rel (0) target = $region29
    $region28: #{net_forward.1} parent=1 // pred_region
      %5475 = vsyncadd [#allocation6], 0
      %s5477 = sshll.u32 [#allocation5], 4
      %s5478 = int_to_ptr.vmem [resolvable:$true] %s5477
      %s5479 = sshll.u32 %s6, 4
      %s5480 = int_to_ptr.hbm [resolvable:$true] %s5479
      %5482 = dma.vmem_to_hbm [thread:$0]  %s5478, 32, %s5480, [#allocation6]
    $region29: #{net_forward.1} parent=1 // pred_fallthru
      _
    // Predicated region
    $region30: #{net_forward.1} parent=1 // pred_check
      _
    $region31: #{net_forward.1} parent=1 // pred_check_branch
      %5484 = sbr.rel (0) target = $region33
    $region32: #{net_forward.1} parent=1 // pred_region
      %5486 = dma.done [#allocation6], 32
    $region33: #{net_forward.1} parent=1 // pred_fallthru
      _
    %5487 = vsyncpa [#allocation6], 1

</llo_original>
